<compile_context>
chip_gen: v6e
topology: v6e:2x2x1
jax: 0.10.0
libtpu: 0.0.40
codegen_flags: <defaults>
</compile_context>

<pallas_src>
import functools

import jax
import jax.numpy as jnp
from jax.experimental import pallas as pl
from jax.experimental.pallas import tpu as pltpu

INPUT_SIZE = 16
LATENT_DIM = 32
N_LAYERS = 2
BATCH = 8

LANE = 128                      # one gate block == one 128-lane vreg block
# Set to jax.lax.Precision.HIGHEST if bit-level parity with f32 PyTorch is
# required; default precision already matches the f32 reference to <1e-4 here.
MATMUL_PRECISION = None


def _sigmoid(v):
    # tanh form: transcendental goes to the EUP slot, avoids VPU divide / inf.
    return 0.5 * (jnp.tanh(0.5 * v) + 1.0)


# --------------------------------------------------------------------------
# Slab layout (shared between host packer and kernel; all offsets static).
# Lane layout of every row: [ r | z | n_input | n_hidden ], 128 lanes each.
# --------------------------------------------------------------------------
def _slab_layout(n_layers, input_size, latent_dim):
    enc_w = []
    off = 0
    in_dim = input_size
    for _ in range(n_layers):
        enc_w.append((off, in_dim))          # encoder W_ih per layer
        off += in_dim
        in_dim = latent_dim
    dec0_wih = off; off += latent_dim        # decoder layer-0 W_ih (hoisted)
    dec0_whh = off; off += input_size        # decoder layer-0 W_hh (per step)
    dec_cat = []
    for _ in range(1, n_layers):             # decoder layers >=1: [[W_ih],[W_hh]]
        dec_cat.append(off)
        off += 2 * input_size
    out_w = off; off += input_size           # output linear (stored as W.T)
    bias = off                               # one bias row per layer + out
    off += ((2 * n_layers + 1 + 7) // 8) * 8
    return dict(enc_w=enc_w, dec0_wih=dec0_wih, dec0_whh=dec0_whh,
                dec_cat=dec_cat, out_w=out_w, bias=bias, rows=off)


# --------------------------------------------------------------------------
# Host-side packing: run ONCE at init, not per call.
# --------------------------------------------------------------------------
def pack_params(params, *, n_layers=N_LAYERS, input_size=INPUT_SIZE,
                latent_dim=LATENT_DIM):
    enc, dec, w_out, b_out = params
    Hd = input_size
    assert input_size % 8 == 0 and latent_dim % 8 == 0
    assert input_size <= LANE and latent_dim <= LANE
    lay = _slab_layout(n_layers, input_size, latent_dim)
    slab = jnp.zeros((lay['rows'], 4 * LANE), jnp.float32)

    def put(s, row, blk, mat):
        r, c = mat.shape
        return s.at[row:row + r, blk * LANE: blk * LANE + c].set(mat)

    def put_bias(s, idx, blk, vec):
        r = lay['bias'] + idx
        return s.at[r, blk * LANE: blk * LANE + vec.shape[0]].set(vec)

    # Encoder: h0 == 0, so only W_ih is needed; gate blocks (r|z|n|-).
    # Bias row: [b_ih_r+b_hh_r | b_ih_z+b_hh_z | b_ih_n | b_hh_n].
    for l, (row, _) in enumerate(lay['enc_w']):
        wih, _whh, bih, bhh = enc[l]
        for g in range(3):
            slab = put(slab, row, g, wih[g])
        slab = put_bias(slab, l, 0, (bih[0] + bhh[0])[0])
        slab = put_bias(slab, l, 1, (bih[1] + bhh[1])[0])
        slab = put_bias(slab, l, 2, bih[2][0])
        slab = put_bias(slab, l, 3, bhh[2][0])

    # Decoder layer 0: hoisted W_ih (r|z|n|-), per-step W_hh (r|z|-|n).
    wih, whh, bih, bhh = dec[0]
    for g in range(3):
        slab = put(slab, lay['dec0_wih'], g, wih[g])
    slab = put(slab, lay['dec0_whh'], 0, whh[0])
    slab = put(slab, lay['dec0_whh'], 1, whh[1])
    slab = put(slab, lay['dec0_whh'], 3, whh[2])
    slab = put_bias(slab, n_layers, 0, (bih[0] + bhh[0])[0])
    slab = put_bias(slab, n_layers, 1, (bih[1] + bhh[1])[0])
    slab = put_bias(slab, n_layers, 2, bih[2][0])
    slab = put_bias(slab, n_layers, 3, bhh[2][0])

    # Decoder layers >= 1: fused RHS [[W_ih],[W_hh]], blocks (r|z|n_i|n_h).
    for i, l in enumerate(range(1, n_layers)):
        wih, whh, bih, bhh = dec[l]
        row = lay['dec_cat'][i]
        slab = put(slab, row, 0, wih[0]); slab = put(slab, row + Hd, 0, whh[0])
        slab = put(slab, row, 1, wih[1]); slab = put(slab, row + Hd, 1, whh[1])
        slab = put(slab, row, 2, wih[2])
        slab = put(slab, row + Hd, 3, whh[2])
        slab = put_bias(slab, n_layers + l, 0, (bih[0] + bhh[0])[0])
        slab = put_bias(slab, n_layers + l, 1, (bih[1] + bhh[1])[0])
        slab = put_bias(slab, n_layers + l, 2, bih[2][0])
        slab = put_bias(slab, n_layers + l, 3, bhh[2][0])

    # Output linear (w_out stored as W.T so y = x @ w_out + b_out).
    slab = put(slab, lay['out_w'], 0, w_out)
    slab = put_bias(slab, 2 * n_layers, 0, b_out[0])
    return slab


# --------------------------------------------------------------------------
# Kernel
# --------------------------------------------------------------------------
def _gru_ae_kernel(n_layers, input_size, latent_dim, batch, layout,
                   x_ref, p_ref, out_ref, dec_scratch):
    f32 = jnp.float32
    L = LANE
    Hd = input_size

    def dot(a, b):
        return jnp.dot(a, b, preferred_element_type=f32,
                       precision=MATMUL_PRECISION)

    def bias_row(i):
        r = layout['bias'] + i
        return p_ref[r:r + 1, :]                       # (1, 4L), read once

    def gru_gates(g, h_prev):
        # g: (rows, 4L) pre-activations [r | z | n_i | n_h]; all slices are
        # 128-lane aligned (whole vreg blocks). PyTorch gate order/math.
        r = _sigmoid(g[:, 0:L])
        z = _sigmoid(g[:, L:2 * L])
        n = jnp.tanh(g[:, 2 * L:3 * L] + r * g[:, 3 * L:4 * L])
        if h_prev is None:                             # previous hidden == 0
            return (1.0 - z) * n
        return (1.0 - z) * n + z * h_prev

    # ---- Encoder: seq_len == 1 and zero h0 -> one fused matmul per layer.
    # Zero-padded weight/bias lanes keep padded lanes of h exactly 0.
    h = x_ref[...].astype(f32)                         # (B, input_size)
    for l, (row, in_dim) in enumerate(layout['enc_w']):
        lhs = h if l == 0 else h[:, 0:latent_dim]
        g = dot(lhs, p_ref[row:row + in_dim, :]) + bias_row(l)
        h = gru_gates(g, None)                         # (B, L)
    code = h[:, 0:latent_dim]                          # (B, latent)

    # ---- Decoder: 2-D input => unbatched length-B sequence, zero h0.
    # Layer-0 input projections hoisted out of the serial recurrence.
    r0 = layout['dec0_wih']
    x0 = dot(code, p_ref[r0:r0 + latent_dim, :]) + bias_row(n_layers)  # (B,4L)
    rh = layout['dec0_whh']
    whh0 = p_ref[rh:rh + Hd, :]                        # (Hd, 4L): [r|z|-|n]

    cat_w, cat_b = [], []
    for i, l in enumerate(range(1, n_layers)):
        rc = layout['dec_cat'][i]
        cat_w.append(p_ref[rc:rc + 2 * Hd, :])         # [[W_ih],[W_hh]] fused
        cat_b.append(bias_row(n_layers + l))

    hs = [None] * n_layers
    for t in range(batch):                             # fully unrolled chain
        xt = x0[t:t + 1, :]                            # (1, 4L)
        if t == 0:                                     # h == 0: skip h @ W_hh
            hs[0] = gru_gates(xt, None)
        else:
            hs[0] = gru_gates(xt + dot(hs[0][:, 0:Hd], whh0), hs[0])
        inp = hs[0]
        for i, l in enumerate(range(1, n_layers)):
            if t == 0:                                 # h == 0: input rows only
                g = dot(inp[:, 0:Hd], cat_w[i][0:Hd, :]) + cat_b[i]
                hs[l] = gru_gates(g, None)
            else:                                      # ONE fused [x|h] matmul
                lhs = jnp.concatenate([inp[:, 0:Hd], hs[l][:, 0:Hd]], axis=1)
                g = dot(lhs, cat_w[i]) + cat_b[i]
                hs[l] = gru_gates(g, hs[l])
            inp = hs[l]
        # Row store is off the recurrence dependency chain (t+1 never reads it).
        dec_scratch[t:t + 1, :] = inp

    # ---- Output linear (squeeze(1) is a no-op since input_size != 1).
    ro = layout['out_w']
    dec_out = dec_scratch[...]                         # (B, L)
    out = dot(dec_out[:, 0:input_size], p_ref[ro:ro + input_size, :]) \
        + bias_row(2 * n_layers)
    out_ref[...] = out[:, 0:input_size].astype(out_ref.dtype)


@functools.partial(jax.jit,
                   static_argnames=("n_layers", "input_size", "latent_dim"))
def gru_autoencoder(x, packed, *, n_layers=N_LAYERS, input_size=INPUT_SIZE,
                    latent_dim=LATENT_DIM):
    batch = x.shape[0]
    layout = _slab_layout(n_layers, input_size, latent_dim)
    kernel = functools.partial(_gru_ae_kernel, n_layers, input_size,
                               latent_dim, batch, layout)
    return pl.pallas_call(
        kernel,
        out_shape=jax.ShapeDtypeStruct((batch, input_size), jnp.float32),
        in_specs=[pl.BlockSpec(memory_space=pltpu.MemorySpace.VMEM),
                  pl.BlockSpec(memory_space=pltpu.MemorySpace.VMEM)],
        out_specs=pl.BlockSpec(memory_space=pltpu.MemorySpace.VMEM),
        scratch_shapes=[pltpu.VMEM((batch, LANE), jnp.float32)],
    )(x, packed)


# --------------------------------------------------------------------------
# Deterministic synthetic parameters (PyTorch-equivalent layout).
# --------------------------------------------------------------------------
def init_params(key, input_size, latent_dim, n_layers):
    keys = iter(jax.random.split(key, 8 * n_layers + 2))

    def unif(k, shape, fan):
        bound = 1.0 / (fan ** 0.5)
        return jax.random.uniform(k, shape, jnp.float32, -bound, bound)

    enc, dec = [], []
    in_dim = input_size
    for _ in range(n_layers):
        enc.append((unif(next(keys), (3, in_dim, latent_dim), latent_dim),
                    unif(next(keys), (3, latent_dim, latent_dim), latent_dim),
                    unif(next(keys), (3, 1, latent_dim), latent_dim),
                    unif(next(keys), (3, 1, latent_dim), latent_dim)))
        in_dim = latent_dim
    in_dim = latent_dim
    for _ in range(n_layers):
        dec.append((unif(next(keys), (3, in_dim, input_size), input_size),
                    unif(next(keys), (3, input_size, input_size), input_size),
                    unif(next(keys), (3, 1, input_size), input_size),
                    unif(next(keys), (3, 1, input_size), input_size)))
        in_dim = input_size
    w_out = unif(next(keys), (input_size, input_size), input_size)  # W.T
    b_out = unif(next(keys), (1, input_size), input_size)
    return enc, dec, w_out, b_out


# --------------------------------------------------------------------------
# Pure-JAX reference (same math and parameter layout as the PyTorch module).
# --------------------------------------------------------------------------
def _sigmoid_ref(v):
    return 1.0 / (1.0 + jnp.exp(-v))


def _gru_cell_ref(x, h, wih, whh, bih, bhh):
    i_r = x @ wih[0] + bih[0]
    i_z = x @ wih[1] + bih[1]
    i_n = x @ wih[2] + bih[2]
    h_r = h @ whh[0] + bhh[0]
    h_z = h @ whh[1] + bhh[1]
    h_n = h @ whh[2] + bhh[2]
    r = _sigmoid_ref(i_r + h_r)
    z = _sigmoid_ref(i_z + h_z)
    n = jnp.tanh(i_n + r * h_n)
    return (1.0 - z) * n + z * h


def reference_forward(x, params, n_layers):
    enc, dec, w_out, b_out = params
    batch = x.shape[0]
    h = x
    for (wih, whh, bih, bhh) in enc:
        h = _gru_cell_ref(h, jnp.zeros((batch, wih.shape[2]), jnp.float32),
                          wih, whh, bih, bhh)
    hidden = dec[0][1].shape[1]
    hs = [jnp.zeros((1, hidden), jnp.float32) for _ in range(n_layers)]
    outs = []
    for t in range(batch):
        inp = h[t:t + 1]
        for l in range(n_layers):
            wih, whh, bih, bhh = dec[l]
            hs[l] = _gru_cell_ref(inp, hs[l], wih, whh, bih, bhh)
            inp = hs[l]
        outs.append(inp)
    dec_out = jnp.concatenate(outs, axis=0)
    return dec_out @ w_out + b_out


if __name__ == "__main__":
    key = jax.random.PRNGKey(0)
    kx, kp = jax.random.split(key)
    x = jax.random.normal(kx, (BATCH, INPUT_SIZE), jnp.float32)
    params = init_params(kp, INPUT_SIZE, LATENT_DIM, N_LAYERS)

    # Pack once at init (out of the per-call path), then run the jitted kernel.
    packed = jax.block_until_ready(pack_params(params))
    out = jax.block_until_ready(gru_autoencoder(x, packed))
    ref = jax.block_until_ready(reference_forward(x, params, N_LAYERS))

    assert out.shape == (BATCH, INPUT_SIZE), out.shape
    err = float(jnp.max(jnp.abs(out - ref)))
    assert jnp.allclose(out, ref, atol=1e-4, rtol=1e-4), err
    print("KERNEL_OK")
</pallas_src>

<mosaic_0001>
module attributes {stable_mosaic.version = 11 : i64} {
  func.func @_gru_ae_kernel(%arg0: memref<8x16xf32, #tpu.memory_space<vmem>>, %arg1: memref<152x512xf32, #tpu.memory_space<vmem>>, %arg2: memref<8x16xf32, #tpu.memory_space<vmem>>, %arg3: memref<8x128xf32, #tpu.memory_space<vmem>>) attributes {dimension_semantics = [], scalar_prefetch = 0 : i64, scratch_operands = 1 : i64, tpu.core_type = #tpu.core_type<tc>} {
    %c0 = arith.constant 0 : index
    %c0_0 = arith.constant 0 : index
    %0 = vector.load %arg0[%c0, %c0_0] : memref<8x16xf32, #tpu.memory_space<vmem>>, vector<8x16xf32>
    %c0_1 = arith.constant 0 : index
    %c0_2 = arith.constant 0 : index
    %1 = vector.load %arg1[%c0_1, %c0_2] : memref<152x512xf32, #tpu.memory_space<vmem>>, vector<16x512xf32>
    %cst = arith.constant dense<0.000000e+00> : vector<8x512xf32>
    %2 = tpu.matmul %0, %1, %cst {dimension_numbers = #tpu.dot_dimension_numbers<[1], [0], [0], [1], [0, 0, 1, 1], [], []>} : vector<8x16xf32>, vector<16x512xf32>, vector<8x512xf32> -> vector<8x512xf32>
    %c144 = arith.constant 144 : index
    %c0_3 = arith.constant 0 : index
    %3 = vector.load %arg1[%c144, %c0_3] : memref<152x512xf32, #tpu.memory_space<vmem>>, vector<1x512xf32>
    %4 = vector.broadcast %3 : vector<1x512xf32> to vector<8x512xf32>
    %5 = arith.addf %2, %4 : vector<8x512xf32>
    %6 = vector.extract_strided_slice %5 {offsets = [0, 0], sizes = [8, 128], strides = [1, 1]} : vector<8x512xf32> to vector<8x128xf32>
    %cst_4 = arith.constant 5.000000e-01 : f32
    %7 = vector.broadcast %cst_4 : f32 to vector<8x128xf32>
    %8 = arith.mulf %7, %6 : vector<8x128xf32>
    %9 = math.tanh %8 : vector<8x128xf32>
    %cst_5 = arith.constant 1.000000e+00 : f32
    %10 = vector.broadcast %cst_5 : f32 to vector<8x128xf32>
    %11 = arith.addf %9, %10 : vector<8x128xf32>
    %cst_6 = arith.constant 5.000000e-01 : f32
    %12 = vector.broadcast %cst_6 : f32 to vector<8x128xf32>
    %13 = arith.mulf %12, %11 : vector<8x128xf32>
    %14 = vector.extract_strided_slice %5 {offsets = [0, 128], sizes = [8, 128], strides = [1, 1]} : vector<8x512xf32> to vector<8x128xf32>
    %cst_7 = arith.constant 5.000000e-01 : f32
    %15 = vector.broadcast %cst_7 : f32 to vector<8x128xf32>
    %16 = arith.mulf %15, %14 : vector<8x128xf32>
    %17 = math.tanh %16 : vector<8x128xf32>
    %cst_8 = arith.constant 1.000000e+00 : f32
    %18 = vector.broadcast %cst_8 : f32 to vector<8x128xf32>
    %19 = arith.addf %17, %18 : vector<8x128xf32>
    %cst_9 = arith.constant 5.000000e-01 : f32
    %20 = vector.broadcast %cst_9 : f32 to vector<8x128xf32>
    %21 = arith.mulf %20, %19 : vector<8x128xf32>
    %22 = vector.extract_strided_slice %5 {offsets = [0, 256], sizes = [8, 128], strides = [1, 1]} : vector<8x512xf32> to vector<8x128xf32>
    %23 = vector.extract_strided_slice %5 {offsets = [0, 384], sizes = [8, 128], strides = [1, 1]} : vector<8x512xf32> to vector<8x128xf32>
    %24 = arith.mulf %13, %23 : vector<8x128xf32>
    %25 = arith.addf %22, %24 : vector<8x128xf32>
    %26 = math.tanh %25 : vector<8x128xf32>
    %cst_10 = arith.constant 1.000000e+00 : f32
    %27 = vector.broadcast %cst_10 : f32 to vector<8x128xf32>
    %28 = arith.subf %27, %21 : vector<8x128xf32>
    %29 = arith.mulf %28, %26 : vector<8x128xf32>
    %30 = vector.extract_strided_slice %29 {offsets = [0, 0], sizes = [8, 32], strides = [1, 1]} : vector<8x128xf32> to vector<8x32xf32>
    %c16 = arith.constant 16 : index
    %c0_11 = arith.constant 0 : index
    %31 = vector.load %arg1[%c16, %c0_11] : memref<152x512xf32, #tpu.memory_space<vmem>>, vector<32x512xf32>
    %cst_12 = arith.constant dense<0.000000e+00> : vector<8x512xf32>
    %32 = tpu.matmul %30, %31, %cst_12 {dimension_numbers = #tpu.dot_dimension_numbers<[1], [0], [0], [1], [0, 0, 1, 1], [], []>} : vector<8x32xf32>, vector<32x512xf32>, vector<8x512xf32> -> vector<8x512xf32>
    %c145 = arith.constant 145 : index
    %c0_13 = arith.constant 0 : index
    %33 = vector.load %arg1[%c145, %c0_13] : memref<152x512xf32, #tpu.memory_space<vmem>>, vector<1x512xf32>
    %34 = vector.broadcast %33 : vector<1x512xf32> to vector<8x512xf32>
    %35 = arith.addf %32, %34 : vector<8x512xf32>
    %36 = vector.extract_strided_slice %35 {offsets = [0, 0], sizes = [8, 128], strides = [1, 1]} : vector<8x512xf32> to vector<8x128xf32>
    %cst_14 = arith.constant 5.000000e-01 : f32
    %37 = vector.broadcast %cst_14 : f32 to vector<8x128xf32>
    %38 = arith.mulf %37, %36 : vector<8x128xf32>
    %39 = math.tanh %38 : vector<8x128xf32>
    %cst_15 = arith.constant 1.000000e+00 : f32
    %40 = vector.broadcast %cst_15 : f32 to vector<8x128xf32>
    %41 = arith.addf %39, %40 : vector<8x128xf32>
    %cst_16 = arith.constant 5.000000e-01 : f32
    %42 = vector.broadcast %cst_16 : f32 to vector<8x128xf32>
    %43 = arith.mulf %42, %41 : vector<8x128xf32>
    %44 = vector.extract_strided_slice %35 {offsets = [0, 128], sizes = [8, 128], strides = [1, 1]} : vector<8x512xf32> to vector<8x128xf32>
    %cst_17 = arith.constant 5.000000e-01 : f32
    %45 = vector.broadcast %cst_17 : f32 to vector<8x128xf32>
    %46 = arith.mulf %45, %44 : vector<8x128xf32>
    %47 = math.tanh %46 : vector<8x128xf32>
    %cst_18 = arith.constant 1.000000e+00 : f32
    %48 = vector.broadcast %cst_18 : f32 to vector<8x128xf32>
    %49 = arith.addf %47, %48 : vector<8x128xf32>
    %cst_19 = arith.constant 5.000000e-01 : f32
    %50 = vector.broadcast %cst_19 : f32 to vector<8x128xf32>
    %51 = arith.mulf %50, %49 : vector<8x128xf32>
    %52 = vector.extract_strided_slice %35 {offsets = [0, 256], sizes = [8, 128], strides = [1, 1]} : vector<8x512xf32> to vector<8x128xf32>
    %53 = vector.extract_strided_slice %35 {offsets = [0, 384], sizes = [8, 128], strides = [1, 1]} : vector<8x512xf32> to vector<8x128xf32>
    %54 = arith.mulf %43, %53 : vector<8x128xf32>
    %55 = arith.addf %52, %54 : vector<8x128xf32>
    %56 = math.tanh %55 : vector<8x128xf32>
    %cst_20 = arith.constant 1.000000e+00 : f32
    %57 = vector.broadcast %cst_20 : f32 to vector<8x128xf32>
    %58 = arith.subf %57, %51 : vector<8x128xf32>
    %59 = arith.mulf %58, %56 : vector<8x128xf32>
    %60 = vector.extract_strided_slice %59 {offsets = [0, 0], sizes = [8, 32], strides = [1, 1]} : vector<8x128xf32> to vector<8x32xf32>
    %c48 = arith.constant 48 : index
    %c0_21 = arith.constant 0 : index
    %61 = vector.load %arg1[%c48, %c0_21] : memref<152x512xf32, #tpu.memory_space<vmem>>, vector<32x512xf32>
    %cst_22 = arith.constant dense<0.000000e+00> : vector<8x512xf32>
    %62 = tpu.matmul %60, %61, %cst_22 {dimension_numbers = #tpu.dot_dimension_numbers<[1], [0], [0], [1], [0, 0, 1, 1], [], []>} : vector<8x32xf32>, vector<32x512xf32>, vector<8x512xf32> -> vector<8x512xf32>
    %c146 = arith.constant 146 : index
    %c0_23 = arith.constant 0 : index
    %63 = vector.load %arg1[%c146, %c0_23] : memref<152x512xf32, #tpu.memory_space<vmem>>, vector<1x512xf32>
    %64 = vector.broadcast %63 : vector<1x512xf32> to vector<8x512xf32>
    %65 = arith.addf %62, %64 : vector<8x512xf32>
    %c80 = arith.constant 80 : index
    %c0_24 = arith.constant 0 : index
    %66 = vector.load %arg1[%c80, %c0_24] : memref<152x512xf32, #tpu.memory_space<vmem>>, vector<16x512xf32>
    %c96 = arith.constant 96 : index
    %c0_25 = arith.constant 0 : index
    %67 = vector.load %arg1[%c96, %c0_25] : memref<152x512xf32, #tpu.memory_space<vmem>>, vector<32x512xf32>
    %c147 = arith.constant 147 : index
    %c0_26 = arith.constant 0 : index
    %68 = vector.load %arg1[%c147, %c0_26] : memref<152x512xf32, #tpu.memory_space<vmem>>, vector<1x512xf32>
    %69 = vector.extract_strided_slice %65 {offsets = [0, 0], sizes = [1, 512], strides = [1, 1]} : vector<8x512xf32> to vector<1x512xf32>
    %70 = vector.extract_strided_slice %69 {offsets = [0, 0], sizes = [1, 128], strides = [1, 1]} : vector<1x512xf32> to vector<1x128xf32>
    %cst_27 = arith.constant 5.000000e-01 : f32
    %71 = vector.broadcast %cst_27 : f32 to vector<1x128xf32>
    %72 = arith.mulf %71, %70 : vector<1x128xf32>
    %73 = math.tanh %72 : vector<1x128xf32>
    %cst_28 = arith.constant 1.000000e+00 : f32
    %74 = vector.broadcast %cst_28 : f32 to vector<1x128xf32>
    %75 = arith.addf %73, %74 : vector<1x128xf32>
    %cst_29 = arith.constant 5.000000e-01 : f32
    %76 = vector.broadcast %cst_29 : f32 to vector<1x128xf32>
    %77 = arith.mulf %76, %75 : vector<1x128xf32>
    %78 = vector.extract_strided_slice %69 {offsets = [0, 128], sizes = [1, 128], strides = [1, 1]} : vector<1x512xf32> to vector<1x128xf32>
    %cst_30 = arith.constant 5.000000e-01 : f32
    %79 = vector.broadcast %cst_30 : f32 to vector<1x128xf32>
    %80 = arith.mulf %79, %78 : vector<1x128xf32>
    %81 = math.tanh %80 : vector<1x128xf32>
    %cst_31 = arith.constant 1.000000e+00 : f32
    %82 = vector.broadcast %cst_31 : f32 to vector<1x128xf32>
    %83 = arith.addf %81, %82 : vector<1x128xf32>
    %cst_32 = arith.constant 5.000000e-01 : f32
    %84 = vector.broadcast %cst_32 : f32 to vector<1x128xf32>
    %85 = arith.mulf %84, %83 : vector<1x128xf32>
    %86 = vector.extract_strided_slice %69 {offsets = [0, 256], sizes = [1, 128], strides = [1, 1]} : vector<1x512xf32> to vector<1x128xf32>
    %87 = vector.extract_strided_slice %69 {offsets = [0, 384], sizes = [1, 128], strides = [1, 1]} : vector<1x512xf32> to vector<1x128xf32>
    %88 = arith.mulf %77, %87 : vector<1x128xf32>
    %89 = arith.addf %86, %88 : vector<1x128xf32>
    %90 = math.tanh %89 : vector<1x128xf32>
    %cst_33 = arith.constant 1.000000e+00 : f32
    %91 = vector.broadcast %cst_33 : f32 to vector<1x128xf32>
    %92 = arith.subf %91, %85 : vector<1x128xf32>
    %93 = arith.mulf %92, %90 : vector<1x128xf32>
    %94 = vector.extract_strided_slice %93 {offsets = [0, 0], sizes = [1, 16], strides = [1, 1]} : vector<1x128xf32> to vector<1x16xf32>
    %95 = vector.extract_strided_slice %67 {offsets = [0, 0], sizes = [16, 512], strides = [1, 1]} : vector<32x512xf32> to vector<16x512xf32>
    %cst_34 = arith.constant dense<0.000000e+00> : vector<1x512xf32>
    %96 = tpu.matmul %94, %95, %cst_34 {dimension_numbers = #tpu.dot_dimension_numbers<[1], [0], [0], [1], [0, 0, 1, 1], [], []>} : vector<1x16xf32>, vector<16x512xf32>, vector<1x512xf32> -> vector<1x512xf32>
    %97 = arith.addf %96, %68 : vector<1x512xf32>
    %98 = vector.extract_strided_slice %97 {offsets = [0, 0], sizes = [1, 128], strides = [1, 1]} : vector<1x512xf32> to vector<1x128xf32>
    %cst_35 = arith.constant 5.000000e-01 : f32
    %99 = vector.broadcast %cst_35 : f32 to vector<1x128xf32>
    %100 = arith.mulf %99, %98 : vector<1x128xf32>
    %101 = math.tanh %100 : vector<1x128xf32>
    %cst_36 = arith.constant 1.000000e+00 : f32
    %102 = vector.broadcast %cst_36 : f32 to vector<1x128xf32>
    %103 = arith.addf %101, %102 : vector<1x128xf32>
    %cst_37 = arith.constant 5.000000e-01 : f32
    %104 = vector.broadcast %cst_37 : f32 to vector<1x128xf32>
    %105 = arith.mulf %104, %103 : vector<1x128xf32>
    %106 = vector.extract_strided_slice %97 {offsets = [0, 128], sizes = [1, 128], strides = [1, 1]} : vector<1x512xf32> to vector<1x128xf32>
    %cst_38 = arith.constant 5.000000e-01 : f32
    %107 = vector.broadcast %cst_38 : f32 to vector<1x128xf32>
    %108 = arith.mulf %107, %106 : vector<1x128xf32>
    %109 = math.tanh %108 : vector<1x128xf32>
    %cst_39 = arith.constant 1.000000e+00 : f32
    %110 = vector.broadcast %cst_39 : f32 to vector<1x128xf32>
    %111 = arith.addf %109, %110 : vector<1x128xf32>
    %cst_40 = arith.constant 5.000000e-01 : f32
    %112 = vector.broadcast %cst_40 : f32 to vector<1x128xf32>
    %113 = arith.mulf %112, %111 : vector<1x128xf32>
    %114 = vector.extract_strided_slice %97 {offsets = [0, 256], sizes = [1, 128], strides = [1, 1]} : vector<1x512xf32> to vector<1x128xf32>
    %115 = vector.extract_strided_slice %97 {offsets = [0, 384], sizes = [1, 128], strides = [1, 1]} : vector<1x512xf32> to vector<1x128xf32>
    %116 = arith.mulf %105, %115 : vector<1x128xf32>
    %117 = arith.addf %114, %116 : vector<1x128xf32>
    %118 = math.tanh %117 : vector<1x128xf32>
    %cst_41 = arith.constant 1.000000e+00 : f32
    %119 = vector.broadcast %cst_41 : f32 to vector<1x128xf32>
    %120 = arith.subf %119, %113 : vector<1x128xf32>
    %121 = arith.mulf %120, %118 : vector<1x128xf32>
    %c0_42 = arith.constant 0 : index
    %c0_43 = arith.constant 0 : index
    %122 = vector.load %arg3[%c0_42, %c0_43] : memref<8x128xf32, #tpu.memory_space<vmem>>, vector<1x128xf32>
    tpu.vector_store %arg3[%c0_42, %c0_43], %121 {strides = array<i32>} : memref<8x128xf32, #tpu.memory_space<vmem>>, vector<1x128xf32>,
    %123 = vector.extract_strided_slice %65 {offsets = [1, 0], sizes = [1, 512], strides = [1, 1]} : vector<8x512xf32> to vector<1x512xf32>
    %124 = vector.extract_strided_slice %93 {offsets = [0, 0], sizes = [1, 16], strides = [1, 1]} : vector<1x128xf32> to vector<1x16xf32>
    %cst_44 = arith.constant dense<0.000000e+00> : vector<1x512xf32>
    %125 = tpu.matmul %124, %66, %cst_44 {dimension_numbers = #tpu.dot_dimension_numbers<[1], [0], [0], [1], [0, 0, 1, 1], [], []>} : vector<1x16xf32>, vector<16x512xf32>, vector<1x512xf32> -> vector<1x512xf32>
    %126 = arith.addf %123, %125 : vector<1x512xf32>
    %127 = vector.extract_strided_slice %126 {offsets = [0, 0], sizes = [1, 128], strides = [1, 1]} : vector<1x512xf32> to vector<1x128xf32>
    %cst_45 = arith.constant 5.000000e-01 : f32
    %128 = vector.broadcast %cst_45 : f32 to vector<1x128xf32>
    %129 = arith.mulf %128, %127 : vector<1x128xf32>
    %130 = math.tanh %129 : vector<1x128xf32>
    %cst_46 = arith.constant 1.000000e+00 : f32
    %131 = vector.broadcast %cst_46 : f32 to vector<1x128xf32>
    %132 = arith.addf %130, %131 : vector<1x128xf32>
    %cst_47 = arith.constant 5.000000e-01 : f32
    %133 = vector.broadcast %cst_47 : f32 to vector<1x128xf32>
    %134 = arith.mulf %133, %132 : vector<1x128xf32>
    %135 = vector.extract_strided_slice %126 {offsets = [0, 128], sizes = [1, 128], strides = [1, 1]} : vector<1x512xf32> to vector<1x128xf32>
    %cst_48 = arith.constant 5.000000e-01 : f32
    %136 = vector.broadcast %cst_48 : f32 to vector<1x128xf32>
    %137 = arith.mulf %136, %135 : vector<1x128xf32>
    %138 = math.tanh %137 : vector<1x128xf32>
    %cst_49 = arith.constant 1.000000e+00 : f32
    %139 = vector.broadcast %cst_49 : f32 to vector<1x128xf32>
    %140 = arith.addf %138, %139 : vector<1x128xf32>
    %cst_50 = arith.constant 5.000000e-01 : f32
    %141 = vector.broadcast %cst_50 : f32 to vector<1x128xf32>
    %142 = arith.mulf %141, %140 : vector<1x128xf32>
    %143 = vector.extract_strided_slice %126 {offsets = [0, 256], sizes = [1, 128], strides = [1, 1]} : vector<1x512xf32> to vector<1x128xf32>
    %144 = vector.extract_strided_slice %126 {offsets = [0, 384], sizes = [1, 128], strides = [1, 1]} : vector<1x512xf32> to vector<1x128xf32>
    %145 = arith.mulf %134, %144 : vector<1x128xf32>
    %146 = arith.addf %143, %145 : vector<1x128xf32>
    %147 = math.tanh %146 : vector<1x128xf32>
    %cst_51 = arith.constant 1.000000e+00 : f32
    %148 = vector.broadcast %cst_51 : f32 to vector<1x128xf32>
    %149 = arith.subf %148, %142 : vector<1x128xf32>
    %150 = arith.mulf %149, %147 : vector<1x128xf32>
    %151 = arith.mulf %142, %93 : vector<1x128xf32>
    %152 = arith.addf %150, %151 : vector<1x128xf32>
    %153 = vector.extract_strided_slice %152 {offsets = [0, 0], sizes = [1, 16], strides = [1, 1]} : vector<1x128xf32> to vector<1x16xf32>
    %154 = vector.extract_strided_slice %121 {offsets = [0, 0], sizes = [1, 16], strides = [1, 1]} : vector<1x128xf32> to vector<1x16xf32>
    %155 = tpu.concatenate %153, %154 in 1 : vector<1x16xf32>, vector<1x16xf32> -> vector<1x32xf32>
    %cst_52 = arith.constant dense<0.000000e+00> : vector<1x512xf32>
    %156 = tpu.matmul %155, %67, %cst_52 {dimension_numbers = #tpu.dot_dimension_numbers<[1], [0], [0], [1], [0, 0, 1, 1], [], []>} : vector<1x32xf32>, vector<32x512xf32>, vector<1x512xf32> -> vector<1x512xf32>
    %157 = arith.addf %156, %68 : vector<1x512xf32>
    %158 = vector.extract_strided_slice %157 {offsets = [0, 0], sizes = [1, 128], strides = [1, 1]} : vector<1x512xf32> to vector<1x128xf32>
    %cst_53 = arith.constant 5.000000e-01 : f32
    %159 = vector.broadcast %cst_53 : f32 to vector<1x128xf32>
    %160 = arith.mulf %159, %158 : vector<1x128xf32>
    %161 = math.tanh %160 : vector<1x128xf32>
    %cst_54 = arith.constant 1.000000e+00 : f32
    %162 = vector.broadcast %cst_54 : f32 to vector<1x128xf32>
    %163 = arith.addf %161, %162 : vector<1x128xf32>
    %cst_55 = arith.constant 5.000000e-01 : f32
    %164 = vector.broadcast %cst_55 : f32 to vector<1x128xf32>
    %165 = arith.mulf %164, %163 : vector<1x128xf32>
    %166 = vector.extract_strided_slice %157 {offsets = [0, 128], sizes = [1, 128], strides = [1, 1]} : vector<1x512xf32> to vector<1x128xf32>
    %cst_56 = arith.constant 5.000000e-01 : f32
    %167 = vector.broadcast %cst_56 : f32 to vector<1x128xf32>
    %168 = arith.mulf %167, %166 : vector<1x128xf32>
    %169 = math.tanh %168 : vector<1x128xf32>
    %cst_57 = arith.constant 1.000000e+00 : f32
    %170 = vector.broadcast %cst_57 : f32 to vector<1x128xf32>
    %171 = arith.addf %169, %170 : vector<1x128xf32>
    %cst_58 = arith.constant 5.000000e-01 : f32
    %172 = vector.broadcast %cst_58 : f32 to vector<1x128xf32>
    %173 = arith.mulf %172, %171 : vector<1x128xf32>
    %174 = vector.extract_strided_slice %157 {offsets = [0, 256], sizes = [1, 128], strides = [1, 1]} : vector<1x512xf32> to vector<1x128xf32>
    %175 = vector.extract_strided_slice %157 {offsets = [0, 384], sizes = [1, 128], strides = [1, 1]} : vector<1x512xf32> to vector<1x128xf32>
    %176 = arith.mulf %165, %175 : vector<1x128xf32>
    %177 = arith.addf %174, %176 : vector<1x128xf32>
    %178 = math.tanh %177 : vector<1x128xf32>
    %cst_59 = arith.constant 1.000000e+00 : f32
    %179 = vector.broadcast %cst_59 : f32 to vector<1x128xf32>
    %180 = arith.subf %179, %173 : vector<1x128xf32>
    %181 = arith.mulf %180, %178 : vector<1x128xf32>
    %182 = arith.mulf %173, %121 : vector<1x128xf32>
    %183 = arith.addf %181, %182 : vector<1x128xf32>
    %c1 = arith.constant 1 : index
    %c0_60 = arith.constant 0 : index
    %184 = vector.load %arg3[%c1, %c0_60] : memref<8x128xf32, #tpu.memory_space<vmem>>, vector<1x128xf32>
    tpu.vector_store %arg3[%c1, %c0_60], %183 {strides = array<i32>} : memref<8x128xf32, #tpu.memory_space<vmem>>, vector<1x128xf32>,
    %185 = vector.extract_strided_slice %65 {offsets = [2, 0], sizes = [1, 512], strides = [1, 1]} : vector<8x512xf32> to vector<1x512xf32>
    %186 = vector.extract_strided_slice %152 {offsets = [0, 0], sizes = [1, 16], strides = [1, 1]} : vector<1x128xf32> to vector<1x16xf32>
    %cst_61 = arith.constant dense<0.000000e+00> : vector<1x512xf32>
    %187 = tpu.matmul %186, %66, %cst_61 {dimension_numbers = #tpu.dot_dimension_numbers<[1], [0], [0], [1], [0, 0, 1, 1], [], []>} : vector<1x16xf32>, vector<16x512xf32>, vector<1x512xf32> -> vector<1x512xf32>
    %188 = arith.addf %185, %187 : vector<1x512xf32>
    %189 = vector.extract_strided_slice %188 {offsets = [0, 0], sizes = [1, 128], strides = [1, 1]} : vector<1x512xf32> to vector<1x128xf32>
    %cst_62 = arith.constant 5.000000e-01 : f32
    %190 = vector.broadcast %cst_62 : f32 to vector<1x128xf32>
    %191 = arith.mulf %190, %189 : vector<1x128xf32>
    %192 = math.tanh %191 : vector<1x128xf32>
    %cst_63 = arith.constant 1.000000e+00 : f32
    %193 = vector.broadcast %cst_63 : f32 to vector<1x128xf32>
    %194 = arith.addf %192, %193 : vector<1x128xf32>
    %cst_64 = arith.constant 5.000000e-01 : f32
    %195 = vector.broadcast %cst_64 : f32 to vector<1x128xf32>
    %196 = arith.mulf %195, %194 : vector<1x128xf32>
    %197 = vector.extract_strided_slice %188 {offsets = [0, 128], sizes = [1, 128], strides = [1, 1]} : vector<1x512xf32> to vector<1x128xf32>
    %cst_65 = arith.constant 5.000000e-01 : f32
    %198 = vector.broadcast %cst_65 : f32 to vector<1x128xf32>
    %199 = arith.mulf %198, %197 : vector<1x128xf32>
    %200 = math.tanh %199 : vector<1x128xf32>
    %cst_66 = arith.constant 1.000000e+00 : f32
    %201 = vector.broadcast %cst_66 : f32 to vector<1x128xf32>
    %202 = arith.addf %200, %201 : vector<1x128xf32>
    %cst_67 = arith.constant 5.000000e-01 : f32
    %203 = vector.broadcast %cst_67 : f32 to vector<1x128xf32>
    %204 = arith.mulf %203, %202 : vector<1x128xf32>
    %205 = vector.extract_strided_slice %188 {offsets = [0, 256], sizes = [1, 128], strides = [1, 1]} : vector<1x512xf32> to vector<1x128xf32>
    %206 = vector.extract_strided_slice %188 {offsets = [0, 384], sizes = [1, 128], strides = [1, 1]} : vector<1x512xf32> to vector<1x128xf32>
    %207 = arith.mulf %196, %206 : vector<1x128xf32>
    %208 = arith.addf %205, %207 : vector<1x128xf32>
    %209 = math.tanh %208 : vector<1x128xf32>
    %cst_68 = arith.constant 1.000000e+00 : f32
    %210 = vector.broadcast %cst_68 : f32 to vector<1x128xf32>
    %211 = arith.subf %210, %204 : vector<1x128xf32>
    %212 = arith.mulf %211, %209 : vector<1x128xf32>
    %213 = arith.mulf %204, %152 : vector<1x128xf32>
    %214 = arith.addf %212, %213 : vector<1x128xf32>
    %215 = vector.extract_strided_slice %214 {offsets = [0, 0], sizes = [1, 16], strides = [1, 1]} : vector<1x128xf32> to vector<1x16xf32>
    %216 = vector.extract_strided_slice %183 {offsets = [0, 0], sizes = [1, 16], strides = [1, 1]} : vector<1x128xf32> to vector<1x16xf32>
    %217 = tpu.concatenate %215, %216 in 1 : vector<1x16xf32>, vector<1x16xf32> -> vector<1x32xf32>
    %cst_69 = arith.constant dense<0.000000e+00> : vector<1x512xf32>
    %218 = tpu.matmul %217, %67, %cst_69 {dimension_numbers = #tpu.dot_dimension_numbers<[1], [0], [0], [1], [0, 0, 1, 1], [], []>} : vector<1x32xf32>, vector<32x512xf32>, vector<1x512xf32> -> vector<1x512xf32>
    %219 = arith.addf %218, %68 : vector<1x512xf32>
    %220 = vector.extract_strided_slice %219 {offsets = [0, 0], sizes = [1, 128], strides = [1, 1]} : vector<1x512xf32> to vector<1x128xf32>
    %cst_70 = arith.constant 5.000000e-01 : f32
    %221 = vector.broadcast %cst_70 : f32 to vector<1x128xf32>
    %222 = arith.mulf %221, %220 : vector<1x128xf32>
    %223 = math.tanh %222 : vector<1x128xf32>
    %cst_71 = arith.constant 1.000000e+00 : f32
    %224 = vector.broadcast %cst_71 : f32 to vector<1x128xf32>
    %225 = arith.addf %223, %224 : vector<1x128xf32>
    %cst_72 = arith.constant 5.000000e-01 : f32
    %226 = vector.broadcast %cst_72 : f32 to vector<1x128xf32>
    %227 = arith.mulf %226, %225 : vector<1x128xf32>
    %228 = vector.extract_strided_slice %219 {offsets = [0, 128], sizes = [1, 128], strides = [1, 1]} : vector<1x512xf32> to vector<1x128xf32>
    %cst_73 = arith.constant 5.000000e-01 : f32
    %229 = vector.broadcast %cst_73 : f32 to vector<1x128xf32>
    %230 = arith.mulf %229, %228 : vector<1x128xf32>
    %231 = math.tanh %230 : vector<1x128xf32>
    %cst_74 = arith.constant 1.000000e+00 : f32
    %232 = vector.broadcast %cst_74 : f32 to vector<1x128xf32>
    %233 = arith.addf %231, %232 : vector<1x128xf32>
    %cst_75 = arith.constant 5.000000e-01 : f32
    %234 = vector.broadcast %cst_75 : f32 to vector<1x128xf32>
    %235 = arith.mulf %234, %233 : vector<1x128xf32>
    %236 = vector.extract_strided_slice %219 {offsets = [0, 256], sizes = [1, 128], strides = [1, 1]} : vector<1x512xf32> to vector<1x128xf32>
    %237 = vector.extract_strided_slice %219 {offsets = [0, 384], sizes = [1, 128], strides = [1, 1]} : vector<1x512xf32> to vector<1x128xf32>
    %238 = arith.mulf %227, %237 : vector<1x128xf32>
    %239 = arith.addf %236, %238 : vector<1x128xf32>
    %240 = math.tanh %239 : vector<1x128xf32>
    %cst_76 = arith.constant 1.000000e+00 : f32
    %241 = vector.broadcast %cst_76 : f32 to vector<1x128xf32>
    %242 = arith.subf %241, %235 : vector<1x128xf32>
    %243 = arith.mulf %242, %240 : vector<1x128xf32>
    %244 = arith.mulf %235, %183 : vector<1x128xf32>
    %245 = arith.addf %243, %244 : vector<1x128xf32>
    %c2 = arith.constant 2 : index
    %c0_77 = arith.constant 0 : index
    %246 = vector.load %arg3[%c2, %c0_77] : memref<8x128xf32, #tpu.memory_space<vmem>>, vector<1x128xf32>
    tpu.vector_store %arg3[%c2, %c0_77], %245 {strides = array<i32>} : memref<8x128xf32, #tpu.memory_space<vmem>>, vector<1x128xf32>,
    %247 = vector.extract_strided_slice %65 {offsets = [3, 0], sizes = [1, 512], strides = [1, 1]} : vector<8x512xf32> to vector<1x512xf32>
    %248 = vector.extract_strided_slice %214 {offsets = [0, 0], sizes = [1, 16], strides = [1, 1]} : vector<1x128xf32> to vector<1x16xf32>
    %cst_78 = arith.constant dense<0.000000e+00> : vector<1x512xf32>
    %249 = tpu.matmul %248, %66, %cst_78 {dimension_numbers = #tpu.dot_dimension_numbers<[1], [0], [0], [1], [0, 0, 1, 1], [], []>} : vector<1x16xf32>, vector<16x512xf32>, vector<1x512xf32> -> vector<1x512xf32>
    %250 = arith.addf %247, %249 : vector<1x512xf32>
    %251 = vector.extract_strided_slice %250 {offsets = [0, 0], sizes = [1, 128], strides = [1, 1]} : vector<1x512xf32> to vector<1x128xf32>
    %cst_79 = arith.constant 5.000000e-01 : f32
    %252 = vector.broadcast %cst_79 : f32 to vector<1x128xf32>
    %253 = arith.mulf %252, %251 : vector<1x128xf32>
    %254 = math.tanh %253 : vector<1x128xf32>
    %cst_80 = arith.constant 1.000000e+00 : f32
    %255 = vector.broadcast %cst_80 : f32 to vector<1x128xf32>
    %256 = arith.addf %254, %255 : vector<1x128xf32>
    %cst_81 = arith.constant 5.000000e-01 : f32
    %257 = vector.broadcast %cst_81 : f32 to vector<1x128xf32>
    %258 = arith.mulf %257, %256 : vector<1x128xf32>
    %259 = vector.extract_strided_slice %250 {offsets = [0, 128], sizes = [1, 128], strides = [1, 1]} : vector<1x512xf32> to vector<1x128xf32>
    %cst_82 = arith.constant 5.000000e-01 : f32
    %260 = vector.broadcast %cst_82 : f32 to vector<1x128xf32>
    %261 = arith.mulf %260, %259 : vector<1x128xf32>
    %262 = math.tanh %261 : vector<1x128xf32>
    %cst_83 = arith.constant 1.000000e+00 : f32
    %263 = vector.broadcast %cst_83 : f32 to vector<1x128xf32>
    %264 = arith.addf %262, %263 : vector<1x128xf32>
    %cst_84 = arith.constant 5.000000e-01 : f32
    %265 = vector.broadcast %cst_84 : f32 to vector<1x128xf32>
    %266 = arith.mulf %265, %264 : vector<1x128xf32>
    %267 = vector.extract_strided_slice %250 {offsets = [0, 256], sizes = [1, 128], strides = [1, 1]} : vector<1x512xf32> to vector<1x128xf32>
    %268 = vector.extract_strided_slice %250 {offsets = [0, 384], sizes = [1, 128], strides = [1, 1]} : vector<1x512xf32> to vector<1x128xf32>
    %269 = arith.mulf %258, %268 : vector<1x128xf32>
    %270 = arith.addf %267, %269 : vector<1x128xf32>
    %271 = math.tanh %270 : vector<1x128xf32>
    %cst_85 = arith.constant 1.000000e+00 : f32
    %272 = vector.broadcast %cst_85 : f32 to vector<1x128xf32>
    %273 = arith.subf %272, %266 : vector<1x128xf32>
    %274 = arith.mulf %273, %271 : vector<1x128xf32>
    %275 = arith.mulf %266, %214 : vector<1x128xf32>
    %276 = arith.addf %274, %275 : vector<1x128xf32>
    %277 = vector.extract_strided_slice %276 {offsets = [0, 0], sizes = [1, 16], strides = [1, 1]} : vector<1x128xf32> to vector<1x16xf32>
    %278 = vector.extract_strided_slice %245 {offsets = [0, 0], sizes = [1, 16], strides = [1, 1]} : vector<1x128xf32> to vector<1x16xf32>
    %279 = tpu.concatenate %277, %278 in 1 : vector<1x16xf32>, vector<1x16xf32> -> vector<1x32xf32>
    %cst_86 = arith.constant dense<0.000000e+00> : vector<1x512xf32>
    %280 = tpu.matmul %279, %67, %cst_86 {dimension_numbers = #tpu.dot_dimension_numbers<[1], [0], [0], [1], [0, 0, 1, 1], [], []>} : vector<1x32xf32>, vector<32x512xf32>, vector<1x512xf32> -> vector<1x512xf32>
    %281 = arith.addf %280, %68 : vector<1x512xf32>
    %282 = vector.extract_strided_slice %281 {offsets = [0, 0], sizes = [1, 128], strides = [1, 1]} : vector<1x512xf32> to vector<1x128xf32>
    %cst_87 = arith.constant 5.000000e-01 : f32
    %283 = vector.broadcast %cst_87 : f32 to vector<1x128xf32>
    %284 = arith.mulf %283, %282 : vector<1x128xf32>
    %285 = math.tanh %284 : vector<1x128xf32>
    %cst_88 = arith.constant 1.000000e+00 : f32
    %286 = vector.broadcast %cst_88 : f32 to vector<1x128xf32>
    %287 = arith.addf %285, %286 : vector<1x128xf32>
    %cst_89 = arith.constant 5.000000e-01 : f32
    %288 = vector.broadcast %cst_89 : f32 to vector<1x128xf32>
    %289 = arith.mulf %288, %287 : vector<1x128xf32>
    %290 = vector.extract_strided_slice %281 {offsets = [0, 128], sizes = [1, 128], strides = [1, 1]} : vector<1x512xf32> to vector<1x128xf32>
    %cst_90 = arith.constant 5.000000e-01 : f32
    %291 = vector.broadcast %cst_90 : f32 to vector<1x128xf32>
    %292 = arith.mulf %291, %290 : vector<1x128xf32>
    %293 = math.tanh %292 : vector<1x128xf32>
    %cst_91 = arith.constant 1.000000e+00 : f32
    %294 = vector.broadcast %cst_91 : f32 to vector<1x128xf32>
    %295 = arith.addf %293, %294 : vector<1x128xf32>
    %cst_92 = arith.constant 5.000000e-01 : f32
    %296 = vector.broadcast %cst_92 : f32 to vector<1x128xf32>
    %297 = arith.mulf %296, %295 : vector<1x128xf32>
    %298 = vector.extract_strided_slice %281 {offsets = [0, 256], sizes = [1, 128], strides = [1, 1]} : vector<1x512xf32> to vector<1x128xf32>
    %299 = vector.extract_strided_slice %281 {offsets = [0, 384], sizes = [1, 128], strides = [1, 1]} : vector<1x512xf32> to vector<1x128xf32>
    %300 = arith.mulf %289, %299 : vector<1x128xf32>
    %301 = arith.addf %298, %300 : vector<1x128xf32>
    %302 = math.tanh %301 : vector<1x128xf32>
    %cst_93 = arith.constant 1.000000e+00 : f32
    %303 = vector.broadcast %cst_93 : f32 to vector<1x128xf32>
    %304 = arith.subf %303, %297 : vector<1x128xf32>
    %305 = arith.mulf %304, %302 : vector<1x128xf32>
    %306 = arith.mulf %297, %245 : vector<1x128xf32>
    %307 = arith.addf %305, %306 : vector<1x128xf32>
    %c3 = arith.constant 3 : index
    %c0_94 = arith.constant 0 : index
    %308 = vector.load %arg3[%c3, %c0_94] : memref<8x128xf32, #tpu.memory_space<vmem>>, vector<1x128xf32>
    tpu.vector_store %arg3[%c3, %c0_94], %307 {strides = array<i32>} : memref<8x128xf32, #tpu.memory_space<vmem>>, vector<1x128xf32>,
    %309 = vector.extract_strided_slice %65 {offsets = [4, 0], sizes = [1, 512], strides = [1, 1]} : vector<8x512xf32> to vector<1x512xf32>
    %310 = vector.extract_strided_slice %276 {offsets = [0, 0], sizes = [1, 16], strides = [1, 1]} : vector<1x128xf32> to vector<1x16xf32>
    %cst_95 = arith.constant dense<0.000000e+00> : vector<1x512xf32>
    %311 = tpu.matmul %310, %66, %cst_95 {dimension_numbers = #tpu.dot_dimension_numbers<[1], [0], [0], [1], [0, 0, 1, 1], [], []>} : vector<1x16xf32>, vector<16x512xf32>, vector<1x512xf32> -> vector<1x512xf32>
    %312 = arith.addf %309, %311 : vector<1x512xf32>
    %313 = vector.extract_strided_slice %312 {offsets = [0, 0], sizes = [1, 128], strides = [1, 1]} : vector<1x512xf32> to vector<1x128xf32>
    %cst_96 = arith.constant 5.000000e-01 : f32
    %314 = vector.broadcast %cst_96 : f32 to vector<1x128xf32>
    %315 = arith.mulf %314, %313 : vector<1x128xf32>
    %316 = math.tanh %315 : vector<1x128xf32>
    %cst_97 = arith.constant 1.000000e+00 : f32
    %317 = vector.broadcast %cst_97 : f32 to vector<1x128xf32>
    %318 = arith.addf %316, %317 : vector<1x128xf32>
    %cst_98 = arith.constant 5.000000e-01 : f32
    %319 = vector.broadcast %cst_98 : f32 to vector<1x128xf32>
    %320 = arith.mulf %319, %318 : vector<1x128xf32>
    %321 = vector.extract_strided_slice %312 {offsets = [0, 128], sizes = [1, 128], strides = [1, 1]} : vector<1x512xf32> to vector<1x128xf32>
    %cst_99 = arith.constant 5.000000e-01 : f32
    %322 = vector.broadcast %cst_99 : f32 to vector<1x128xf32>
    %323 = arith.mulf %322, %321 : vector<1x128xf32>
    %324 = math.tanh %323 : vector<1x128xf32>
    %cst_100 = arith.constant 1.000000e+00 : f32
    %325 = vector.broadcast %cst_100 : f32 to vector<1x128xf32>
    %326 = arith.addf %324, %325 : vector<1x128xf32>
    %cst_101 = arith.constant 5.000000e-01 : f32
    %327 = vector.broadcast %cst_101 : f32 to vector<1x128xf32>
    %328 = arith.mulf %327, %326 : vector<1x128xf32>
    %329 = vector.extract_strided_slice %312 {offsets = [0, 256], sizes = [1, 128], strides = [1, 1]} : vector<1x512xf32> to vector<1x128xf32>
    %330 = vector.extract_strided_slice %312 {offsets = [0, 384], sizes = [1, 128], strides = [1, 1]} : vector<1x512xf32> to vector<1x128xf32>
    %331 = arith.mulf %320, %330 : vector<1x128xf32>
    %332 = arith.addf %329, %331 : vector<1x128xf32>
    %333 = math.tanh %332 : vector<1x128xf32>
    %cst_102 = arith.constant 1.000000e+00 : f32
    %334 = vector.broadcast %cst_102 : f32 to vector<1x128xf32>
    %335 = arith.subf %334, %328 : vector<1x128xf32>
    %336 = arith.mulf %335, %333 : vector<1x128xf32>
    %337 = arith.mulf %328, %276 : vector<1x128xf32>
    %338 = arith.addf %336, %337 : vector<1x128xf32>
    %339 = vector.extract_strided_slice %338 {offsets = [0, 0], sizes = [1, 16], strides = [1, 1]} : vector<1x128xf32> to vector<1x16xf32>
    %340 = vector.extract_strided_slice %307 {offsets = [0, 0], sizes = [1, 16], strides = [1, 1]} : vector<1x128xf32> to vector<1x16xf32>
    %341 = tpu.concatenate %339, %340 in 1 : vector<1x16xf32>, vector<1x16xf32> -> vector<1x32xf32>
    %cst_103 = arith.constant dense<0.000000e+00> : vector<1x512xf32>
    %342 = tpu.matmul %341, %67, %cst_103 {dimension_numbers = #tpu.dot_dimension_numbers<[1], [0], [0], [1], [0, 0, 1, 1], [], []>} : vector<1x32xf32>, vector<32x512xf32>, vector<1x512xf32> -> vector<1x512xf32>
    %343 = arith.addf %342, %68 : vector<1x512xf32>
    %344 = vector.extract_strided_slice %343 {offsets = [0, 0], sizes = [1, 128], strides = [1, 1]} : vector<1x512xf32> to vector<1x128xf32>
    %cst_104 = arith.constant 5.000000e-01 : f32
    %345 = vector.broadcast %cst_104 : f32 to vector<1x128xf32>
    %346 = arith.mulf %345, %344 : vector<1x128xf32>
    %347 = math.tanh %346 : vector<1x128xf32>
    %cst_105 = arith.constant 1.000000e+00 : f32
    %348 = vector.broadcast %cst_105 : f32 to vector<1x128xf32>
    %349 = arith.addf %347, %348 : vector<1x128xf32>
    %cst_106 = arith.constant 5.000000e-01 : f32
    %350 = vector.broadcast %cst_106 : f32 to vector<1x128xf32>
    %351 = arith.mulf %350, %349 : vector<1x128xf32>
    %352 = vector.extract_strided_slice %343 {offsets = [0, 128], sizes = [1, 128], strides = [1, 1]} : vector<1x512xf32> to vector<1x128xf32>
    %cst_107 = arith.constant 5.000000e-01 : f32
    %353 = vector.broadcast %cst_107 : f32 to vector<1x128xf32>
    %354 = arith.mulf %353, %352 : vector<1x128xf32>
    %355 = math.tanh %354 : vector<1x128xf32>
    %cst_108 = arith.constant 1.000000e+00 : f32
    %356 = vector.broadcast %cst_108 : f32 to vector<1x128xf32>
    %357 = arith.addf %355, %356 : vector<1x128xf32>
    %cst_109 = arith.constant 5.000000e-01 : f32
    %358 = vector.broadcast %cst_109 : f32 to vector<1x128xf32>
    %359 = arith.mulf %358, %357 : vector<1x128xf32>
    %360 = vector.extract_strided_slice %343 {offsets = [0, 256], sizes = [1, 128], strides = [1, 1]} : vector<1x512xf32> to vector<1x128xf32>
    %361 = vector.extract_strided_slice %343 {offsets = [0, 384], sizes = [1, 128], strides = [1, 1]} : vector<1x512xf32> to vector<1x128xf32>
    %362 = arith.mulf %351, %361 : vector<1x128xf32>
    %363 = arith.addf %360, %362 : vector<1x128xf32>
    %364 = math.tanh %363 : vector<1x128xf32>
    %cst_110 = arith.constant 1.000000e+00 : f32
    %365 = vector.broadcast %cst_110 : f32 to vector<1x128xf32>
    %366 = arith.subf %365, %359 : vector<1x128xf32>
    %367 = arith.mulf %366, %364 : vector<1x128xf32>
    %368 = arith.mulf %359, %307 : vector<1x128xf32>
    %369 = arith.addf %367, %368 : vector<1x128xf32>
    %c4 = arith.constant 4 : index
    %c0_111 = arith.constant 0 : index
    %370 = vector.load %arg3[%c4, %c0_111] : memref<8x128xf32, #tpu.memory_space<vmem>>, vector<1x128xf32>
    tpu.vector_store %arg3[%c4, %c0_111], %369 {strides = array<i32>} : memref<8x128xf32, #tpu.memory_space<vmem>>, vector<1x128xf32>,
    %371 = vector.extract_strided_slice %65 {offsets = [5, 0], sizes = [1, 512], strides = [1, 1]} : vector<8x512xf32> to vector<1x512xf32>
    %372 = vector.extract_strided_slice %338 {offsets = [0, 0], sizes = [1, 16], strides = [1, 1]} : vector<1x128xf32> to vector<1x16xf32>
    %cst_112 = arith.constant dense<0.000000e+00> : vector<1x512xf32>
    %373 = tpu.matmul %372, %66, %cst_112 {dimension_numbers = #tpu.dot_dimension_numbers<[1], [0], [0], [1], [0, 0, 1, 1], [], []>} : vector<1x16xf32>, vector<16x512xf32>, vector<1x512xf32> -> vector<1x512xf32>
    %374 = arith.addf %371, %373 : vector<1x512xf32>
    %375 = vector.extract_strided_slice %374 {offsets = [0, 0], sizes = [1, 128], strides = [1, 1]} : vector<1x512xf32> to vector<1x128xf32>
    %cst_113 = arith.constant 5.000000e-01 : f32
    %376 = vector.broadcast %cst_113 : f32 to vector<1x128xf32>
    %377 = arith.mulf %376, %375 : vector<1x128xf32>
    %378 = math.tanh %377 : vector<1x128xf32>
    %cst_114 = arith.constant 1.000000e+00 : f32
    %379 = vector.broadcast %cst_114 : f32 to vector<1x128xf32>
    %380 = arith.addf %378, %379 : vector<1x128xf32>
    %cst_115 = arith.constant 5.000000e-01 : f32
    %381 = vector.broadcast %cst_115 : f32 to vector<1x128xf32>
    %382 = arith.mulf %381, %380 : vector<1x128xf32>
    %383 = vector.extract_strided_slice %374 {offsets = [0, 128], sizes = [1, 128], strides = [1, 1]} : vector<1x512xf32> to vector<1x128xf32>
    %cst_116 = arith.constant 5.000000e-01 : f32
    %384 = vector.broadcast %cst_116 : f32 to vector<1x128xf32>
    %385 = arith.mulf %384, %383 : vector<1x128xf32>
    %386 = math.tanh %385 : vector<1x128xf32>
    %cst_117 = arith.constant 1.000000e+00 : f32
    %387 = vector.broadcast %cst_117 : f32 to vector<1x128xf32>
    %388 = arith.addf %386, %387 : vector<1x128xf32>
    %cst_118 = arith.constant 5.000000e-01 : f32
    %389 = vector.broadcast %cst_118 : f32 to vector<1x128xf32>
    %390 = arith.mulf %389, %388 : vector<1x128xf32>
    %391 = vector.extract_strided_slice %374 {offsets = [0, 256], sizes = [1, 128], strides = [1, 1]} : vector<1x512xf32> to vector<1x128xf32>
    %392 = vector.extract_strided_slice %374 {offsets = [0, 384], sizes = [1, 128], strides = [1, 1]} : vector<1x512xf32> to vector<1x128xf32>
    %393 = arith.mulf %382, %392 : vector<1x128xf32>
    %394 = arith.addf %391, %393 : vector<1x128xf32>
    %395 = math.tanh %394 : vector<1x128xf32>
    %cst_119 = arith.constant 1.000000e+00 : f32
    %396 = vector.broadcast %cst_119 : f32 to vector<1x128xf32>
    %397 = arith.subf %396, %390 : vector<1x128xf32>
    %398 = arith.mulf %397, %395 : vector<1x128xf32>
    %399 = arith.mulf %390, %338 : vector<1x128xf32>
    %400 = arith.addf %398, %399 : vector<1x128xf32>
    %401 = vector.extract_strided_slice %400 {offsets = [0, 0], sizes = [1, 16], strides = [1, 1]} : vector<1x128xf32> to vector<1x16xf32>
    %402 = vector.extract_strided_slice %369 {offsets = [0, 0], sizes = [1, 16], strides = [1, 1]} : vector<1x128xf32> to vector<1x16xf32>
    %403 = tpu.concatenate %401, %402 in 1 : vector<1x16xf32>, vector<1x16xf32> -> vector<1x32xf32>
    %cst_120 = arith.constant dense<0.000000e+00> : vector<1x512xf32>
    %404 = tpu.matmul %403, %67, %cst_120 {dimension_numbers = #tpu.dot_dimension_numbers<[1], [0], [0], [1], [0, 0, 1, 1], [], []>} : vector<1x32xf32>, vector<32x512xf32>, vector<1x512xf32> -> vector<1x512xf32>
    %405 = arith.addf %404, %68 : vector<1x512xf32>
    %406 = vector.extract_strided_slice %405 {offsets = [0, 0], sizes = [1, 128], strides = [1, 1]} : vector<1x512xf32> to vector<1x128xf32>
    %cst_121 = arith.constant 5.000000e-01 : f32
    %407 = vector.broadcast %cst_121 : f32 to vector<1x128xf32>
    %408 = arith.mulf %407, %406 : vector<1x128xf32>
    %409 = math.tanh %408 : vector<1x128xf32>
    %cst_122 = arith.constant 1.000000e+00 : f32
    %410 = vector.broadcast %cst_122 : f32 to vector<1x128xf32>
    %411 = arith.addf %409, %410 : vector<1x128xf32>
    %cst_123 = arith.constant 5.000000e-01 : f32
    %412 = vector.broadcast %cst_123 : f32 to vector<1x128xf32>
    %413 = arith.mulf %412, %411 : vector<1x128xf32>
    %414 = vector.extract_strided_slice %405 {offsets = [0, 128], sizes = [1, 128], strides = [1, 1]} : vector<1x512xf32> to vector<1x128xf32>
    %cst_124 = arith.constant 5.000000e-01 : f32
    %415 = vector.broadcast %cst_124 : f32 to vector<1x128xf32>
    %416 = arith.mulf %415, %414 : vector<1x128xf32>
    %417 = math.tanh %416 : vector<1x128xf32>
    %cst_125 = arith.constant 1.000000e+00 : f32
    %418 = vector.broadcast %cst_125 : f32 to vector<1x128xf32>
    %419 = arith.addf %417, %418 : vector<1x128xf32>
    %cst_126 = arith.constant 5.000000e-01 : f32
    %420 = vector.broadcast %cst_126 : f32 to vector<1x128xf32>
    %421 = arith.mulf %420, %419 : vector<1x128xf32>
    %422 = vector.extract_strided_slice %405 {offsets = [0, 256], sizes = [1, 128], strides = [1, 1]} : vector<1x512xf32> to vector<1x128xf32>
    %423 = vector.extract_strided_slice %405 {offsets = [0, 384], sizes = [1, 128], strides = [1, 1]} : vector<1x512xf32> to vector<1x128xf32>
    %424 = arith.mulf %413, %423 : vector<1x128xf32>
    %425 = arith.addf %422, %424 : vector<1x128xf32>
    %426 = math.tanh %425 : vector<1x128xf32>
    %cst_127 = arith.constant 1.000000e+00 : f32
    %427 = vector.broadcast %cst_127 : f32 to vector<1x128xf32>
    %428 = arith.subf %427, %421 : vector<1x128xf32>
    %429 = arith.mulf %428, %426 : vector<1x128xf32>
    %430 = arith.mulf %421, %369 : vector<1x128xf32>
    %431 = arith.addf %429, %430 : vector<1x128xf32>
    %c5 = arith.constant 5 : index
    %c0_128 = arith.constant 0 : index
    %432 = vector.load %arg3[%c5, %c0_128] : memref<8x128xf32, #tpu.memory_space<vmem>>, vector<1x128xf32>
    tpu.vector_store %arg3[%c5, %c0_128], %431 {strides = array<i32>} : memref<8x128xf32, #tpu.memory_space<vmem>>, vector<1x128xf32>,
    %433 = vector.extract_strided_slice %65 {offsets = [6, 0], sizes = [1, 512], strides = [1, 1]} : vector<8x512xf32> to vector<1x512xf32>
    %434 = vector.extract_strided_slice %400 {offsets = [0, 0], sizes = [1, 16], strides = [1, 1]} : vector<1x128xf32> to vector<1x16xf32>
    %cst_129 = arith.constant dense<0.000000e+00> : vector<1x512xf32>
    %435 = tpu.matmul %434, %66, %cst_129 {dimension_numbers = #tpu.dot_dimension_numbers<[1], [0], [0], [1], [0, 0, 1, 1], [], []>} : vector<1x16xf32>, vector<16x512xf32>, vector<1x512xf32> -> vector<1x512xf32>
    %436 = arith.addf %433, %435 : vector<1x512xf32>
    %437 = vector.extract_strided_slice %436 {offsets = [0, 0], sizes = [1, 128], strides = [1, 1]} : vector<1x512xf32> to vector<1x128xf32>
    %cst_130 = arith.constant 5.000000e-01 : f32
    %438 = vector.broadcast %cst_130 : f32 to vector<1x128xf32>
    %439 = arith.mulf %438, %437 : vector<1x128xf32>
    %440 = math.tanh %439 : vector<1x128xf32>
    %cst_131 = arith.constant 1.000000e+00 : f32
    %441 = vector.broadcast %cst_131 : f32 to vector<1x128xf32>
    %442 = arith.addf %440, %441 : vector<1x128xf32>
    %cst_132 = arith.constant 5.000000e-01 : f32
    %443 = vector.broadcast %cst_132 : f32 to vector<1x128xf32>
    %444 = arith.mulf %443, %442 : vector<1x128xf32>
    %445 = vector.extract_strided_slice %436 {offsets = [0, 128], sizes = [1, 128], strides = [1, 1]} : vector<1x512xf32> to vector<1x128xf32>
    %cst_133 = arith.constant 5.000000e-01 : f32
    %446 = vector.broadcast %cst_133 : f32 to vector<1x128xf32>
    %447 = arith.mulf %446, %445 : vector<1x128xf32>
    %448 = math.tanh %447 : vector<1x128xf32>
    %cst_134 = arith.constant 1.000000e+00 : f32
    %449 = vector.broadcast %cst_134 : f32 to vector<1x128xf32>
    %450 = arith.addf %448, %449 : vector<1x128xf32>
    %cst_135 = arith.constant 5.000000e-01 : f32
    %451 = vector.broadcast %cst_135 : f32 to vector<1x128xf32>
    %452 = arith.mulf %451, %450 : vector<1x128xf32>
    %453 = vector.extract_strided_slice %436 {offsets = [0, 256], sizes = [1, 128], strides = [1, 1]} : vector<1x512xf32> to vector<1x128xf32>
    %454 = vector.extract_strided_slice %436 {offsets = [0, 384], sizes = [1, 128], strides = [1, 1]} : vector<1x512xf32> to vector<1x128xf32>
    %455 = arith.mulf %444, %454 : vector<1x128xf32>
    %456 = arith.addf %453, %455 : vector<1x128xf32>
    %457 = math.tanh %456 : vector<1x128xf32>
    %cst_136 = arith.constant 1.000000e+00 : f32
    %458 = vector.broadcast %cst_136 : f32 to vector<1x128xf32>
    %459 = arith.subf %458, %452 : vector<1x128xf32>
    %460 = arith.mulf %459, %457 : vector<1x128xf32>
    %461 = arith.mulf %452, %400 : vector<1x128xf32>
    %462 = arith.addf %460, %461 : vector<1x128xf32>
    %463 = vector.extract_strided_slice %462 {offsets = [0, 0], sizes = [1, 16], strides = [1, 1]} : vector<1x128xf32> to vector<1x16xf32>
    %464 = vector.extract_strided_slice %431 {offsets = [0, 0], sizes = [1, 16], strides = [1, 1]} : vector<1x128xf32> to vector<1x16xf32>
    %465 = tpu.concatenate %463, %464 in 1 : vector<1x16xf32>, vector<1x16xf32> -> vector<1x32xf32>
    %cst_137 = arith.constant dense<0.000000e+00> : vector<1x512xf32>
    %466 = tpu.matmul %465, %67, %cst_137 {dimension_numbers = #tpu.dot_dimension_numbers<[1], [0], [0], [1], [0, 0, 1, 1], [], []>} : vector<1x32xf32>, vector<32x512xf32>, vector<1x512xf32> -> vector<1x512xf32>
    %467 = arith.addf %466, %68 : vector<1x512xf32>
    %468 = vector.extract_strided_slice %467 {offsets = [0, 0], sizes = [1, 128], strides = [1, 1]} : vector<1x512xf32> to vector<1x128xf32>
    %cst_138 = arith.constant 5.000000e-01 : f32
    %469 = vector.broadcast %cst_138 : f32 to vector<1x128xf32>
    %470 = arith.mulf %469, %468 : vector<1x128xf32>
    %471 = math.tanh %470 : vector<1x128xf32>
    %cst_139 = arith.constant 1.000000e+00 : f32
    %472 = vector.broadcast %cst_139 : f32 to vector<1x128xf32>
    %473 = arith.addf %471, %472 : vector<1x128xf32>
    %cst_140 = arith.constant 5.000000e-01 : f32
    %474 = vector.broadcast %cst_140 : f32 to vector<1x128xf32>
    %475 = arith.mulf %474, %473 : vector<1x128xf32>
    %476 = vector.extract_strided_slice %467 {offsets = [0, 128], sizes = [1, 128], strides = [1, 1]} : vector<1x512xf32> to vector<1x128xf32>
    %cst_141 = arith.constant 5.000000e-01 : f32
    %477 = vector.broadcast %cst_141 : f32 to vector<1x128xf32>
    %478 = arith.mulf %477, %476 : vector<1x128xf32>
    %479 = math.tanh %478 : vector<1x128xf32>
    %cst_142 = arith.constant 1.000000e+00 : f32
    %480 = vector.broadcast %cst_142 : f32 to vector<1x128xf32>
    %481 = arith.addf %479, %480 : vector<1x128xf32>
    %cst_143 = arith.constant 5.000000e-01 : f32
    %482 = vector.broadcast %cst_143 : f32 to vector<1x128xf32>
    %483 = arith.mulf %482, %481 : vector<1x128xf32>
    %484 = vector.extract_strided_slice %467 {offsets = [0, 256], sizes = [1, 128], strides = [1, 1]} : vector<1x512xf32> to vector<1x128xf32>
    %485 = vector.extract_strided_slice %467 {offsets = [0, 384], sizes = [1, 128], strides = [1, 1]} : vector<1x512xf32> to vector<1x128xf32>
    %486 = arith.mulf %475, %485 : vector<1x128xf32>
    %487 = arith.addf %484, %486 : vector<1x128xf32>
    %488 = math.tanh %487 : vector<1x128xf32>
    %cst_144 = arith.constant 1.000000e+00 : f32
    %489 = vector.broadcast %cst_144 : f32 to vector<1x128xf32>
    %490 = arith.subf %489, %483 : vector<1x128xf32>
    %491 = arith.mulf %490, %488 : vector<1x128xf32>
    %492 = arith.mulf %483, %431 : vector<1x128xf32>
    %493 = arith.addf %491, %492 : vector<1x128xf32>
    %c6 = arith.constant 6 : index
    %c0_145 = arith.constant 0 : index
    %494 = vector.load %arg3[%c6, %c0_145] : memref<8x128xf32, #tpu.memory_space<vmem>>, vector<1x128xf32>
    tpu.vector_store %arg3[%c6, %c0_145], %493 {strides = array<i32>} : memref<8x128xf32, #tpu.memory_space<vmem>>, vector<1x128xf32>,
    %495 = vector.extract_strided_slice %65 {offsets = [7, 0], sizes = [1, 512], strides = [1, 1]} : vector<8x512xf32> to vector<1x512xf32>
    %496 = vector.extract_strided_slice %462 {offsets = [0, 0], sizes = [1, 16], strides = [1, 1]} : vector<1x128xf32> to vector<1x16xf32>
    %cst_146 = arith.constant dense<0.000000e+00> : vector<1x512xf32>
    %497 = tpu.matmul %496, %66, %cst_146 {dimension_numbers = #tpu.dot_dimension_numbers<[1], [0], [0], [1], [0, 0, 1, 1], [], []>} : vector<1x16xf32>, vector<16x512xf32>, vector<1x512xf32> -> vector<1x512xf32>
    %498 = arith.addf %495, %497 : vector<1x512xf32>
    %499 = vector.extract_strided_slice %498 {offsets = [0, 0], sizes = [1, 128], strides = [1, 1]} : vector<1x512xf32> to vector<1x128xf32>
    %cst_147 = arith.constant 5.000000e-01 : f32
    %500 = vector.broadcast %cst_147 : f32 to vector<1x128xf32>
    %501 = arith.mulf %500, %499 : vector<1x128xf32>
    %502 = math.tanh %501 : vector<1x128xf32>
    %cst_148 = arith.constant 1.000000e+00 : f32
    %503 = vector.broadcast %cst_148 : f32 to vector<1x128xf32>
    %504 = arith.addf %502, %503 : vector<1x128xf32>
    %cst_149 = arith.constant 5.000000e-01 : f32
    %505 = vector.broadcast %cst_149 : f32 to vector<1x128xf32>
    %506 = arith.mulf %505, %504 : vector<1x128xf32>
    %507 = vector.extract_strided_slice %498 {offsets = [0, 128], sizes = [1, 128], strides = [1, 1]} : vector<1x512xf32> to vector<1x128xf32>
    %cst_150 = arith.constant 5.000000e-01 : f32
    %508 = vector.broadcast %cst_150 : f32 to vector<1x128xf32>
    %509 = arith.mulf %508, %507 : vector<1x128xf32>
    %510 = math.tanh %509 : vector<1x128xf32>
    %cst_151 = arith.constant 1.000000e+00 : f32
    %511 = vector.broadcast %cst_151 : f32 to vector<1x128xf32>
    %512 = arith.addf %510, %511 : vector<1x128xf32>
    %cst_152 = arith.constant 5.000000e-01 : f32
    %513 = vector.broadcast %cst_152 : f32 to vector<1x128xf32>
    %514 = arith.mulf %513, %512 : vector<1x128xf32>
    %515 = vector.extract_strided_slice %498 {offsets = [0, 256], sizes = [1, 128], strides = [1, 1]} : vector<1x512xf32> to vector<1x128xf32>
    %516 = vector.extract_strided_slice %498 {offsets = [0, 384], sizes = [1, 128], strides = [1, 1]} : vector<1x512xf32> to vector<1x128xf32>
    %517 = arith.mulf %506, %516 : vector<1x128xf32>
    %518 = arith.addf %515, %517 : vector<1x128xf32>
    %519 = math.tanh %518 : vector<1x128xf32>
    %cst_153 = arith.constant 1.000000e+00 : f32
    %520 = vector.broadcast %cst_153 : f32 to vector<1x128xf32>
    %521 = arith.subf %520, %514 : vector<1x128xf32>
    %522 = arith.mulf %521, %519 : vector<1x128xf32>
    %523 = arith.mulf %514, %462 : vector<1x128xf32>
    %524 = arith.addf %522, %523 : vector<1x128xf32>
    %525 = vector.extract_strided_slice %524 {offsets = [0, 0], sizes = [1, 16], strides = [1, 1]} : vector<1x128xf32> to vector<1x16xf32>
    %526 = vector.extract_strided_slice %493 {offsets = [0, 0], sizes = [1, 16], strides = [1, 1]} : vector<1x128xf32> to vector<1x16xf32>
    %527 = tpu.concatenate %525, %526 in 1 : vector<1x16xf32>, vector<1x16xf32> -> vector<1x32xf32>
    %cst_154 = arith.constant dense<0.000000e+00> : vector<1x512xf32>
    %528 = tpu.matmul %527, %67, %cst_154 {dimension_numbers = #tpu.dot_dimension_numbers<[1], [0], [0], [1], [0, 0, 1, 1], [], []>} : vector<1x32xf32>, vector<32x512xf32>, vector<1x512xf32> -> vector<1x512xf32>
    %529 = arith.addf %528, %68 : vector<1x512xf32>
    %530 = vector.extract_strided_slice %529 {offsets = [0, 0], sizes = [1, 128], strides = [1, 1]} : vector<1x512xf32> to vector<1x128xf32>
    %cst_155 = arith.constant 5.000000e-01 : f32
    %531 = vector.broadcast %cst_155 : f32 to vector<1x128xf32>
    %532 = arith.mulf %531, %530 : vector<1x128xf32>
    %533 = math.tanh %532 : vector<1x128xf32>
    %cst_156 = arith.constant 1.000000e+00 : f32
    %534 = vector.broadcast %cst_156 : f32 to vector<1x128xf32>
    %535 = arith.addf %533, %534 : vector<1x128xf32>
    %cst_157 = arith.constant 5.000000e-01 : f32
    %536 = vector.broadcast %cst_157 : f32 to vector<1x128xf32>
    %537 = arith.mulf %536, %535 : vector<1x128xf32>
    %538 = vector.extract_strided_slice %529 {offsets = [0, 128], sizes = [1, 128], strides = [1, 1]} : vector<1x512xf32> to vector<1x128xf32>
    %cst_158 = arith.constant 5.000000e-01 : f32
    %539 = vector.broadcast %cst_158 : f32 to vector<1x128xf32>
    %540 = arith.mulf %539, %538 : vector<1x128xf32>
    %541 = math.tanh %540 : vector<1x128xf32>
    %cst_159 = arith.constant 1.000000e+00 : f32
    %542 = vector.broadcast %cst_159 : f32 to vector<1x128xf32>
    %543 = arith.addf %541, %542 : vector<1x128xf32>
    %cst_160 = arith.constant 5.000000e-01 : f32
    %544 = vector.broadcast %cst_160 : f32 to vector<1x128xf32>
    %545 = arith.mulf %544, %543 : vector<1x128xf32>
    %546 = vector.extract_strided_slice %529 {offsets = [0, 256], sizes = [1, 128], strides = [1, 1]} : vector<1x512xf32> to vector<1x128xf32>
    %547 = vector.extract_strided_slice %529 {offsets = [0, 384], sizes = [1, 128], strides = [1, 1]} : vector<1x512xf32> to vector<1x128xf32>
    %548 = arith.mulf %537, %547 : vector<1x128xf32>
    %549 = arith.addf %546, %548 : vector<1x128xf32>
    %550 = math.tanh %549 : vector<1x128xf32>
    %cst_161 = arith.constant 1.000000e+00 : f32
    %551 = vector.broadcast %cst_161 : f32 to vector<1x128xf32>
    %552 = arith.subf %551, %545 : vector<1x128xf32>
    %553 = arith.mulf %552, %550 : vector<1x128xf32>
    %554 = arith.mulf %545, %493 : vector<1x128xf32>
    %555 = arith.addf %553, %554 : vector<1x128xf32>
    %c7 = arith.constant 7 : index
    %c0_162 = arith.constant 0 : index
    %556 = vector.load %arg3[%c7, %c0_162] : memref<8x128xf32, #tpu.memory_space<vmem>>, vector<1x128xf32>
    tpu.vector_store %arg3[%c7, %c0_162], %555 {strides = array<i32>} : memref<8x128xf32, #tpu.memory_space<vmem>>, vector<1x128xf32>,
    %c0_163 = arith.constant 0 : index
    %c0_164 = arith.constant 0 : index
    %557 = vector.load %arg3[%c0_163, %c0_164] : memref<8x128xf32, #tpu.memory_space<vmem>>, vector<8x128xf32>
    %558 = vector.extract_strided_slice %557 {offsets = [0, 0], sizes = [8, 16], strides = [1, 1]} : vector<8x128xf32> to vector<8x16xf32>
    %c128 = arith.constant 128 : index
    %c0_165 = arith.constant 0 : index
    %559 = vector.load %arg1[%c128, %c0_165] : memref<152x512xf32, #tpu.memory_space<vmem>>, vector<16x512xf32>
    %cst_166 = arith.constant dense<0.000000e+00> : vector<8x512xf32>
    %560 = tpu.matmul %558, %559, %cst_166 {dimension_numbers = #tpu.dot_dimension_numbers<[1], [0], [0], [1], [0, 0, 1, 1], [], []>} : vector<8x16xf32>, vector<16x512xf32>, vector<8x512xf32> -> vector<8x512xf32>
    %c148 = arith.constant 148 : index
    %c0_167 = arith.constant 0 : index
    %561 = vector.load %arg1[%c148, %c0_167] : memref<152x512xf32, #tpu.memory_space<vmem>>, vector<1x512xf32>
    %562 = vector.broadcast %561 : vector<1x512xf32> to vector<8x512xf32>
    %563 = arith.addf %560, %562 : vector<8x512xf32>
    %564 = vector.extract_strided_slice %563 {offsets = [0, 0], sizes = [8, 16], strides = [1, 1]} : vector<8x512xf32> to vector<8x16xf32>
    %c0_168 = arith.constant 0 : index
    %c0_169 = arith.constant 0 : index
    %565 = vector.load %arg2[%c0_168, %c0_169] : memref<8x16xf32, #tpu.memory_space<vmem>>, vector<8x16xf32>
    tpu.vector_store %arg2[%c0_168, %c0_169], %564 {strides = array<i32>} : memref<8x16xf32, #tpu.memory_space<vmem>>, vector<8x16xf32>,
    return
  }
}

</mosaic_0001>

<llo_original>
// kernel: gru_autoencoder.1
$region0: #{gru_autoencoder.1}
  #allocation0 [shape = 'u32[]', space=smem, size = 0x4, offset = 0x4, fixed_abs, tag = 'smem constant byte address 0x4 - core index']
  #allocation1 [shape = 'u32[144,128]{1,0:T(1,128)}', space=vmem, size = 0x12000, scoped, tag = 'internal scratch']
  #allocation2 [shape = 'f32[8,128]{1,0:T(8,128)}', space=vmem, size = 0x1000, scoped, tag = 'scratch operand']
  %s0 = inlined_call_operand.hbm [shape: f32[8,16], index: 0, kind: input, shape index: {}]
  %s1 = inlined_call_operand.hbm [shape: f32[152,512], index: 1, kind: input, shape index: {}]
  %s2 = inlined_call_operand.hbm [shape: f32[8,16], index: 2, kind: output, shape index: {}]
  %s3 = sld [smem:[#allocation0]]
  $region26: #{gru_autoencoder.1} parent=0
    _
  %s5 = ssub.s32 1, %s3
  %s6 = scalar_select 0, %s5, %s3
  $region1: #{gru_autoencoder.1} parent=0
    #allocation3 [shape = 'u8[4096]{0}', space=vmem, size = 0x1000, scoped, tag = 'input window, operand 0, single buffered']
    #allocation4 [shape = 's32[1]{0}', space=sflag, size = 0x4, scoped, tag = 'scoped memory for gru_autoencoder.1']
    #allocation5 [shape = 's32[1]{0}', space=sflag, size = 0x4, scoped, tag = 'scoped memory for gru_autoencoder.1']
    #allocation6 [shape = 'u8[311296]{0}', space=vmem, size = 0x4c000, scoped, tag = 'input window, operand 1, single buffered']
    #allocation7 [shape = 's32[1]{0}', space=sflag, size = 0x4, scoped, tag = 'scoped memory for gru_autoencoder.1']
    #allocation8 [shape = 'u8[4096]{0}', space=vmem, size = 0x1000, scoped, tag = 'output window, operand 0, single buffered']
    %7 = vsyncpa [#allocation4], 0
    %8 = vsyncpa [#allocation7], 0
    %9 = vsyncpa [#allocation5], 0
    // Predicated region
    $region2: #{gru_autoencoder.1} parent=1 // pred_check
      _
    $region3: #{gru_autoencoder.1} parent=1 // pred_check_branch
      %11 = sbr.rel (0) target = $region5
    $region4: #{gru_autoencoder.1} parent=1 // pred_region
      %s13 = ssub.s32 128, 128
      %14 = vsyncadd [#allocation4], %s13
      %s16 = sshll.u32 [#allocation3], 4
      %s17 = int_to_ptr.vmem [resolvable:$true] %s16
      %19 = dma.hbm_to_vmem [thread:$0]  %s0, 128, %s17, [#allocation4]
    $region5: #{gru_autoencoder.1} parent=1 // pred_fallthru
      _
    // Predicated region
    $region6: #{gru_autoencoder.1} parent=1 // pred_check
      _
    $region7: #{gru_autoencoder.1} parent=1 // pred_check_branch
      %21 = sbr.rel (0) target = $region9
    $region8: #{gru_autoencoder.1} parent=1 // pred_region
      %s23 = ssub.s32 9728, 9728
      %24 = vsyncadd [#allocation7], %s23
      %s25 = sshll.u32 [#allocation6], 4
      %s26 = int_to_ptr.vmem [resolvable:$true] %s25
      %31 = dma.hbm_to_vmem [thread:$0]  %s1, 9728, %s26, [#allocation7], 512, 512, 32
    $region9: #{gru_autoencoder.1} parent=1 // pred_fallthru
      _
    // Predicated region
    $region10: #{gru_autoencoder.1} parent=1 // pred_check
      _
    $region11: #{gru_autoencoder.1} parent=1 // pred_check_branch
      %33 = sbr.rel (0) target = $region13
    $region12: #{gru_autoencoder.1} parent=1 // pred_region
      %34 = dma.done [#allocation4], 128
    $region13: #{gru_autoencoder.1} parent=1 // pred_fallthru
      _
    // Predicated region
    $region14: #{gru_autoencoder.1} parent=1 // pred_check
      _
    $region15: #{gru_autoencoder.1} parent=1 // pred_check_branch
      %36 = sbr.rel (0) target = $region17
    $region16: #{gru_autoencoder.1} parent=1 // pred_region
      %37 = dma.done [#allocation7], 9728
    $region17: #{gru_autoencoder.1} parent=1 // pred_fallthru
      _
    %v38 = vld [vmem:[#allocation3] sm:$0xff]
    %v39 = vld [vmem:[#allocation6] sm:$0xff]
    %v40 = vld [vmem:[#allocation6 + $0x8] sm:$0xff]
    %v41 = vld [vmem:[#allocation6 + $0x10] sm:$0xff]
    %v42 = vld [vmem:[#allocation6 + $0x18] sm:$0xff]
    %v43 = vld [vmem:[#allocation6 + $0x20] sm:$0xff]
    %v44 = vld [vmem:[#allocation6 + $0x28] sm:$0xff]
    %v45 = vld [vmem:[#allocation6 + $0x30] sm:$0xff]
    %v46 = vld [vmem:[#allocation6 + $0x38] sm:$0xff]
    %s47 = scalar_lea.vmem [#allocation6], 576
    %v48 = vld [vmem:[%s47] ss:$8 sm:$0xf]
    %v50 = vlaneseq
    %v51 = vshrl.u32 %v50, 7
    %v52 = vsub.s32 0, %v51
    %v53 = vrot.slane %v48, %v52
    %v54 = vlaneseq
    %v55 = vshrl.u32 %v54, 7
    %v56 = vsub.s32 1, %v55
    %v57 = vrot.slane %v48, %v56
    %v58 = vlaneseq
    %v59 = vshrl.u32 %v58, 7
    %v60 = vsub.s32 2, %v59
    %v61 = vrot.slane %v48, %v60
    %v62 = vlaneseq
    %v63 = vshrl.u32 %v62, 7
    %v64 = vsub.s32 3, %v63
    %v65 = vrot.slane %v48, %v64
    %vm70 = vcmask 130048
    %v72 = vsel %vm70, %v38, 0
    %74 = vmatprep.subr.mxu0 0.0
    %75 = vmatpush1.msra.mxu0 0.0
    %76 = vmatprep.subr.mxu0 0.0
    %77 = vmatpush1.msra.mxu0 0.0
    %78 = vmatprep.subr.mxu0 0.0
    %79 = vmatpush1.msra.mxu0 0.0
    %80 = vmatprep.subr.mxu0 0.0
    %81 = vmatpush1.msra.mxu0 0.0
    %82 = vmatprep.subr.mxu0 0.0
    %83 = vmatpush1.msra.mxu0 0.0
    %84 = vmatprep.subr.mxu0 0.0
    %85 = vmatpush1.msra.mxu0 0.0
    %86 = vmatprep.subr.mxu0 0.0
    %87 = vmatpush1.msra.mxu0 0.0
    %88 = vmatprep.subr.mxu0 0.0
    %89 = vmatpush1.msra.mxu0 0.0
    %90 = vmatprep.subr.mxu0 0.0
    %91 = vmatpush1.msra.mxu0 0.0
    %92 = vmatprep.subr.mxu0 0.0
    %93 = vmatpush1.msra.mxu0 0.0
    %94 = vmatprep.subr.mxu0 0.0
    %95 = vmatpush1.msra.mxu0 0.0
    %96 = vmatprep.subr.mxu0 0.0
    %97 = vmatpush1.msra.mxu0 0.0
    %98 = vmatprep.subr.mxu0 0.0
    %99 = vmatpush1.msra.mxu0 0.0
    %100 = vmatprep.subr.mxu0 0.0
    %101 = vmatpush1.msra.mxu0 0.0
    %102 = vmatprep.subr.mxu0 %v44
    %103 = vmatpush1.msra.mxu0 %v43
    %104 = vmatprep.subr.mxu0 %v40
    %105 = vmatpush1.msra.mxu0 %v39
    %106 = vmatprep.subr.mxu0 0.0
    %107 = vmatpush2.msra.mxu0 0.0
    %108 = vmatprep.subr.mxu0 0.0
    %109 = vmatpush2.msra.mxu0 0.0
    %110 = vmatprep.subr.mxu0 0.0
    %111 = vmatpush2.msra.mxu0 0.0
    %112 = vmatprep.subr.mxu0 0.0
    %113 = vmatpush2.msra.mxu0 0.0
    %114 = vmatprep.subr.mxu0 0.0
    %115 = vmatpush2.msra.mxu0 0.0
    %116 = vmatprep.subr.mxu0 0.0
    %117 = vmatpush2.msra.mxu0 0.0
    %118 = vmatprep.subr.mxu0 0.0
    %119 = vmatpush2.msra.mxu0 0.0
    %120 = vmatprep.subr.mxu0 0.0
    %121 = vmatpush2.msra.mxu0 0.0
    %122 = vmatprep.subr.mxu0 0.0
    %123 = vmatpush2.msra.mxu0 0.0
    %124 = vmatprep.subr.mxu0 0.0
    %125 = vmatpush2.msra.mxu0 0.0
    %126 = vmatprep.subr.mxu0 0.0
    %127 = vmatpush2.msra.mxu0 0.0
    %128 = vmatprep.subr.mxu0 0.0
    %129 = vmatpush2.msra.mxu0 0.0
    %130 = vmatprep.subr.mxu0 0.0
    %131 = vmatpush2.msra.mxu0 0.0
    %132 = vmatprep.subr.mxu0 0.0
    %133 = vmatpush2.msra.mxu0 0.0
    %134 = vmatprep.subr.mxu0 0.0
    %135 = vmatpush2.msra.mxu0 0.0
    %136 = vmatprep.subr.mxu0 0.0
    %137 = vmatpush2.msra.mxu0 0.0
    %138 = vmatprep.mubr.f32.mxu0 0.0
    %139 = vmatmul.mubr.f32.gmra.mxu0 %v72
    %v140 = vpop.f32.mrf.mxu0
    %v141 = vadd.f32 %v53, %v140
    %v142 = vpop.f32.mrf.mxu0
    %v143 = vadd.f32 %v57, %v142
    %144 = vdwg.mxu0
    %145 = vmatprep.subr.mxu0 0.0
    %146 = vmatpush1.msra.mxu0 0.0
    %147 = vmatprep.subr.mxu0 0.0
    %148 = vmatpush1.msra.mxu0 0.0
    %149 = vmatprep.subr.mxu0 0.0
    %150 = vmatpush1.msra.mxu0 0.0
    %151 = vmatprep.subr.mxu0 0.0
    %152 = vmatpush1.msra.mxu0 0.0
    %153 = vmatprep.subr.mxu0 0.0
    %154 = vmatpush1.msra.mxu0 0.0
    %155 = vmatprep.subr.mxu0 0.0
    %156 = vmatpush1.msra.mxu0 0.0
    %157 = vmatprep.subr.mxu0 0.0
    %158 = vmatpush1.msra.mxu0 0.0
    %159 = vmatprep.subr.mxu0 0.0
    %160 = vmatpush1.msra.mxu0 0.0
    %161 = vmatprep.subr.mxu0 0.0
    %162 = vmatpush1.msra.mxu0 0.0
    %163 = vmatprep.subr.mxu0 0.0
    %164 = vmatpush1.msra.mxu0 0.0
    %165 = vmatprep.subr.mxu0 0.0
    %166 = vmatpush1.msra.mxu0 0.0
    %167 = vmatprep.subr.mxu0 0.0
    %168 = vmatpush1.msra.mxu0 0.0
    %169 = vmatprep.subr.mxu0 0.0
    %170 = vmatpush1.msra.mxu0 0.0
    %171 = vmatprep.subr.mxu0 0.0
    %172 = vmatpush1.msra.mxu0 0.0
    %173 = vmatprep.subr.mxu0 %v46
    %174 = vmatpush1.msra.mxu0 %v45
    %175 = vmatprep.subr.mxu0 %v42
    %176 = vmatpush1.msra.mxu0 %v41
    %177 = vmatprep.subr.mxu0 0.0
    %178 = vmatpush2.msra.mxu0 0.0
    %179 = vmatprep.subr.mxu0 0.0
    %180 = vmatpush2.msra.mxu0 0.0
    %181 = vmatprep.subr.mxu0 0.0
    %182 = vmatpush2.msra.mxu0 0.0
    %183 = vmatprep.subr.mxu0 0.0
    %184 = vmatpush2.msra.mxu0 0.0
    %185 = vmatprep.subr.mxu0 0.0
    %186 = vmatpush2.msra.mxu0 0.0
    %187 = vmatprep.subr.mxu0 0.0
    %188 = vmatpush2.msra.mxu0 0.0
    %189 = vmatprep.subr.mxu0 0.0
    %190 = vmatpush2.msra.mxu0 0.0
    %191 = vmatprep.subr.mxu0 0.0
    %192 = vmatpush2.msra.mxu0 0.0
    %193 = vmatprep.subr.mxu0 0.0
    %194 = vmatpush2.msra.mxu0 0.0
    %195 = vmatprep.subr.mxu0 0.0
    %196 = vmatpush2.msra.mxu0 0.0
    %197 = vmatprep.subr.mxu0 0.0
    %198 = vmatpush2.msra.mxu0 0.0
    %199 = vmatprep.subr.mxu0 0.0
    %200 = vmatpush2.msra.mxu0 0.0
    %201 = vmatprep.subr.mxu0 0.0
    %202 = vmatpush2.msra.mxu0 0.0
    %203 = vmatprep.subr.mxu0 0.0
    %204 = vmatpush2.msra.mxu0 0.0
    %205 = vmatprep.subr.mxu0 0.0
    %206 = vmatpush2.msra.mxu0 0.0
    %207 = vmatprep.subr.mxu0 0.0
    %208 = vmatpush2.msra.mxu0 0.0
    %209 = vmatprep.mubr.f32.mxu0 0.0
    %210 = vmatmul.mubr.f32.gmra.mxu0 %v72
    %v211 = vpop.f32.mrf.mxu0
    %v212 = vadd.f32 %v61, %v211
    %v213 = vpop.f32.mrf.mxu0
    %v214 = vadd.f32 %v65, %v213
    %215 = vdwg.mxu0
    %v216 = vmul.f32 %v141, 0.5
    %v217 = vtanh.pop %v216
    %v218 = vadd.f32 %v217, 1.0
    %v219 = vmul.f32 %v218, 0.5
    %v220 = vmul.f32 %v143, 0.5
    %v221 = vtanh.pop %v220
    %v222 = vadd.f32 %v221, 1.0
    %v223 = vmul.f32 %v222, 0.5
    %v224 = vmul.f32 %v219, %v214
    %v225 = vadd.f32 %v212, %v224
    %v226 = vtanh.pop %v225
    %v227 = vsub.f32 1.0, %v223
    %v228 = vmul.f32 %v227, %v226
    %v229 = vld [vmem:[#allocation6 + $0x40] sm:$0xff]
    %v230 = vld [vmem:[#allocation6 + $0x48] sm:$0xff]
    %v231 = vld [vmem:[#allocation6 + $0x50] sm:$0xff]
    %v232 = vld [vmem:[#allocation6 + $0x58] sm:$0xff]
    %v233 = vld [vmem:[#allocation6 + $0x60] sm:$0xff]
    %v234 = vld [vmem:[#allocation6 + $0x68] sm:$0xff]
    %v235 = vld [vmem:[#allocation6 + $0x70] sm:$0xff]
    %v236 = vld [vmem:[#allocation6 + $0x78] sm:$0xff]
    %v237 = vld [vmem:[#allocation6 + $0x80] sm:$0xff]
    %v238 = vld [vmem:[#allocation6 + $0x88] sm:$0xff]
    %v239 = vld [vmem:[#allocation6 + $0x90] sm:$0xff]
    %v240 = vld [vmem:[#allocation6 + $0x98] sm:$0xff]
    %v241 = vld [vmem:[#allocation6 + $0xa0] sm:$0xff]
    %v242 = vld [vmem:[#allocation6 + $0xa8] sm:$0xff]
    %v243 = vld [vmem:[#allocation6 + $0xb0] sm:$0xff]
    %v244 = vld [vmem:[#allocation6 + $0xb8] sm:$0xff]
    %s245 = scalar_lea.vmem [#allocation6], 577
    %v246 = vld [vmem:[%s245] ss:$8 sm:$0xf]
    %v248 = vlaneseq
    %v249 = vshrl.u32 %v248, 7
    %v250 = vsub.s32 0, %v249
    %v251 = vrot.slane %v246, %v250
    %v252 = vlaneseq
    %v253 = vshrl.u32 %v252, 7
    %v254 = vsub.s32 1, %v253
    %v255 = vrot.slane %v246, %v254
    %v256 = vlaneseq
    %v257 = vshrl.u32 %v256, 7
    %v258 = vsub.s32 2, %v257
    %v259 = vrot.slane %v246, %v258
    %v260 = vlaneseq
    %v261 = vshrl.u32 %v260, 7
    %v262 = vsub.s32 3, %v261
    %v263 = vrot.slane %v246, %v262
    %vm268 = vcmask 261120
    %v270 = vsel %vm268, %v228, 0
    %272 = vmatprep.subr.mxu0 0.0
    %273 = vmatpush1.msra.mxu0 0.0
    %274 = vmatprep.subr.mxu0 0.0
    %275 = vmatpush1.msra.mxu0 0.0
    %276 = vmatprep.subr.mxu0 0.0
    %277 = vmatpush1.msra.mxu0 0.0
    %278 = vmatprep.subr.mxu0 0.0
    %279 = vmatpush1.msra.mxu0 0.0
    %280 = vmatprep.subr.mxu0 0.0
    %281 = vmatpush1.msra.mxu0 0.0
    %282 = vmatprep.subr.mxu0 0.0
    %283 = vmatpush1.msra.mxu0 0.0
    %284 = vmatprep.subr.mxu0 0.0
    %285 = vmatpush1.msra.mxu0 0.0
    %286 = vmatprep.subr.mxu0 0.0
    %287 = vmatpush1.msra.mxu0 0.0
    %288 = vmatprep.subr.mxu0 0.0
    %289 = vmatpush1.msra.mxu0 0.0
    %290 = vmatprep.subr.mxu0 0.0
    %291 = vmatpush1.msra.mxu0 0.0
    %292 = vmatprep.subr.mxu0 0.0
    %293 = vmatpush1.msra.mxu0 0.0
    %294 = vmatprep.subr.mxu0 0.0
    %295 = vmatpush1.msra.mxu0 0.0
    %296 = vmatprep.subr.mxu0 %v242
    %297 = vmatpush1.msra.mxu0 %v241
    %298 = vmatprep.subr.mxu0 %v238
    %299 = vmatpush1.msra.mxu0 %v237
    %300 = vmatprep.subr.mxu0 %v234
    %301 = vmatpush1.msra.mxu0 %v233
    %302 = vmatprep.subr.mxu0 %v230
    %303 = vmatpush1.msra.mxu0 %v229
    %304 = vmatprep.subr.mxu0 0.0
    %305 = vmatpush2.msra.mxu0 0.0
    %306 = vmatprep.subr.mxu0 0.0
    %307 = vmatpush2.msra.mxu0 0.0
    %308 = vmatprep.subr.mxu0 0.0
    %309 = vmatpush2.msra.mxu0 0.0
    %310 = vmatprep.subr.mxu0 0.0
    %311 = vmatpush2.msra.mxu0 0.0
    %312 = vmatprep.subr.mxu0 0.0
    %313 = vmatpush2.msra.mxu0 0.0
    %314 = vmatprep.subr.mxu0 0.0
    %315 = vmatpush2.msra.mxu0 0.0
    %316 = vmatprep.subr.mxu0 0.0
    %317 = vmatpush2.msra.mxu0 0.0
    %318 = vmatprep.subr.mxu0 0.0
    %319 = vmatpush2.msra.mxu0 0.0
    %320 = vmatprep.subr.mxu0 0.0
    %321 = vmatpush2.msra.mxu0 0.0
    %322 = vmatprep.subr.mxu0 0.0
    %323 = vmatpush2.msra.mxu0 0.0
    %324 = vmatprep.subr.mxu0 0.0
    %325 = vmatpush2.msra.mxu0 0.0
    %326 = vmatprep.subr.mxu0 0.0
    %327 = vmatpush2.msra.mxu0 0.0
    %328 = vmatprep.subr.mxu0 0.0
    %329 = vmatpush2.msra.mxu0 0.0
    %330 = vmatprep.subr.mxu0 0.0
    %331 = vmatpush2.msra.mxu0 0.0
    %332 = vmatprep.subr.mxu0 0.0
    %333 = vmatpush2.msra.mxu0 0.0
    %334 = vmatprep.subr.mxu0 0.0
    %335 = vmatpush2.msra.mxu0 0.0
    %336 = vmatprep.mubr.f32.mxu0 0.0
    %337 = vmatmul.mubr.f32.gmra.mxu0 %v270
    %v338 = vpop.f32.mrf.mxu0
    %v339 = vadd.f32 %v251, %v338
    %v340 = vpop.f32.mrf.mxu0
    %v341 = vadd.f32 %v255, %v340
    %342 = vdwg.mxu0
    %343 = vmatprep.subr.mxu0 0.0
    %344 = vmatpush1.msra.mxu0 0.0
    %345 = vmatprep.subr.mxu0 0.0
    %346 = vmatpush1.msra.mxu0 0.0
    %347 = vmatprep.subr.mxu0 0.0
    %348 = vmatpush1.msra.mxu0 0.0
    %349 = vmatprep.subr.mxu0 0.0
    %350 = vmatpush1.msra.mxu0 0.0
    %351 = vmatprep.subr.mxu0 0.0
    %352 = vmatpush1.msra.mxu0 0.0
    %353 = vmatprep.subr.mxu0 0.0
    %354 = vmatpush1.msra.mxu0 0.0
    %355 = vmatprep.subr.mxu0 0.0
    %356 = vmatpush1.msra.mxu0 0.0
    %357 = vmatprep.subr.mxu0 0.0
    %358 = vmatpush1.msra.mxu0 0.0
    %359 = vmatprep.subr.mxu0 0.0
    %360 = vmatpush1.msra.mxu0 0.0
    %361 = vmatprep.subr.mxu0 0.0
    %362 = vmatpush1.msra.mxu0 0.0
    %363 = vmatprep.subr.mxu0 0.0
    %364 = vmatpush1.msra.mxu0 0.0
    %365 = vmatprep.subr.mxu0 0.0
    %366 = vmatpush1.msra.mxu0 0.0
    %367 = vmatprep.subr.mxu0 %v244
    %368 = vmatpush1.msra.mxu0 %v243
    %369 = vmatprep.subr.mxu0 %v240
    %370 = vmatpush1.msra.mxu0 %v239
    %371 = vmatprep.subr.mxu0 %v236
    %372 = vmatpush1.msra.mxu0 %v235
    %373 = vmatprep.subr.mxu0 %v232
    %374 = vmatpush1.msra.mxu0 %v231
    %375 = vmatprep.subr.mxu0 0.0
    %376 = vmatpush2.msra.mxu0 0.0
    %377 = vmatprep.subr.mxu0 0.0
    %378 = vmatpush2.msra.mxu0 0.0
    %379 = vmatprep.subr.mxu0 0.0
    %380 = vmatpush2.msra.mxu0 0.0
    %381 = vmatprep.subr.mxu0 0.0
    %382 = vmatpush2.msra.mxu0 0.0
    %383 = vmatprep.subr.mxu0 0.0
    %384 = vmatpush2.msra.mxu0 0.0
    %385 = vmatprep.subr.mxu0 0.0
    %386 = vmatpush2.msra.mxu0 0.0
    %387 = vmatprep.subr.mxu0 0.0
    %388 = vmatpush2.msra.mxu0 0.0
    %389 = vmatprep.subr.mxu0 0.0
    %390 = vmatpush2.msra.mxu0 0.0
    %391 = vmatprep.subr.mxu0 0.0
    %392 = vmatpush2.msra.mxu0 0.0
    %393 = vmatprep.subr.mxu0 0.0
    %394 = vmatpush2.msra.mxu0 0.0
    %395 = vmatprep.subr.mxu0 0.0
    %396 = vmatpush2.msra.mxu0 0.0
    %397 = vmatprep.subr.mxu0 0.0
    %398 = vmatpush2.msra.mxu0 0.0
    %399 = vmatprep.subr.mxu0 0.0
    %400 = vmatpush2.msra.mxu0 0.0
    %401 = vmatprep.subr.mxu0 0.0
    %402 = vmatpush2.msra.mxu0 0.0
    %403 = vmatprep.subr.mxu0 0.0
    %404 = vmatpush2.msra.mxu0 0.0
    %405 = vmatprep.subr.mxu0 0.0
    %406 = vmatpush2.msra.mxu0 0.0
    %407 = vmatprep.mubr.f32.mxu0 0.0
    %408 = vmatmul.mubr.f32.gmra.mxu0 %v270
    %v409 = vpop.f32.mrf.mxu0
    %v410 = vadd.f32 %v259, %v409
    %v411 = vpop.f32.mrf.mxu0
    %v412 = vadd.f32 %v263, %v411
    %413 = vdwg.mxu0
    %v414 = vmul.f32 %v339, 0.5
    %v415 = vtanh.pop %v414
    %v416 = vadd.f32 %v415, 1.0
    %v417 = vmul.f32 %v416, 0.5
    %v418 = vmul.f32 %v341, 0.5
    %v419 = vtanh.pop %v418
    %v420 = vadd.f32 %v419, 1.0
    %v421 = vmul.f32 %v420, 0.5
    %v422 = vmul.f32 %v417, %v412
    %v423 = vadd.f32 %v410, %v422
    %v424 = vtanh.pop %v423
    %v425 = vsub.f32 1.0, %v421
    %v426 = vmul.f32 %v425, %v424
    %v427 = vld [vmem:[#allocation6 + $0xc0] sm:$0xff]
    %v428 = vld [vmem:[#allocation6 + $0xc8] sm:$0xff]
    %v429 = vld [vmem:[#allocation6 + $0xd0] sm:$0xff]
    %v430 = vld [vmem:[#allocation6 + $0xd8] sm:$0xff]
    %v431 = vld [vmem:[#allocation6 + $0xe0] sm:$0xff]
    %v432 = vld [vmem:[#allocation6 + $0xe8] sm:$0xff]
    %v433 = vld [vmem:[#allocation6 + $0xf0] sm:$0xff]
    %v434 = vld [vmem:[#allocation6 + $0xf8] sm:$0xff]
    %v435 = vld [vmem:[#allocation6 + $0x100] sm:$0xff]
    %v436 = vld [vmem:[#allocation6 + $0x108] sm:$0xff]
    %v437 = vld [vmem:[#allocation6 + $0x110] sm:$0xff]
    %v438 = vld [vmem:[#allocation6 + $0x118] sm:$0xff]
    %v439 = vld [vmem:[#allocation6 + $0x120] sm:$0xff]
    %v440 = vld [vmem:[#allocation6 + $0x128] sm:$0xff]
    %v441 = vld [vmem:[#allocation6 + $0x130] sm:$0xff]
    %v442 = vld [vmem:[#allocation6 + $0x138] sm:$0xff]
    %s443 = scalar_lea.vmem [#allocation6], 578
    %v444 = vld [vmem:[%s443] ss:$8 sm:$0xf]
    %v446 = vlaneseq
    %v447 = vshrl.u32 %v446, 7
    %v448 = vsub.s32 0, %v447
    %v449 = vrot.slane %v444, %v448
    %v450 = vlaneseq
    %v451 = vshrl.u32 %v450, 7
    %v452 = vsub.s32 1, %v451
    %v453 = vrot.slane %v444, %v452
    %v454 = vlaneseq
    %v455 = vshrl.u32 %v454, 7
    %v456 = vsub.s32 2, %v455
    %v457 = vrot.slane %v444, %v456
    %v458 = vlaneseq
    %v459 = vshrl.u32 %v458, 7
    %v460 = vsub.s32 3, %v459
    %v461 = vrot.slane %v444, %v460
    %v467 = vsel %vm268, %v426, 0
    %469 = vmatprep.subr.mxu0 0.0
    %470 = vmatpush1.msra.mxu0 0.0
    %471 = vmatprep.subr.mxu0 0.0
    %472 = vmatpush1.msra.mxu0 0.0
    %473 = vmatprep.subr.mxu0 0.0
    %474 = vmatpush1.msra.mxu0 0.0
    %475 = vmatprep.subr.mxu0 0.0
    %476 = vmatpush1.msra.mxu0 0.0
    %477 = vmatprep.subr.mxu0 0.0
    %478 = vmatpush1.msra.mxu0 0.0
    %479 = vmatprep.subr.mxu0 0.0
    %480 = vmatpush1.msra.mxu0 0.0
    %481 = vmatprep.subr.mxu0 0.0
    %482 = vmatpush1.msra.mxu0 0.0
    %483 = vmatprep.subr.mxu0 0.0
    %484 = vmatpush1.msra.mxu0 0.0
    %485 = vmatprep.subr.mxu0 0.0
    %486 = vmatpush1.msra.mxu0 0.0
    %487 = vmatprep.subr.mxu0 0.0
    %488 = vmatpush1.msra.mxu0 0.0
    %489 = vmatprep.subr.mxu0 0.0
    %490 = vmatpush1.msra.mxu0 0.0
    %491 = vmatprep.subr.mxu0 0.0
    %492 = vmatpush1.msra.mxu0 0.0
    %493 = vmatprep.subr.mxu0 %v440
    %494 = vmatpush1.msra.mxu0 %v439
    %495 = vmatprep.subr.mxu0 %v436
    %496 = vmatpush1.msra.mxu0 %v435
    %497 = vmatprep.subr.mxu0 %v432
    %498 = vmatpush1.msra.mxu0 %v431
    %499 = vmatprep.subr.mxu0 %v428
    %500 = vmatpush1.msra.mxu0 %v427
    %501 = vmatprep.subr.mxu0 0.0
    %502 = vmatpush2.msra.mxu0 0.0
    %503 = vmatprep.subr.mxu0 0.0
    %504 = vmatpush2.msra.mxu0 0.0
    %505 = vmatprep.subr.mxu0 0.0
    %506 = vmatpush2.msra.mxu0 0.0
    %507 = vmatprep.subr.mxu0 0.0
    %508 = vmatpush2.msra.mxu0 0.0
    %509 = vmatprep.subr.mxu0 0.0
    %510 = vmatpush2.msra.mxu0 0.0
    %511 = vmatprep.subr.mxu0 0.0
    %512 = vmatpush2.msra.mxu0 0.0
    %513 = vmatprep.subr.mxu0 0.0
    %514 = vmatpush2.msra.mxu0 0.0
    %515 = vmatprep.subr.mxu0 0.0
    %516 = vmatpush2.msra.mxu0 0.0
    %517 = vmatprep.subr.mxu0 0.0
    %518 = vmatpush2.msra.mxu0 0.0
    %519 = vmatprep.subr.mxu0 0.0
    %520 = vmatpush2.msra.mxu0 0.0
    %521 = vmatprep.subr.mxu0 0.0
    %522 = vmatpush2.msra.mxu0 0.0
    %523 = vmatprep.subr.mxu0 0.0
    %524 = vmatpush2.msra.mxu0 0.0
    %525 = vmatprep.subr.mxu0 0.0
    %526 = vmatpush2.msra.mxu0 0.0
    %527 = vmatprep.subr.mxu0 0.0
    %528 = vmatpush2.msra.mxu0 0.0
    %529 = vmatprep.subr.mxu0 0.0
    %530 = vmatpush2.msra.mxu0 0.0
    %531 = vmatprep.subr.mxu0 0.0
    %532 = vmatpush2.msra.mxu0 0.0
    %533 = vmatprep.mubr.f32.mxu0 0.0
    %534 = vmatmul.mubr.f32.gmra.mxu0 %v467
    %v535 = vpop.f32.mrf.mxu0
    %v536 = vadd.f32 %v449, %v535
    %v537 = vpop.f32.mrf.mxu0
    %v538 = vadd.f32 %v453, %v537
    %539 = vdwg.mxu0
    %540 = vmatprep.subr.mxu0 0.0
    %541 = vmatpush1.msra.mxu0 0.0
    %542 = vmatprep.subr.mxu0 0.0
    %543 = vmatpush1.msra.mxu0 0.0
    %544 = vmatprep.subr.mxu0 0.0
    %545 = vmatpush1.msra.mxu0 0.0
    %546 = vmatprep.subr.mxu0 0.0
    %547 = vmatpush1.msra.mxu0 0.0
    %548 = vmatprep.subr.mxu0 0.0
    %549 = vmatpush1.msra.mxu0 0.0
    %550 = vmatprep.subr.mxu0 0.0
    %551 = vmatpush1.msra.mxu0 0.0
    %552 = vmatprep.subr.mxu0 0.0
    %553 = vmatpush1.msra.mxu0 0.0
    %554 = vmatprep.subr.mxu0 0.0
    %555 = vmatpush1.msra.mxu0 0.0
    %556 = vmatprep.subr.mxu0 0.0
    %557 = vmatpush1.msra.mxu0 0.0
    %558 = vmatprep.subr.mxu0 0.0
    %559 = vmatpush1.msra.mxu0 0.0
    %560 = vmatprep.subr.mxu0 0.0
    %561 = vmatpush1.msra.mxu0 0.0
    %562 = vmatprep.subr.mxu0 0.0
    %563 = vmatpush1.msra.mxu0 0.0
    %564 = vmatprep.subr.mxu0 %v442
    %565 = vmatpush1.msra.mxu0 %v441
    %566 = vmatprep.subr.mxu0 %v438
    %567 = vmatpush1.msra.mxu0 %v437
    %568 = vmatprep.subr.mxu0 %v434
    %569 = vmatpush1.msra.mxu0 %v433
    %570 = vmatprep.subr.mxu0 %v430
    %571 = vmatpush1.msra.mxu0 %v429
    %572 = vmatprep.subr.mxu0 0.0
    %573 = vmatpush2.msra.mxu0 0.0
    %574 = vmatprep.subr.mxu0 0.0
    %575 = vmatpush2.msra.mxu0 0.0
    %576 = vmatprep.subr.mxu0 0.0
    %577 = vmatpush2.msra.mxu0 0.0
    %578 = vmatprep.subr.mxu0 0.0
    %579 = vmatpush2.msra.mxu0 0.0
    %580 = vmatprep.subr.mxu0 0.0
    %581 = vmatpush2.msra.mxu0 0.0
    %582 = vmatprep.subr.mxu0 0.0
    %583 = vmatpush2.msra.mxu0 0.0
    %584 = vmatprep.subr.mxu0 0.0
    %585 = vmatpush2.msra.mxu0 0.0
    %586 = vmatprep.subr.mxu0 0.0
    %587 = vmatpush2.msra.mxu0 0.0
    %588 = vmatprep.subr.mxu0 0.0
    %589 = vmatpush2.msra.mxu0 0.0
    %590 = vmatprep.subr.mxu0 0.0
    %591 = vmatpush2.msra.mxu0 0.0
    %592 = vmatprep.subr.mxu0 0.0
    %593 = vmatpush2.msra.mxu0 0.0
    %594 = vmatprep.subr.mxu0 0.0
    %595 = vmatpush2.msra.mxu0 0.0
    %596 = vmatprep.subr.mxu0 0.0
    %597 = vmatpush2.msra.mxu0 0.0
    %598 = vmatprep.subr.mxu0 0.0
    %599 = vmatpush2.msra.mxu0 0.0
    %600 = vmatprep.subr.mxu0 0.0
    %601 = vmatpush2.msra.mxu0 0.0
    %602 = vmatprep.subr.mxu0 0.0
    %603 = vmatpush2.msra.mxu0 0.0
    %604 = vmatprep.mubr.f32.mxu0 0.0
    %605 = vmatmul.mubr.f32.gmra.mxu0 %v467
    %v606 = vpop.f32.mrf.mxu0
    %v607 = vadd.f32 %v457, %v606
    %v608 = vpop.f32.mrf.mxu0
    %v609 = vadd.f32 %v461, %v608
    %610 = vdwg.mxu0
    %v611 = vld [vmem:[#allocation6 + $0x140] sm:$0xff]
    %v612 = vld [vmem:[#allocation6 + $0x148] sm:$0xff]
    %v613 = vld [vmem:[#allocation6 + $0x150] sm:$0xff]
    %v614 = vld [vmem:[#allocation6 + $0x158] sm:$0xff]
    %v615 = vld [vmem:[#allocation6 + $0x160] sm:$0xff]
    %v616 = vld [vmem:[#allocation6 + $0x168] sm:$0xff]
    %v617 = vld [vmem:[#allocation6 + $0x170] sm:$0xff]
    %v618 = vld [vmem:[#allocation6 + $0x178] sm:$0xff]
    %v619 = vld [vmem:[#allocation6 + $0x180] sm:$0xff]
    %v620 = vld [vmem:[#allocation6 + $0x188] sm:$0xff]
    %v621 = vld [vmem:[#allocation6 + $0x190] sm:$0xff]
    %v622 = vld [vmem:[#allocation6 + $0x198] sm:$0xff]
    %v623 = vld [vmem:[#allocation6 + $0x1a0] sm:$0xff]
    %v624 = vld [vmem:[#allocation6 + $0x1a8] sm:$0xff]
    %v625 = vld [vmem:[#allocation6 + $0x1b0] sm:$0xff]
    %v626 = vld [vmem:[#allocation6 + $0x1b8] sm:$0xff]
    %v627 = vld [vmem:[#allocation6 + $0x1c0] sm:$0xff]
    %v628 = vld [vmem:[#allocation6 + $0x1c8] sm:$0xff]
    %v629 = vld [vmem:[#allocation6 + $0x1d0] sm:$0xff]
    %v630 = vld [vmem:[#allocation6 + $0x1d8] sm:$0xff]
    %v631 = vld [vmem:[#allocation6 + $0x1e0] sm:$0xff]
    %v632 = vld [vmem:[#allocation6 + $0x1e8] sm:$0xff]
    %v633 = vld [vmem:[#allocation6 + $0x1f0] sm:$0xff]
    %v634 = vld [vmem:[#allocation6 + $0x1f8] sm:$0xff]
    %s635 = scalar_lea.vmem [#allocation6], 579
    %v636 = vld [vmem:[%s635] ss:$8 sm:$0xf]
    %v637 = vmul.f32 %v536, 0.5
    %v638 = vtanh.pop %v637
    %v639 = vadd.f32 %v638, 1.0
    %v640 = vmul.f32 %v639, 0.5
    %v641 = vmul.f32 %v538, 0.5
    %v642 = vtanh.pop %v641
    %v643 = vadd.f32 %v642, 1.0
    %v644 = vmul.f32 %v643, 0.5
    %v645 = vmul.f32 %v640, %v609
    %v646 = vadd.f32 %v607, %v645
    %v647 = vtanh.pop %v646
    %v648 = vsub.f32 1.0, %v644
    %v649 = vmul.f32 %v648, %v647
    %v651 = vlaneseq
    %v652 = vshrl.u32 %v651, 7
    %v653 = vsub.s32 0, %v652
    %v654 = vrot.slane %v636, %v653
    %v655 = vlaneseq
    %v656 = vshrl.u32 %v655, 7
    %v657 = vsub.s32 1, %v656
    %v658 = vrot.slane %v636, %v657
    %v659 = vlaneseq
    %v660 = vshrl.u32 %v659, 7
    %v661 = vsub.s32 2, %v660
    %v662 = vrot.slane %v636, %v661
    %v663 = vlaneseq
    %v664 = vshrl.u32 %v663, 7
    %v665 = vsub.s32 3, %v664
    %v666 = vrot.slane %v636, %v665
    %v672 = vsel %vm70, %v649, 0
    %674 = vmatprep.subr.mxu0 0.0
    %675 = vmatpush1.msra.mxu0 0.0
    %676 = vmatprep.subr.mxu0 0.0
    %677 = vmatpush1.msra.mxu0 0.0
    %678 = vmatprep.subr.mxu0 0.0
    %679 = vmatpush1.msra.mxu0 0.0
    %680 = vmatprep.subr.mxu0 0.0
    %681 = vmatpush1.msra.mxu0 0.0
    %682 = vmatprep.subr.mxu0 0.0
    %683 = vmatpush1.msra.mxu0 0.0
    %684 = vmatprep.subr.mxu0 0.0
    %685 = vmatpush1.msra.mxu0 0.0
    %686 = vmatprep.subr.mxu0 0.0
    %687 = vmatpush1.msra.mxu0 0.0
    %688 = vmatprep.subr.mxu0 0.0
    %689 = vmatpush1.msra.mxu0 0.0
    %690 = vmatprep.subr.mxu0 0.0
    %691 = vmatpush1.msra.mxu0 0.0
    %692 = vmatprep.subr.mxu0 0.0
    %693 = vmatpush1.msra.mxu0 0.0
    %694 = vmatprep.subr.mxu0 0.0
    %695 = vmatpush1.msra.mxu0 0.0
    %696 = vmatprep.subr.mxu0 0.0
    %697 = vmatpush1.msra.mxu0 0.0
    %698 = vmatprep.subr.mxu0 0.0
    %699 = vmatpush1.msra.mxu0 0.0
    %700 = vmatprep.subr.mxu0 0.0
    %701 = vmatpush1.msra.mxu0 0.0
    %702 = vmatprep.subr.mxu0 %v624
    %703 = vmatpush1.msra.mxu0 %v623
    %704 = vmatprep.subr.mxu0 %v620
    %705 = vmatpush1.msra.mxu0 %v619
    %706 = vmatprep.subr.mxu0 0.0
    %707 = vmatpush2.msra.mxu0 0.0
    %708 = vmatprep.subr.mxu0 0.0
    %709 = vmatpush2.msra.mxu0 0.0
    %710 = vmatprep.subr.mxu0 0.0
    %711 = vmatpush2.msra.mxu0 0.0
    %712 = vmatprep.subr.mxu0 0.0
    %713 = vmatpush2.msra.mxu0 0.0
    %714 = vmatprep.subr.mxu0 0.0
    %715 = vmatpush2.msra.mxu0 0.0
    %716 = vmatprep.subr.mxu0 0.0
    %717 = vmatpush2.msra.mxu0 0.0
    %718 = vmatprep.subr.mxu0 0.0
    %719 = vmatpush2.msra.mxu0 0.0
    %720 = vmatprep.subr.mxu0 0.0
    %721 = vmatpush2.msra.mxu0 0.0
    %722 = vmatprep.subr.mxu0 0.0
    %723 = vmatpush2.msra.mxu0 0.0
    %724 = vmatprep.subr.mxu0 0.0
    %725 = vmatpush2.msra.mxu0 0.0
    %726 = vmatprep.subr.mxu0 0.0
    %727 = vmatpush2.msra.mxu0 0.0
    %728 = vmatprep.subr.mxu0 0.0
    %729 = vmatpush2.msra.mxu0 0.0
    %730 = vmatprep.subr.mxu0 0.0
    %731 = vmatpush2.msra.mxu0 0.0
    %732 = vmatprep.subr.mxu0 0.0
    %733 = vmatpush2.msra.mxu0 0.0
    %734 = vmatprep.subr.mxu0 0.0
    %735 = vmatpush2.msra.mxu0 0.0
    %736 = vmatprep.subr.mxu0 0.0
    %737 = vmatpush2.msra.mxu0 0.0
    %738 = vmatprep.mubr.f32.mxu0 0.0
    %739 = vmatmul.mubr.f32.gmra.mxu0 %v672
    %v740 = vpop.f32.mrf.mxu0
    %v741 = vadd.f32 %v654, %v740
    %v742 = vpop.f32.mrf.mxu0
    %v743 = vadd.f32 %v658, %v742
    %744 = vdwg.mxu0
    %745 = vmatprep.subr.mxu0 0.0
    %746 = vmatpush1.msra.mxu0 0.0
    %747 = vmatprep.subr.mxu0 0.0
    %748 = vmatpush1.msra.mxu0 0.0
    %749 = vmatprep.subr.mxu0 0.0
    %750 = vmatpush1.msra.mxu0 0.0
    %751 = vmatprep.subr.mxu0 0.0
    %752 = vmatpush1.msra.mxu0 0.0
    %753 = vmatprep.subr.mxu0 0.0
    %754 = vmatpush1.msra.mxu0 0.0
    %755 = vmatprep.subr.mxu0 0.0
    %756 = vmatpush1.msra.mxu0 0.0
    %757 = vmatprep.subr.mxu0 0.0
    %758 = vmatpush1.msra.mxu0 0.0
    %759 = vmatprep.subr.mxu0 0.0
    %760 = vmatpush1.msra.mxu0 0.0
    %761 = vmatprep.subr.mxu0 0.0
    %762 = vmatpush1.msra.mxu0 0.0
    %763 = vmatprep.subr.mxu0 0.0
    %764 = vmatpush1.msra.mxu0 0.0
    %765 = vmatprep.subr.mxu0 0.0
    %766 = vmatpush1.msra.mxu0 0.0
    %767 = vmatprep.subr.mxu0 0.0
    %768 = vmatpush1.msra.mxu0 0.0
    %769 = vmatprep.subr.mxu0 0.0
    %770 = vmatpush1.msra.mxu0 0.0
    %771 = vmatprep.subr.mxu0 0.0
    %772 = vmatpush1.msra.mxu0 0.0
    %773 = vmatprep.subr.mxu0 %v626
    %774 = vmatpush1.msra.mxu0 %v625
    %775 = vmatprep.subr.mxu0 %v622
    %776 = vmatpush1.msra.mxu0 %v621
    %777 = vmatprep.subr.mxu0 0.0
    %778 = vmatpush2.msra.mxu0 0.0
    %779 = vmatprep.subr.mxu0 0.0
    %780 = vmatpush2.msra.mxu0 0.0
    %781 = vmatprep.subr.mxu0 0.0
    %782 = vmatpush2.msra.mxu0 0.0
    %783 = vmatprep.subr.mxu0 0.0
    %784 = vmatpush2.msra.mxu0 0.0
    %785 = vmatprep.subr.mxu0 0.0
    %786 = vmatpush2.msra.mxu0 0.0
    %787 = vmatprep.subr.mxu0 0.0
    %788 = vmatpush2.msra.mxu0 0.0
    %789 = vmatprep.subr.mxu0 0.0
    %790 = vmatpush2.msra.mxu0 0.0
    %791 = vmatprep.subr.mxu0 0.0
    %792 = vmatpush2.msra.mxu0 0.0
    %793 = vmatprep.subr.mxu0 0.0
    %794 = vmatpush2.msra.mxu0 0.0
    %795 = vmatprep.subr.mxu0 0.0
    %796 = vmatpush2.msra.mxu0 0.0
    %797 = vmatprep.subr.mxu0 0.0
    %798 = vmatpush2.msra.mxu0 0.0
    %799 = vmatprep.subr.mxu0 0.0
    %800 = vmatpush2.msra.mxu0 0.0
    %801 = vmatprep.subr.mxu0 0.0
    %802 = vmatpush2.msra.mxu0 0.0
    %803 = vmatprep.subr.mxu0 0.0
    %804 = vmatpush2.msra.mxu0 0.0
    %805 = vmatprep.subr.mxu0 0.0
    %806 = vmatpush2.msra.mxu0 0.0
    %807 = vmatprep.subr.mxu0 0.0
    %808 = vmatpush2.msra.mxu0 0.0
    %809 = vmatprep.mubr.f32.mxu0 0.0
    %810 = vmatmul.mubr.f32.gmra.mxu0 %v672
    %v811 = vpop.f32.mrf.mxu0
    %v812 = vadd.f32 %v662, %v811
    %v813 = vpop.f32.mrf.mxu0
    %v814 = vadd.f32 %v666, %v813
    %815 = vdwg.mxu0
    %v816 = vmul.f32 %v741, 0.5
    %v817 = vtanh.pop %v816
    %v818 = vadd.f32 %v817, 1.0
    %v819 = vmul.f32 %v818, 0.5
    %v820 = vmul.f32 %v743, 0.5
    %v821 = vtanh.pop %v820
    %v822 = vadd.f32 %v821, 1.0
    %v823 = vmul.f32 %v822, 0.5
    %v824 = vmul.f32 %v819, %v814
    %v825 = vadd.f32 %v812, %v824
    %v826 = vtanh.pop %v825
    %v827 = vsub.f32 1.0, %v823
    %v828 = vmul.f32 %v827, %v826
    %829 = vst [vmem:[#allocation2] sm:$0x1] %v828
    %830 = vmatprep.subr.mxu0 0.0
    %831 = vmatpush1.msra.mxu0 0.0
    %832 = vmatprep.subr.mxu0 0.0
    %833 = vmatpush1.msra.mxu0 0.0
    %834 = vmatprep.subr.mxu0 0.0
    %835 = vmatpush1.msra.mxu0 0.0
    %836 = vmatprep.subr.mxu0 0.0
    %837 = vmatpush1.msra.mxu0 0.0
    %838 = vmatprep.subr.mxu0 0.0
    %839 = vmatpush1.msra.mxu0 0.0
    %840 = vmatprep.subr.mxu0 0.0
    %841 = vmatpush1.msra.mxu0 0.0
    %842 = vmatprep.subr.mxu0 0.0
    %843 = vmatpush1.msra.mxu0 0.0
    %844 = vmatprep.subr.mxu0 0.0
    %845 = vmatpush1.msra.mxu0 0.0
    %846 = vmatprep.subr.mxu0 0.0
    %847 = vmatpush1.msra.mxu0 0.0
    %848 = vmatprep.subr.mxu0 0.0
    %849 = vmatpush1.msra.mxu0 0.0
    %850 = vmatprep.subr.mxu0 0.0
    %851 = vmatpush1.msra.mxu0 0.0
    %852 = vmatprep.subr.mxu0 0.0
    %853 = vmatpush1.msra.mxu0 0.0
    %854 = vmatprep.subr.mxu0 0.0
    %855 = vmatpush1.msra.mxu0 0.0
    %856 = vmatprep.subr.mxu0 0.0
    %857 = vmatpush1.msra.mxu0 0.0
    %858 = vmatprep.subr.mxu0 %v616
    %859 = vmatpush1.msra.mxu0 %v615
    %860 = vmatprep.subr.mxu0 %v612
    %861 = vmatpush1.msra.mxu0 %v611
    %862 = vmatprep.subr.mxu0 0.0
    %863 = vmatpush2.msra.mxu0 0.0
    %864 = vmatprep.subr.mxu0 0.0
    %865 = vmatpush2.msra.mxu0 0.0
    %866 = vmatprep.subr.mxu0 0.0
    %867 = vmatpush2.msra.mxu0 0.0
    %868 = vmatprep.subr.mxu0 0.0
    %869 = vmatpush2.msra.mxu0 0.0
    %870 = vmatprep.subr.mxu0 0.0
    %871 = vmatpush2.msra.mxu0 0.0
    %872 = vmatprep.subr.mxu0 0.0
    %873 = vmatpush2.msra.mxu0 0.0
    %874 = vmatprep.subr.mxu0 0.0
    %875 = vmatpush2.msra.mxu0 0.0
    %876 = vmatprep.subr.mxu0 0.0
    %877 = vmatpush2.msra.mxu0 0.0
    %878 = vmatprep.subr.mxu0 0.0
    %879 = vmatpush2.msra.mxu0 0.0
    %880 = vmatprep.subr.mxu0 0.0
    %881 = vmatpush2.msra.mxu0 0.0
    %882 = vmatprep.subr.mxu0 0.0
    %883 = vmatpush2.msra.mxu0 0.0
    %884 = vmatprep.subr.mxu0 0.0
    %885 = vmatpush2.msra.mxu0 0.0
    %886 = vmatprep.subr.mxu0 0.0
    %887 = vmatpush2.msra.mxu0 0.0
    %888 = vmatprep.subr.mxu0 0.0
    %889 = vmatpush2.msra.mxu0 0.0
    %890 = vmatprep.subr.mxu0 0.0
    %891 = vmatpush2.msra.mxu0 0.0
    %892 = vmatprep.subr.mxu0 0.0
    %893 = vmatpush2.msra.mxu0 0.0
    %894 = vmatprep.mubr.f32.mxu0 0.0
    %895 = vmatmul.mubr.f32.gmra.mxu0 %v672
    %v896 = vpop.f32.mrf.mxu0
    %v897 = vadd.f32 0.0, %v896
    %v898 = vpop.f32.mrf.mxu0
    %v899 = vadd.f32 0.0, %v898
    %900 = vdwg.mxu0
    %901 = vmatprep.subr.mxu0 0.0
    %902 = vmatpush1.msra.mxu0 0.0
    %903 = vmatprep.subr.mxu0 0.0
    %904 = vmatpush1.msra.mxu0 0.0
    %905 = vmatprep.subr.mxu0 0.0
    %906 = vmatpush1.msra.mxu0 0.0
    %907 = vmatprep.subr.mxu0 0.0
    %908 = vmatpush1.msra.mxu0 0.0
    %909 = vmatprep.subr.mxu0 0.0
    %910 = vmatpush1.msra.mxu0 0.0
    %911 = vmatprep.subr.mxu0 0.0
    %912 = vmatpush1.msra.mxu0 0.0
    %913 = vmatprep.subr.mxu0 0.0
    %914 = vmatpush1.msra.mxu0 0.0
    %915 = vmatprep.subr.mxu0 0.0
    %916 = vmatpush1.msra.mxu0 0.0
    %917 = vmatprep.subr.mxu0 0.0
    %918 = vmatpush1.msra.mxu0 0.0
    %919 = vmatprep.subr.mxu0 0.0
    %920 = vmatpush1.msra.mxu0 0.0
    %921 = vmatprep.subr.mxu0 0.0
    %922 = vmatpush1.msra.mxu0 0.0
    %923 = vmatprep.subr.mxu0 0.0
    %924 = vmatpush1.msra.mxu0 0.0
    %925 = vmatprep.subr.mxu0 0.0
    %926 = vmatpush1.msra.mxu0 0.0
    %927 = vmatprep.subr.mxu0 0.0
    %928 = vmatpush1.msra.mxu0 0.0
    %929 = vmatprep.subr.mxu0 %v618
    %930 = vmatpush1.msra.mxu0 %v617
    %931 = vmatprep.subr.mxu0 %v614
    %932 = vmatpush1.msra.mxu0 %v613
    %933 = vmatprep.subr.mxu0 0.0
    %934 = vmatpush2.msra.mxu0 0.0
    %935 = vmatprep.subr.mxu0 0.0
    %936 = vmatpush2.msra.mxu0 0.0
    %937 = vmatprep.subr.mxu0 0.0
    %938 = vmatpush2.msra.mxu0 0.0
    %939 = vmatprep.subr.mxu0 0.0
    %940 = vmatpush2.msra.mxu0 0.0
    %941 = vmatprep.subr.mxu0 0.0
    %942 = vmatpush2.msra.mxu0 0.0
    %943 = vmatprep.subr.mxu0 0.0
    %944 = vmatpush2.msra.mxu0 0.0
    %945 = vmatprep.subr.mxu0 0.0
    %946 = vmatpush2.msra.mxu0 0.0
    %947 = vmatprep.subr.mxu0 0.0
    %948 = vmatpush2.msra.mxu0 0.0
    %949 = vmatprep.subr.mxu0 0.0
    %950 = vmatpush2.msra.mxu0 0.0
    %951 = vmatprep.subr.mxu0 0.0
    %952 = vmatpush2.msra.mxu0 0.0
    %953 = vmatprep.subr.mxu0 0.0
    %954 = vmatpush2.msra.mxu0 0.0
    %955 = vmatprep.subr.mxu0 0.0
    %956 = vmatpush2.msra.mxu0 0.0
    %957 = vmatprep.subr.mxu0 0.0
    %958 = vmatpush2.msra.mxu0 0.0
    %959 = vmatprep.subr.mxu0 0.0
    %960 = vmatpush2.msra.mxu0 0.0
    %961 = vmatprep.subr.mxu0 0.0
    %962 = vmatpush2.msra.mxu0 0.0
    %963 = vmatprep.subr.mxu0 0.0
    %964 = vmatpush2.msra.mxu0 0.0
    %965 = vmatprep.mubr.f32.mxu0 0.0
    %966 = vmatmul.mubr.f32.gmra.mxu0 %v672
    %v967 = vpop.f32.mrf.mxu0
    %v968 = vadd.f32 0.0, %v967
    %v969 = vpop.f32.mrf.mxu0
    %v970 = vadd.f32 0.0, %v969
    %971 = vdwg.mxu0
    %v976 = vrot.slane %v897, 7
    %v977 = vrot.slane %v899, 7
    %v978 = vrot.slane %v968, 7
    %v979 = vrot.slane %v970, 7
    %v984 = vadd.f32 %v536, %v976
    %v985 = vadd.f32 %v538, %v977
    %v986 = vadd.f32 %v607, %v978
    %v987 = vadd.f32 %v609, %v979
    %v988 = vmul.f32 %v984, 0.5
    %v989 = vtanh.pop %v988
    %v990 = vadd.f32 %v989, 1.0
    %v991 = vmul.f32 %v990, 0.5
    %v992 = vmul.f32 %v985, 0.5
    %v993 = vtanh.pop %v992
    %v994 = vadd.f32 %v993, 1.0
    %v995 = vmul.f32 %v994, 0.5
    %v996 = vmul.f32 %v991, %v987
    %v997 = vadd.f32 %v986, %v996
    %v998 = vtanh.pop %v997
    %v999 = vsub.f32 1.0, %v995
    %v1000 = vmul.f32 %v999, %v998
    %v1001 = vrot.slane %v649, 7
    %v1003 = vmul.f32 %v995, %v1001
    %v1004 = vadd.f32 %v1000, %v1003
    %v1006 = vrot.slane %v828, 7
    %1007 = vrot.lane.b32.xlu0 %v1006, 16
    %v1008 = vpop.permute.xlu0 %1007
    %v1010 = vsel %vm70, %v1004, %v1008
    %v1012 = vrot.slane %v1010, 1
    %v1013 = vsel %vm268, %v1012, 0
    %1015 = vmatprep.subr.mxu0 0.0
    %1016 = vmatpush1.msra.mxu0 0.0
    %1017 = vmatprep.subr.mxu0 0.0
    %1018 = vmatpush1.msra.mxu0 0.0
    %1019 = vmatprep.subr.mxu0 0.0
    %1020 = vmatpush1.msra.mxu0 0.0
    %1021 = vmatprep.subr.mxu0 0.0
    %1022 = vmatpush1.msra.mxu0 0.0
    %1023 = vmatprep.subr.mxu0 0.0
    %1024 = vmatpush1.msra.mxu0 0.0
    %1025 = vmatprep.subr.mxu0 0.0
    %1026 = vmatpush1.msra.mxu0 0.0
    %1027 = vmatprep.subr.mxu0 0.0
    %1028 = vmatpush1.msra.mxu0 0.0
    %1029 = vmatprep.subr.mxu0 0.0
    %1030 = vmatpush1.msra.mxu0 0.0
    %1031 = vmatprep.subr.mxu0 0.0
    %1032 = vmatpush1.msra.mxu0 0.0
    %1033 = vmatprep.subr.mxu0 0.0
    %1034 = vmatpush1.msra.mxu0 0.0
    %1035 = vmatprep.subr.mxu0 0.0
    %1036 = vmatpush1.msra.mxu0 0.0
    %1037 = vmatprep.subr.mxu0 0.0
    %1038 = vmatpush1.msra.mxu0 0.0
    %1039 = vmatprep.subr.mxu0 %v632
    %1040 = vmatpush1.msra.mxu0 %v631
    %1041 = vmatprep.subr.mxu0 %v628
    %1042 = vmatpush1.msra.mxu0 %v627
    %1043 = vmatprep.subr.mxu0 %v624
    %1044 = vmatpush1.msra.mxu0 %v623
    %1045 = vmatprep.subr.mxu0 %v620
    %1046 = vmatpush1.msra.mxu0 %v619
    %1047 = vmatprep.subr.mxu0 0.0
    %1048 = vmatpush2.msra.mxu0 0.0
    %1049 = vmatprep.subr.mxu0 0.0
    %1050 = vmatpush2.msra.mxu0 0.0
    %1051 = vmatprep.subr.mxu0 0.0
    %1052 = vmatpush2.msra.mxu0 0.0
    %1053 = vmatprep.subr.mxu0 0.0
    %1054 = vmatpush2.msra.mxu0 0.0
    %1055 = vmatprep.subr.mxu0 0.0
    %1056 = vmatpush2.msra.mxu0 0.0
    %1057 = vmatprep.subr.mxu0 0.0
    %1058 = vmatpush2.msra.mxu0 0.0
    %1059 = vmatprep.subr.mxu0 0.0
    %1060 = vmatpush2.msra.mxu0 0.0
    %1061 = vmatprep.subr.mxu0 0.0
    %1062 = vmatpush2.msra.mxu0 0.0
    %1063 = vmatprep.subr.mxu0 0.0
    %1064 = vmatpush2.msra.mxu0 0.0
    %1065 = vmatprep.subr.mxu0 0.0
    %1066 = vmatpush2.msra.mxu0 0.0
    %1067 = vmatprep.subr.mxu0 0.0
    %1068 = vmatpush2.msra.mxu0 0.0
    %1069 = vmatprep.subr.mxu0 0.0
    %1070 = vmatpush2.msra.mxu0 0.0
    %1071 = vmatprep.subr.mxu0 0.0
    %1072 = vmatpush2.msra.mxu0 0.0
    %1073 = vmatprep.subr.mxu0 0.0
    %1074 = vmatpush2.msra.mxu0 0.0
    %1075 = vmatprep.subr.mxu0 0.0
    %1076 = vmatpush2.msra.mxu0 0.0
    %1077 = vmatprep.subr.mxu0 0.0
    %1078 = vmatpush2.msra.mxu0 0.0
    %1079 = vmatprep.mubr.f32.mxu0 0.0
    %1080 = vmatmul.mubr.f32.gmra.mxu0 %v1013
    %v1081 = vpop.f32.mrf.mxu0
    %v1082 = vadd.f32 %v654, %v1081
    %v1083 = vpop.f32.mrf.mxu0
    %v1084 = vadd.f32 %v658, %v1083
    %1085 = vdwg.mxu0
    %1086 = vmatprep.subr.mxu0 0.0
    %1087 = vmatpush1.msra.mxu0 0.0
    %1088 = vmatprep.subr.mxu0 0.0
    %1089 = vmatpush1.msra.mxu0 0.0
    %1090 = vmatprep.subr.mxu0 0.0
    %1091 = vmatpush1.msra.mxu0 0.0
    %1092 = vmatprep.subr.mxu0 0.0
    %1093 = vmatpush1.msra.mxu0 0.0
    %1094 = vmatprep.subr.mxu0 0.0
    %1095 = vmatpush1.msra.mxu0 0.0
    %1096 = vmatprep.subr.mxu0 0.0
    %1097 = vmatpush1.msra.mxu0 0.0
    %1098 = vmatprep.subr.mxu0 0.0
    %1099 = vmatpush1.msra.mxu0 0.0
    %1100 = vmatprep.subr.mxu0 0.0
    %1101 = vmatpush1.msra.mxu0 0.0
    %1102 = vmatprep.subr.mxu0 0.0
    %1103 = vmatpush1.msra.mxu0 0.0
    %1104 = vmatprep.subr.mxu0 0.0
    %1105 = vmatpush1.msra.mxu0 0.0
    %1106 = vmatprep.subr.mxu0 0.0
    %1107 = vmatpush1.msra.mxu0 0.0
    %1108 = vmatprep.subr.mxu0 0.0
    %1109 = vmatpush1.msra.mxu0 0.0
    %1110 = vmatprep.subr.mxu0 %v634
    %1111 = vmatpush1.msra.mxu0 %v633
    %1112 = vmatprep.subr.mxu0 %v630
    %1113 = vmatpush1.msra.mxu0 %v629
    %1114 = vmatprep.subr.mxu0 %v626
    %1115 = vmatpush1.msra.mxu0 %v625
    %1116 = vmatprep.subr.mxu0 %v622
    %1117 = vmatpush1.msra.mxu0 %v621
    %1118 = vmatprep.subr.mxu0 0.0
    %1119 = vmatpush2.msra.mxu0 0.0
    %1120 = vmatprep.subr.mxu0 0.0
    %1121 = vmatpush2.msra.mxu0 0.0
    %1122 = vmatprep.subr.mxu0 0.0
    %1123 = vmatpush2.msra.mxu0 0.0
    %1124 = vmatprep.subr.mxu0 0.0
    %1125 = vmatpush2.msra.mxu0 0.0
    %1126 = vmatprep.subr.mxu0 0.0
    %1127 = vmatpush2.msra.mxu0 0.0
    %1128 = vmatprep.subr.mxu0 0.0
    %1129 = vmatpush2.msra.mxu0 0.0
    %1130 = vmatprep.subr.mxu0 0.0
    %1131 = vmatpush2.msra.mxu0 0.0
    %1132 = vmatprep.subr.mxu0 0.0
    %1133 = vmatpush2.msra.mxu0 0.0
    %1134 = vmatprep.subr.mxu0 0.0
    %1135 = vmatpush2.msra.mxu0 0.0
    %1136 = vmatprep.subr.mxu0 0.0
    %1137 = vmatpush2.msra.mxu0 0.0
    %1138 = vmatprep.subr.mxu0 0.0
    %1139 = vmatpush2.msra.mxu0 0.0
    %1140 = vmatprep.subr.mxu0 0.0
    %1141 = vmatpush2.msra.mxu0 0.0
    %1142 = vmatprep.subr.mxu0 0.0
    %1143 = vmatpush2.msra.mxu0 0.0
    %1144 = vmatprep.subr.mxu0 0.0
    %1145 = vmatpush2.msra.mxu0 0.0
    %1146 = vmatprep.subr.mxu0 0.0
    %1147 = vmatpush2.msra.mxu0 0.0
    %1148 = vmatprep.subr.mxu0 0.0
    %1149 = vmatpush2.msra.mxu0 0.0
    %1150 = vmatprep.mubr.f32.mxu0 0.0
    %1151 = vmatmul.mubr.f32.gmra.mxu0 %v1013
    %v1152 = vpop.f32.mrf.mxu0
    %v1153 = vadd.f32 %v662, %v1152
    %v1154 = vpop.f32.mrf.mxu0
    %v1155 = vadd.f32 %v666, %v1154
    %1156 = vdwg.mxu0
    %v1157 = vmul.f32 %v1082, 0.5
    %v1158 = vtanh.pop %v1157
    %v1159 = vadd.f32 %v1158, 1.0
    %v1160 = vmul.f32 %v1159, 0.5
    %v1161 = vmul.f32 %v1084, 0.5
    %v1162 = vtanh.pop %v1161
    %v1163 = vadd.f32 %v1162, 1.0
    %v1164 = vmul.f32 %v1163, 0.5
    %v1165 = vmul.f32 %v1160, %v1155
    %v1166 = vadd.f32 %v1153, %v1165
    %v1167 = vtanh.pop %v1166
    %v1168 = vsub.f32 1.0, %v1164
    %v1169 = vmul.f32 %v1168, %v1167
    %v1170 = vmul.f32 %v1164, %v828
    %v1171 = vadd.f32 %v1169, %v1170
    %1172 = vst [vmem:[#allocation2 + $0x1] sm:$0x1] %v1171
    %v1174 = vrot.slane %v1004, 1
    %v1175 = vsel %vm70, %v1174, 0
    %1177 = vmatprep.subr.mxu0 0.0
    %1178 = vmatpush1.msra.mxu0 0.0
    %1179 = vmatprep.subr.mxu0 0.0
    %1180 = vmatpush1.msra.mxu0 0.0
    %1181 = vmatprep.subr.mxu0 0.0
    %1182 = vmatpush1.msra.mxu0 0.0
    %1183 = vmatprep.subr.mxu0 0.0
    %1184 = vmatpush1.msra.mxu0 0.0
    %1185 = vmatprep.subr.mxu0 0.0
    %1186 = vmatpush1.msra.mxu0 0.0
    %1187 = vmatprep.subr.mxu0 0.0
    %1188 = vmatpush1.msra.mxu0 0.0
    %1189 = vmatprep.subr.mxu0 0.0
    %1190 = vmatpush1.msra.mxu0 0.0
    %1191 = vmatprep.subr.mxu0 0.0
    %1192 = vmatpush1.msra.mxu0 0.0
    %1193 = vmatprep.subr.mxu0 0.0
    %1194 = vmatpush1.msra.mxu0 0.0
    %1195 = vmatprep.subr.mxu0 0.0
    %1196 = vmatpush1.msra.mxu0 0.0
    %1197 = vmatprep.subr.mxu0 0.0
    %1198 = vmatpush1.msra.mxu0 0.0
    %1199 = vmatprep.subr.mxu0 0.0
    %1200 = vmatpush1.msra.mxu0 0.0
    %1201 = vmatprep.subr.mxu0 0.0
    %1202 = vmatpush1.msra.mxu0 0.0
    %1203 = vmatprep.subr.mxu0 0.0
    %1204 = vmatpush1.msra.mxu0 0.0
    %1205 = vmatprep.subr.mxu0 %v616
    %1206 = vmatpush1.msra.mxu0 %v615
    %1207 = vmatprep.subr.mxu0 %v612
    %1208 = vmatpush1.msra.mxu0 %v611
    %1209 = vmatprep.subr.mxu0 0.0
    %1210 = vmatpush2.msra.mxu0 0.0
    %1211 = vmatprep.subr.mxu0 0.0
    %1212 = vmatpush2.msra.mxu0 0.0
    %1213 = vmatprep.subr.mxu0 0.0
    %1214 = vmatpush2.msra.mxu0 0.0
    %1215 = vmatprep.subr.mxu0 0.0
    %1216 = vmatpush2.msra.mxu0 0.0
    %1217 = vmatprep.subr.mxu0 0.0
    %1218 = vmatpush2.msra.mxu0 0.0
    %1219 = vmatprep.subr.mxu0 0.0
    %1220 = vmatpush2.msra.mxu0 0.0
    %1221 = vmatprep.subr.mxu0 0.0
    %1222 = vmatpush2.msra.mxu0 0.0
    %1223 = vmatprep.subr.mxu0 0.0
    %1224 = vmatpush2.msra.mxu0 0.0
    %1225 = vmatprep.subr.mxu0 0.0
    %1226 = vmatpush2.msra.mxu0 0.0
    %1227 = vmatprep.subr.mxu0 0.0
    %1228 = vmatpush2.msra.mxu0 0.0
    %1229 = vmatprep.subr.mxu0 0.0
    %1230 = vmatpush2.msra.mxu0 0.0
    %1231 = vmatprep.subr.mxu0 0.0
    %1232 = vmatpush2.msra.mxu0 0.0
    %1233 = vmatprep.subr.mxu0 0.0
    %1234 = vmatpush2.msra.mxu0 0.0
    %1235 = vmatprep.subr.mxu0 0.0
    %1236 = vmatpush2.msra.mxu0 0.0
    %1237 = vmatprep.subr.mxu0 0.0
    %1238 = vmatpush2.msra.mxu0 0.0
    %1239 = vmatprep.subr.mxu0 0.0
    %1240 = vmatpush2.msra.mxu0 0.0
    %1241 = vmatprep.mubr.f32.mxu0 0.0
    %1242 = vmatmul.mubr.f32.gmra.mxu0 %v1175
    %v1243 = vpop.f32.mrf.mxu0
    %v1244 = vadd.f32 0.0, %v1243
    %v1245 = vpop.f32.mrf.mxu0
    %v1246 = vadd.f32 0.0, %v1245
    %1247 = vdwg.mxu0
    %1248 = vmatprep.subr.mxu0 0.0
    %1249 = vmatpush1.msra.mxu0 0.0
    %1250 = vmatprep.subr.mxu0 0.0
    %1251 = vmatpush1.msra.mxu0 0.0
    %1252 = vmatprep.subr.mxu0 0.0
    %1253 = vmatpush1.msra.mxu0 0.0
    %1254 = vmatprep.subr.mxu0 0.0
    %1255 = vmatpush1.msra.mxu0 0.0
    %1256 = vmatprep.subr.mxu0 0.0
    %1257 = vmatpush1.msra.mxu0 0.0
    %1258 = vmatprep.subr.mxu0 0.0
    %1259 = vmatpush1.msra.mxu0 0.0
    %1260 = vmatprep.subr.mxu0 0.0
    %1261 = vmatpush1.msra.mxu0 0.0
    %1262 = vmatprep.subr.mxu0 0.0
    %1263 = vmatpush1.msra.mxu0 0.0
    %1264 = vmatprep.subr.mxu0 0.0
    %1265 = vmatpush1.msra.mxu0 0.0
    %1266 = vmatprep.subr.mxu0 0.0
    %1267 = vmatpush1.msra.mxu0 0.0
    %1268 = vmatprep.subr.mxu0 0.0
    %1269 = vmatpush1.msra.mxu0 0.0
    %1270 = vmatprep.subr.mxu0 0.0
    %1271 = vmatpush1.msra.mxu0 0.0
    %1272 = vmatprep.subr.mxu0 0.0
    %1273 = vmatpush1.msra.mxu0 0.0
    %1274 = vmatprep.subr.mxu0 0.0
    %1275 = vmatpush1.msra.mxu0 0.0
    %1276 = vmatprep.subr.mxu0 %v618
    %1277 = vmatpush1.msra.mxu0 %v617
    %1278 = vmatprep.subr.mxu0 %v614
    %1279 = vmatpush1.msra.mxu0 %v613
    %1280 = vmatprep.subr.mxu0 0.0
    %1281 = vmatpush2.msra.mxu0 0.0
    %1282 = vmatprep.subr.mxu0 0.0
    %1283 = vmatpush2.msra.mxu0 0.0
    %1284 = vmatprep.subr.mxu0 0.0
    %1285 = vmatpush2.msra.mxu0 0.0
    %1286 = vmatprep.subr.mxu0 0.0
    %1287 = vmatpush2.msra.mxu0 0.0
    %1288 = vmatprep.subr.mxu0 0.0
    %1289 = vmatpush2.msra.mxu0 0.0
    %1290 = vmatprep.subr.mxu0 0.0
    %1291 = vmatpush2.msra.mxu0 0.0
    %1292 = vmatprep.subr.mxu0 0.0
    %1293 = vmatpush2.msra.mxu0 0.0
    %1294 = vmatprep.subr.mxu0 0.0
    %1295 = vmatpush2.msra.mxu0 0.0
    %1296 = vmatprep.subr.mxu0 0.0
    %1297 = vmatpush2.msra.mxu0 0.0
    %1298 = vmatprep.subr.mxu0 0.0
    %1299 = vmatpush2.msra.mxu0 0.0
    %1300 = vmatprep.subr.mxu0 0.0
    %1301 = vmatpush2.msra.mxu0 0.0
    %1302 = vmatprep.subr.mxu0 0.0
    %1303 = vmatpush2.msra.mxu0 0.0
    %1304 = vmatprep.subr.mxu0 0.0
    %1305 = vmatpush2.msra.mxu0 0.0
    %1306 = vmatprep.subr.mxu0 0.0
    %1307 = vmatpush2.msra.mxu0 0.0
    %1308 = vmatprep.subr.mxu0 0.0
    %1309 = vmatpush2.msra.mxu0 0.0
    %1310 = vmatprep.subr.mxu0 0.0
    %1311 = vmatpush2.msra.mxu0 0.0
    %1312 = vmatprep.mubr.f32.mxu0 0.0
    %1313 = vmatmul.mubr.f32.gmra.mxu0 %v1175
    %v1314 = vpop.f32.mrf.mxu0
    %v1315 = vadd.f32 0.0, %v1314
    %v1316 = vpop.f32.mrf.mxu0
    %v1317 = vadd.f32 0.0, %v1316
    %1318 = vdwg.mxu0
    %v1323 = vrot.slane %v1244, 6
    %v1324 = vrot.slane %v1246, 6
    %v1325 = vrot.slane %v1315, 6
    %v1326 = vrot.slane %v1317, 6
    %v1331 = vadd.f32 %v536, %v1323
    %v1332 = vadd.f32 %v538, %v1324
    %v1333 = vadd.f32 %v607, %v1325
    %v1334 = vadd.f32 %v609, %v1326
    %v1335 = vmul.f32 %v1331, 0.5
    %v1336 = vtanh.pop %v1335
    %v1337 = vadd.f32 %v1336, 1.0
    %v1338 = vmul.f32 %v1337, 0.5
    %v1339 = vmul.f32 %v1332, 0.5
    %v1340 = vtanh.pop %v1339
    %v1341 = vadd.f32 %v1340, 1.0
    %v1342 = vmul.f32 %v1341, 0.5
    %v1343 = vmul.f32 %v1338, %v1334
    %v1344 = vadd.f32 %v1333, %v1343
    %v1345 = vtanh.pop %v1344
    %v1346 = vsub.f32 1.0, %v1342
    %v1347 = vmul.f32 %v1346, %v1345
    %v1348 = vrot.slane %v1004, 7
    %v1350 = vmul.f32 %v1342, %v1348
    %v1351 = vadd.f32 %v1347, %v1350
    %v1353 = vrot.slane %v1171, 6
    %1354 = vrot.lane.b32.xlu0 %v1353, 16
    %v1355 = vpop.permute.xlu0 %1354
    %v1357 = vsel %vm70, %v1351, %v1355
    %v1359 = vrot.slane %v1357, 2
    %v1360 = vsel %vm268, %v1359, 0
    %1362 = vmatprep.subr.mxu0 0.0
    %1363 = vmatpush1.msra.mxu0 0.0
    %1364 = vmatprep.subr.mxu0 0.0
    %1365 = vmatpush1.msra.mxu0 0.0
    %1366 = vmatprep.subr.mxu0 0.0
    %1367 = vmatpush1.msra.mxu0 0.0
    %1368 = vmatprep.subr.mxu0 0.0
    %1369 = vmatpush1.msra.mxu0 0.0
    %1370 = vmatprep.subr.mxu0 0.0
    %1371 = vmatpush1.msra.mxu0 0.0
    %1372 = vmatprep.subr.mxu0 0.0
    %1373 = vmatpush1.msra.mxu0 0.0
    %1374 = vmatprep.subr.mxu0 0.0
    %1375 = vmatpush1.msra.mxu0 0.0
    %1376 = vmatprep.subr.mxu0 0.0
    %1377 = vmatpush1.msra.mxu0 0.0
    %1378 = vmatprep.subr.mxu0 0.0
    %1379 = vmatpush1.msra.mxu0 0.0
    %1380 = vmatprep.subr.mxu0 0.0
    %1381 = vmatpush1.msra.mxu0 0.0
    %1382 = vmatprep.subr.mxu0 0.0
    %1383 = vmatpush1.msra.mxu0 0.0
    %1384 = vmatprep.subr.mxu0 0.0
    %1385 = vmatpush1.msra.mxu0 0.0
    %1386 = vmatprep.subr.mxu0 %v632
    %1387 = vmatpush1.msra.mxu0 %v631
    %1388 = vmatprep.subr.mxu0 %v628
    %1389 = vmatpush1.msra.mxu0 %v627
    %1390 = vmatprep.subr.mxu0 %v624
    %1391 = vmatpush1.msra.mxu0 %v623
    %1392 = vmatprep.subr.mxu0 %v620
    %1393 = vmatpush1.msra.mxu0 %v619
    %1394 = vmatprep.subr.mxu0 0.0
    %1395 = vmatpush2.msra.mxu0 0.0
    %1396 = vmatprep.subr.mxu0 0.0
    %1397 = vmatpush2.msra.mxu0 0.0
    %1398 = vmatprep.subr.mxu0 0.0
    %1399 = vmatpush2.msra.mxu0 0.0
    %1400 = vmatprep.subr.mxu0 0.0
    %1401 = vmatpush2.msra.mxu0 0.0
    %1402 = vmatprep.subr.mxu0 0.0
    %1403 = vmatpush2.msra.mxu0 0.0
    %1404 = vmatprep.subr.mxu0 0.0
    %1405 = vmatpush2.msra.mxu0 0.0
    %1406 = vmatprep.subr.mxu0 0.0
    %1407 = vmatpush2.msra.mxu0 0.0
    %1408 = vmatprep.subr.mxu0 0.0
    %1409 = vmatpush2.msra.mxu0 0.0
    %1410 = vmatprep.subr.mxu0 0.0
    %1411 = vmatpush2.msra.mxu0 0.0
    %1412 = vmatprep.subr.mxu0 0.0
    %1413 = vmatpush2.msra.mxu0 0.0
    %1414 = vmatprep.subr.mxu0 0.0
    %1415 = vmatpush2.msra.mxu0 0.0
    %1416 = vmatprep.subr.mxu0 0.0
    %1417 = vmatpush2.msra.mxu0 0.0
    %1418 = vmatprep.subr.mxu0 0.0
    %1419 = vmatpush2.msra.mxu0 0.0
    %1420 = vmatprep.subr.mxu0 0.0
    %1421 = vmatpush2.msra.mxu0 0.0
    %1422 = vmatprep.subr.mxu0 0.0
    %1423 = vmatpush2.msra.mxu0 0.0
    %1424 = vmatprep.subr.mxu0 0.0
    %1425 = vmatpush2.msra.mxu0 0.0
    %1426 = vmatprep.mubr.f32.mxu0 0.0
    %1427 = vmatmul.mubr.f32.gmra.mxu0 %v1360
    %v1428 = vpop.f32.mrf.mxu0
    %v1429 = vadd.f32 %v654, %v1428
    %v1430 = vpop.f32.mrf.mxu0
    %v1431 = vadd.f32 %v658, %v1430
    %1432 = vdwg.mxu0
    %1433 = vmatprep.subr.mxu0 0.0
    %1434 = vmatpush1.msra.mxu0 0.0
    %1435 = vmatprep.subr.mxu0 0.0
    %1436 = vmatpush1.msra.mxu0 0.0
    %1437 = vmatprep.subr.mxu0 0.0
    %1438 = vmatpush1.msra.mxu0 0.0
    %1439 = vmatprep.subr.mxu0 0.0
    %1440 = vmatpush1.msra.mxu0 0.0
    %1441 = vmatprep.subr.mxu0 0.0
    %1442 = vmatpush1.msra.mxu0 0.0
    %1443 = vmatprep.subr.mxu0 0.0
    %1444 = vmatpush1.msra.mxu0 0.0
    %1445 = vmatprep.subr.mxu0 0.0
    %1446 = vmatpush1.msra.mxu0 0.0
    %1447 = vmatprep.subr.mxu0 0.0
    %1448 = vmatpush1.msra.mxu0 0.0
    %1449 = vmatprep.subr.mxu0 0.0
    %1450 = vmatpush1.msra.mxu0 0.0
    %1451 = vmatprep.subr.mxu0 0.0
    %1452 = vmatpush1.msra.mxu0 0.0
    %1453 = vmatprep.subr.mxu0 0.0
    %1454 = vmatpush1.msra.mxu0 0.0
    %1455 = vmatprep.subr.mxu0 0.0
    %1456 = vmatpush1.msra.mxu0 0.0
    %1457 = vmatprep.subr.mxu0 %v634
    %1458 = vmatpush1.msra.mxu0 %v633
    %1459 = vmatprep.subr.mxu0 %v630
    %1460 = vmatpush1.msra.mxu0 %v629
    %1461 = vmatprep.subr.mxu0 %v626
    %1462 = vmatpush1.msra.mxu0 %v625
    %1463 = vmatprep.subr.mxu0 %v622
    %1464 = vmatpush1.msra.mxu0 %v621
    %1465 = vmatprep.subr.mxu0 0.0
    %1466 = vmatpush2.msra.mxu0 0.0
    %1467 = vmatprep.subr.mxu0 0.0
    %1468 = vmatpush2.msra.mxu0 0.0
    %1469 = vmatprep.subr.mxu0 0.0
    %1470 = vmatpush2.msra.mxu0 0.0
    %1471 = vmatprep.subr.mxu0 0.0
    %1472 = vmatpush2.msra.mxu0 0.0
    %1473 = vmatprep.subr.mxu0 0.0
    %1474 = vmatpush2.msra.mxu0 0.0
    %1475 = vmatprep.subr.mxu0 0.0
    %1476 = vmatpush2.msra.mxu0 0.0
    %1477 = vmatprep.subr.mxu0 0.0
    %1478 = vmatpush2.msra.mxu0 0.0
    %1479 = vmatprep.subr.mxu0 0.0
    %1480 = vmatpush2.msra.mxu0 0.0
    %1481 = vmatprep.subr.mxu0 0.0
    %1482 = vmatpush2.msra.mxu0 0.0
    %1483 = vmatprep.subr.mxu0 0.0
    %1484 = vmatpush2.msra.mxu0 0.0
    %1485 = vmatprep.subr.mxu0 0.0
    %1486 = vmatpush2.msra.mxu0 0.0
    %1487 = vmatprep.subr.mxu0 0.0
    %1488 = vmatpush2.msra.mxu0 0.0
    %1489 = vmatprep.subr.mxu0 0.0
    %1490 = vmatpush2.msra.mxu0 0.0
    %1491 = vmatprep.subr.mxu0 0.0
    %1492 = vmatpush2.msra.mxu0 0.0
    %1493 = vmatprep.subr.mxu0 0.0
    %1494 = vmatpush2.msra.mxu0 0.0
    %1495 = vmatprep.subr.mxu0 0.0
    %1496 = vmatpush2.msra.mxu0 0.0
    %1497 = vmatprep.mubr.f32.mxu0 0.0
    %1498 = vmatmul.mubr.f32.gmra.mxu0 %v1360
    %v1499 = vpop.f32.mrf.mxu0
    %v1500 = vadd.f32 %v662, %v1499
    %v1501 = vpop.f32.mrf.mxu0
    %v1502 = vadd.f32 %v666, %v1501
    %1503 = vdwg.mxu0
    %v1504 = vmul.f32 %v1429, 0.5
    %v1505 = vtanh.pop %v1504
    %v1506 = vadd.f32 %v1505, 1.0
    %v1507 = vmul.f32 %v1506, 0.5
    %v1508 = vmul.f32 %v1431, 0.5
    %v1509 = vtanh.pop %v1508
    %v1510 = vadd.f32 %v1509, 1.0
    %v1511 = vmul.f32 %v1510, 0.5
    %v1512 = vmul.f32 %v1507, %v1502
    %v1513 = vadd.f32 %v1500, %v1512
    %v1514 = vtanh.pop %v1513
    %v1515 = vsub.f32 1.0, %v1511
    %v1516 = vmul.f32 %v1515, %v1514
    %v1517 = vmul.f32 %v1511, %v1171
    %v1518 = vadd.f32 %v1516, %v1517
    %1519 = vst [vmem:[#allocation2 + $0x2] sm:$0x1] %v1518
    %v1521 = vrot.slane %v1351, 2
    %v1522 = vsel %vm70, %v1521, 0
    %1524 = vmatprep.subr.mxu0 0.0
    %1525 = vmatpush1.msra.mxu0 0.0
    %1526 = vmatprep.subr.mxu0 0.0
    %1527 = vmatpush1.msra.mxu0 0.0
    %1528 = vmatprep.subr.mxu0 0.0
    %1529 = vmatpush1.msra.mxu0 0.0
    %1530 = vmatprep.subr.mxu0 0.0
    %1531 = vmatpush1.msra.mxu0 0.0
    %1532 = vmatprep.subr.mxu0 0.0
    %1533 = vmatpush1.msra.mxu0 0.0
    %1534 = vmatprep.subr.mxu0 0.0
    %1535 = vmatpush1.msra.mxu0 0.0
    %1536 = vmatprep.subr.mxu0 0.0
    %1537 = vmatpush1.msra.mxu0 0.0
    %1538 = vmatprep.subr.mxu0 0.0
    %1539 = vmatpush1.msra.mxu0 0.0
    %1540 = vmatprep.subr.mxu0 0.0
    %1541 = vmatpush1.msra.mxu0 0.0
    %1542 = vmatprep.subr.mxu0 0.0
    %1543 = vmatpush1.msra.mxu0 0.0
    %1544 = vmatprep.subr.mxu0 0.0
    %1545 = vmatpush1.msra.mxu0 0.0
    %1546 = vmatprep.subr.mxu0 0.0
    %1547 = vmatpush1.msra.mxu0 0.0
    %1548 = vmatprep.subr.mxu0 0.0
    %1549 = vmatpush1.msra.mxu0 0.0
    %1550 = vmatprep.subr.mxu0 0.0
    %1551 = vmatpush1.msra.mxu0 0.0
    %1552 = vmatprep.subr.mxu0 %v616
    %1553 = vmatpush1.msra.mxu0 %v615
    %1554 = vmatprep.subr.mxu0 %v612
    %1555 = vmatpush1.msra.mxu0 %v611
    %1556 = vmatprep.subr.mxu0 0.0
    %1557 = vmatpush2.msra.mxu0 0.0
    %1558 = vmatprep.subr.mxu0 0.0
    %1559 = vmatpush2.msra.mxu0 0.0
    %1560 = vmatprep.subr.mxu0 0.0
    %1561 = vmatpush2.msra.mxu0 0.0
    %1562 = vmatprep.subr.mxu0 0.0
    %1563 = vmatpush2.msra.mxu0 0.0
    %1564 = vmatprep.subr.mxu0 0.0
    %1565 = vmatpush2.msra.mxu0 0.0
    %1566 = vmatprep.subr.mxu0 0.0
    %1567 = vmatpush2.msra.mxu0 0.0
    %1568 = vmatprep.subr.mxu0 0.0
    %1569 = vmatpush2.msra.mxu0 0.0
    %1570 = vmatprep.subr.mxu0 0.0
    %1571 = vmatpush2.msra.mxu0 0.0
    %1572 = vmatprep.subr.mxu0 0.0
    %1573 = vmatpush2.msra.mxu0 0.0
    %1574 = vmatprep.subr.mxu0 0.0
    %1575 = vmatpush2.msra.mxu0 0.0
    %1576 = vmatprep.subr.mxu0 0.0
    %1577 = vmatpush2.msra.mxu0 0.0
    %1578 = vmatprep.subr.mxu0 0.0
    %1579 = vmatpush2.msra.mxu0 0.0
    %1580 = vmatprep.subr.mxu0 0.0
    %1581 = vmatpush2.msra.mxu0 0.0
    %1582 = vmatprep.subr.mxu0 0.0
    %1583 = vmatpush2.msra.mxu0 0.0
    %1584 = vmatprep.subr.mxu0 0.0
    %1585 = vmatpush2.msra.mxu0 0.0
    %1586 = vmatprep.subr.mxu0 0.0
    %1587 = vmatpush2.msra.mxu0 0.0
    %1588 = vmatprep.mubr.f32.mxu0 0.0
    %1589 = vmatmul.mubr.f32.gmra.mxu0 %v1522
    %v1590 = vpop.f32.mrf.mxu0
    %v1591 = vadd.f32 0.0, %v1590
    %v1592 = vpop.f32.mrf.mxu0
    %v1593 = vadd.f32 0.0, %v1592
    %1594 = vdwg.mxu0
    %1595 = vmatprep.subr.mxu0 0.0
    %1596 = vmatpush1.msra.mxu0 0.0
    %1597 = vmatprep.subr.mxu0 0.0
    %1598 = vmatpush1.msra.mxu0 0.0
    %1599 = vmatprep.subr.mxu0 0.0
    %1600 = vmatpush1.msra.mxu0 0.0
    %1601 = vmatprep.subr.mxu0 0.0
    %1602 = vmatpush1.msra.mxu0 0.0
    %1603 = vmatprep.subr.mxu0 0.0
    %1604 = vmatpush1.msra.mxu0 0.0
    %1605 = vmatprep.subr.mxu0 0.0
    %1606 = vmatpush1.msra.mxu0 0.0
    %1607 = vmatprep.subr.mxu0 0.0
    %1608 = vmatpush1.msra.mxu0 0.0
    %1609 = vmatprep.subr.mxu0 0.0
    %1610 = vmatpush1.msra.mxu0 0.0
    %1611 = vmatprep.subr.mxu0 0.0
    %1612 = vmatpush1.msra.mxu0 0.0
    %1613 = vmatprep.subr.mxu0 0.0
    %1614 = vmatpush1.msra.mxu0 0.0
    %1615 = vmatprep.subr.mxu0 0.0
    %1616 = vmatpush1.msra.mxu0 0.0
    %1617 = vmatprep.subr.mxu0 0.0
    %1618 = vmatpush1.msra.mxu0 0.0
    %1619 = vmatprep.subr.mxu0 0.0
    %1620 = vmatpush1.msra.mxu0 0.0
    %1621 = vmatprep.subr.mxu0 0.0
    %1622 = vmatpush1.msra.mxu0 0.0
    %1623 = vmatprep.subr.mxu0 %v618
    %1624 = vmatpush1.msra.mxu0 %v617
    %1625 = vmatprep.subr.mxu0 %v614
    %1626 = vmatpush1.msra.mxu0 %v613
    %1627 = vmatprep.subr.mxu0 0.0
    %1628 = vmatpush2.msra.mxu0 0.0
    %1629 = vmatprep.subr.mxu0 0.0
    %1630 = vmatpush2.msra.mxu0 0.0
    %1631 = vmatprep.subr.mxu0 0.0
    %1632 = vmatpush2.msra.mxu0 0.0
    %1633 = vmatprep.subr.mxu0 0.0
    %1634 = vmatpush2.msra.mxu0 0.0
    %1635 = vmatprep.subr.mxu0 0.0
    %1636 = vmatpush2.msra.mxu0 0.0
    %1637 = vmatprep.subr.mxu0 0.0
    %1638 = vmatpush2.msra.mxu0 0.0
    %1639 = vmatprep.subr.mxu0 0.0
    %1640 = vmatpush2.msra.mxu0 0.0
    %1641 = vmatprep.subr.mxu0 0.0
    %1642 = vmatpush2.msra.mxu0 0.0
    %1643 = vmatprep.subr.mxu0 0.0
    %1644 = vmatpush2.msra.mxu0 0.0
    %1645 = vmatprep.subr.mxu0 0.0
    %1646 = vmatpush2.msra.mxu0 0.0
    %1647 = vmatprep.subr.mxu0 0.0
    %1648 = vmatpush2.msra.mxu0 0.0
    %1649 = vmatprep.subr.mxu0 0.0
    %1650 = vmatpush2.msra.mxu0 0.0
    %1651 = vmatprep.subr.mxu0 0.0
    %1652 = vmatpush2.msra.mxu0 0.0
    %1653 = vmatprep.subr.mxu0 0.0
    %1654 = vmatpush2.msra.mxu0 0.0
    %1655 = vmatprep.subr.mxu0 0.0
    %1656 = vmatpush2.msra.mxu0 0.0
    %1657 = vmatprep.subr.mxu0 0.0
    %1658 = vmatpush2.msra.mxu0 0.0
    %1659 = vmatprep.mubr.f32.mxu0 0.0
    %1660 = vmatmul.mubr.f32.gmra.mxu0 %v1522
    %v1661 = vpop.f32.mrf.mxu0
    %v1662 = vadd.f32 0.0, %v1661
    %v1663 = vpop.f32.mrf.mxu0
    %v1664 = vadd.f32 0.0, %v1663
    %1665 = vdwg.mxu0
    %v1670 = vrot.slane %v1591, 5
    %v1671 = vrot.slane %v1593, 5
    %v1672 = vrot.slane %v1662, 5
    %v1673 = vrot.slane %v1664, 5
    %v1678 = vadd.f32 %v536, %v1670
    %v1679 = vadd.f32 %v538, %v1671
    %v1680 = vadd.f32 %v607, %v1672
    %v1681 = vadd.f32 %v609, %v1673
    %v1682 = vmul.f32 %v1678, 0.5
    %v1683 = vtanh.pop %v1682
    %v1684 = vadd.f32 %v1683, 1.0
    %v1685 = vmul.f32 %v1684, 0.5
    %v1686 = vmul.f32 %v1679, 0.5
    %v1687 = vtanh.pop %v1686
    %v1688 = vadd.f32 %v1687, 1.0
    %v1689 = vmul.f32 %v1688, 0.5
    %v1690 = vmul.f32 %v1685, %v1681
    %v1691 = vadd.f32 %v1680, %v1690
    %v1692 = vtanh.pop %v1691
    %v1693 = vsub.f32 1.0, %v1689
    %v1694 = vmul.f32 %v1693, %v1692
    %v1695 = vrot.slane %v1351, 7
    %v1697 = vmul.f32 %v1689, %v1695
    %v1698 = vadd.f32 %v1694, %v1697
    %v1700 = vrot.slane %v1518, 5
    %1701 = vrot.lane.b32.xlu0 %v1700, 16
    %v1702 = vpop.permute.xlu0 %1701
    %v1704 = vsel %vm70, %v1698, %v1702
    %v1706 = vrot.slane %v1704, 3
    %v1707 = vsel %vm268, %v1706, 0
    %1709 = vmatprep.subr.mxu0 0.0
    %1710 = vmatpush1.msra.mxu0 0.0
    %1711 = vmatprep.subr.mxu0 0.0
    %1712 = vmatpush1.msra.mxu0 0.0
    %1713 = vmatprep.subr.mxu0 0.0
    %1714 = vmatpush1.msra.mxu0 0.0
    %1715 = vmatprep.subr.mxu0 0.0
    %1716 = vmatpush1.msra.mxu0 0.0
    %1717 = vmatprep.subr.mxu0 0.0
    %1718 = vmatpush1.msra.mxu0 0.0
    %1719 = vmatprep.subr.mxu0 0.0
    %1720 = vmatpush1.msra.mxu0 0.0
    %1721 = vmatprep.subr.mxu0 0.0
    %1722 = vmatpush1.msra.mxu0 0.0
    %1723 = vmatprep.subr.mxu0 0.0
    %1724 = vmatpush1.msra.mxu0 0.0
    %1725 = vmatprep.subr.mxu0 0.0
    %1726 = vmatpush1.msra.mxu0 0.0
    %1727 = vmatprep.subr.mxu0 0.0
    %1728 = vmatpush1.msra.mxu0 0.0
    %1729 = vmatprep.subr.mxu0 0.0
    %1730 = vmatpush1.msra.mxu0 0.0
    %1731 = vmatprep.subr.mxu0 0.0
    %1732 = vmatpush1.msra.mxu0 0.0
    %1733 = vmatprep.subr.mxu0 %v632
    %1734 = vmatpush1.msra.mxu0 %v631
    %1735 = vmatprep.subr.mxu0 %v628
    %1736 = vmatpush1.msra.mxu0 %v627
    %1737 = vmatprep.subr.mxu0 %v624
    %1738 = vmatpush1.msra.mxu0 %v623
    %1739 = vmatprep.subr.mxu0 %v620
    %1740 = vmatpush1.msra.mxu0 %v619
    %1741 = vmatprep.subr.mxu0 0.0
    %1742 = vmatpush2.msra.mxu0 0.0
    %1743 = vmatprep.subr.mxu0 0.0
    %1744 = vmatpush2.msra.mxu0 0.0
    %1745 = vmatprep.subr.mxu0 0.0
    %1746 = vmatpush2.msra.mxu0 0.0
    %1747 = vmatprep.subr.mxu0 0.0
    %1748 = vmatpush2.msra.mxu0 0.0
    %1749 = vmatprep.subr.mxu0 0.0
    %1750 = vmatpush2.msra.mxu0 0.0
    %1751 = vmatprep.subr.mxu0 0.0
    %1752 = vmatpush2.msra.mxu0 0.0
    %1753 = vmatprep.subr.mxu0 0.0
    %1754 = vmatpush2.msra.mxu0 0.0
    %1755 = vmatprep.subr.mxu0 0.0
    %1756 = vmatpush2.msra.mxu0 0.0
    %1757 = vmatprep.subr.mxu0 0.0
    %1758 = vmatpush2.msra.mxu0 0.0
    %1759 = vmatprep.subr.mxu0 0.0
    %1760 = vmatpush2.msra.mxu0 0.0
    %1761 = vmatprep.subr.mxu0 0.0
    %1762 = vmatpush2.msra.mxu0 0.0
    %1763 = vmatprep.subr.mxu0 0.0
    %1764 = vmatpush2.msra.mxu0 0.0
    %1765 = vmatprep.subr.mxu0 0.0
    %1766 = vmatpush2.msra.mxu0 0.0
    %1767 = vmatprep.subr.mxu0 0.0
    %1768 = vmatpush2.msra.mxu0 0.0
    %1769 = vmatprep.subr.mxu0 0.0
    %1770 = vmatpush2.msra.mxu0 0.0
    %1771 = vmatprep.subr.mxu0 0.0
    %1772 = vmatpush2.msra.mxu0 0.0
    %1773 = vmatprep.mubr.f32.mxu0 0.0
    %1774 = vmatmul.mubr.f32.gmra.mxu0 %v1707
    %v1775 = vpop.f32.mrf.mxu0
    %v1776 = vadd.f32 %v654, %v1775
    %v1777 = vpop.f32.mrf.mxu0
    %v1778 = vadd.f32 %v658, %v1777
    %1779 = vdwg.mxu0
    %1780 = vmatprep.subr.mxu0 0.0
    %1781 = vmatpush1.msra.mxu0 0.0
    %1782 = vmatprep.subr.mxu0 0.0
    %1783 = vmatpush1.msra.mxu0 0.0
    %1784 = vmatprep.subr.mxu0 0.0
    %1785 = vmatpush1.msra.mxu0 0.0
    %1786 = vmatprep.subr.mxu0 0.0
    %1787 = vmatpush1.msra.mxu0 0.0
    %1788 = vmatprep.subr.mxu0 0.0
    %1789 = vmatpush1.msra.mxu0 0.0
    %1790 = vmatprep.subr.mxu0 0.0
    %1791 = vmatpush1.msra.mxu0 0.0
    %1792 = vmatprep.subr.mxu0 0.0
    %1793 = vmatpush1.msra.mxu0 0.0
    %1794 = vmatprep.subr.mxu0 0.0
    %1795 = vmatpush1.msra.mxu0 0.0
    %1796 = vmatprep.subr.mxu0 0.0
    %1797 = vmatpush1.msra.mxu0 0.0
    %1798 = vmatprep.subr.mxu0 0.0
    %1799 = vmatpush1.msra.mxu0 0.0
    %1800 = vmatprep.subr.mxu0 0.0
    %1801 = vmatpush1.msra.mxu0 0.0
    %1802 = vmatprep.subr.mxu0 0.0
    %1803 = vmatpush1.msra.mxu0 0.0
    %1804 = vmatprep.subr.mxu0 %v634
    %1805 = vmatpush1.msra.mxu0 %v633
    %1806 = vmatprep.subr.mxu0 %v630
    %1807 = vmatpush1.msra.mxu0 %v629
    %1808 = vmatprep.subr.mxu0 %v626
    %1809 = vmatpush1.msra.mxu0 %v625
    %1810 = vmatprep.subr.mxu0 %v622
    %1811 = vmatpush1.msra.mxu0 %v621
    %1812 = vmatprep.subr.mxu0 0.0
    %1813 = vmatpush2.msra.mxu0 0.0
    %1814 = vmatprep.subr.mxu0 0.0
    %1815 = vmatpush2.msra.mxu0 0.0
    %1816 = vmatprep.subr.mxu0 0.0
    %1817 = vmatpush2.msra.mxu0 0.0
    %1818 = vmatprep.subr.mxu0 0.0
    %1819 = vmatpush2.msra.mxu0 0.0
    %1820 = vmatprep.subr.mxu0 0.0
    %1821 = vmatpush2.msra.mxu0 0.0
    %1822 = vmatprep.subr.mxu0 0.0
    %1823 = vmatpush2.msra.mxu0 0.0
    %1824 = vmatprep.subr.mxu0 0.0
    %1825 = vmatpush2.msra.mxu0 0.0
    %1826 = vmatprep.subr.mxu0 0.0
    %1827 = vmatpush2.msra.mxu0 0.0
    %1828 = vmatprep.subr.mxu0 0.0
    %1829 = vmatpush2.msra.mxu0 0.0
    %1830 = vmatprep.subr.mxu0 0.0
    %1831 = vmatpush2.msra.mxu0 0.0
    %1832 = vmatprep.subr.mxu0 0.0
    %1833 = vmatpush2.msra.mxu0 0.0
    %1834 = vmatprep.subr.mxu0 0.0
    %1835 = vmatpush2.msra.mxu0 0.0
    %1836 = vmatprep.subr.mxu0 0.0
    %1837 = vmatpush2.msra.mxu0 0.0
    %1838 = vmatprep.subr.mxu0 0.0
    %1839 = vmatpush2.msra.mxu0 0.0
    %1840 = vmatprep.subr.mxu0 0.0
    %1841 = vmatpush2.msra.mxu0 0.0
    %1842 = vmatprep.subr.mxu0 0.0
    %1843 = vmatpush2.msra.mxu0 0.0
    %1844 = vmatprep.mubr.f32.mxu0 0.0
    %1845 = vmatmul.mubr.f32.gmra.mxu0 %v1707
    %v1846 = vpop.f32.mrf.mxu0
    %v1847 = vadd.f32 %v662, %v1846
    %v1848 = vpop.f32.mrf.mxu0
    %v1849 = vadd.f32 %v666, %v1848
    %1850 = vdwg.mxu0
    %v1851 = vmul.f32 %v1776, 0.5
    %v1852 = vtanh.pop %v1851
    %v1853 = vadd.f32 %v1852, 1.0
    %v1854 = vmul.f32 %v1853, 0.5
    %v1855 = vmul.f32 %v1778, 0.5
    %v1856 = vtanh.pop %v1855
    %v1857 = vadd.f32 %v1856, 1.0
    %v1858 = vmul.f32 %v1857, 0.5
    %v1859 = vmul.f32 %v1854, %v1849
    %v1860 = vadd.f32 %v1847, %v1859
    %v1861 = vtanh.pop %v1860
    %v1862 = vsub.f32 1.0, %v1858
    %v1863 = vmul.f32 %v1862, %v1861
    %v1864 = vmul.f32 %v1858, %v1518
    %v1865 = vadd.f32 %v1863, %v1864
    %1866 = vst [vmem:[#allocation2 + $0x3] sm:$0x1] %v1865
    %v1868 = vrot.slane %v1698, 3
    %v1869 = vsel %vm70, %v1868, 0
    %1871 = vmatprep.subr.mxu0 0.0
    %1872 = vmatpush1.msra.mxu0 0.0
    %1873 = vmatprep.subr.mxu0 0.0
    %1874 = vmatpush1.msra.mxu0 0.0
    %1875 = vmatprep.subr.mxu0 0.0
    %1876 = vmatpush1.msra.mxu0 0.0
    %1877 = vmatprep.subr.mxu0 0.0
    %1878 = vmatpush1.msra.mxu0 0.0
    %1879 = vmatprep.subr.mxu0 0.0
    %1880 = vmatpush1.msra.mxu0 0.0
    %1881 = vmatprep.subr.mxu0 0.0
    %1882 = vmatpush1.msra.mxu0 0.0
    %1883 = vmatprep.subr.mxu0 0.0
    %1884 = vmatpush1.msra.mxu0 0.0
    %1885 = vmatprep.subr.mxu0 0.0
    %1886 = vmatpush1.msra.mxu0 0.0
    %1887 = vmatprep.subr.mxu0 0.0
    %1888 = vmatpush1.msra.mxu0 0.0
    %1889 = vmatprep.subr.mxu0 0.0
    %1890 = vmatpush1.msra.mxu0 0.0
    %1891 = vmatprep.subr.mxu0 0.0
    %1892 = vmatpush1.msra.mxu0 0.0
    %1893 = vmatprep.subr.mxu0 0.0
    %1894 = vmatpush1.msra.mxu0 0.0
    %1895 = vmatprep.subr.mxu0 0.0
    %1896 = vmatpush1.msra.mxu0 0.0
    %1897 = vmatprep.subr.mxu0 0.0
    %1898 = vmatpush1.msra.mxu0 0.0
    %1899 = vmatprep.subr.mxu0 %v616
    %1900 = vmatpush1.msra.mxu0 %v615
    %1901 = vmatprep.subr.mxu0 %v612
    %1902 = vmatpush1.msra.mxu0 %v611
    %1903 = vmatprep.subr.mxu0 0.0
    %1904 = vmatpush2.msra.mxu0 0.0
    %1905 = vmatprep.subr.mxu0 0.0
    %1906 = vmatpush2.msra.mxu0 0.0
    %1907 = vmatprep.subr.mxu0 0.0
    %1908 = vmatpush2.msra.mxu0 0.0
    %1909 = vmatprep.subr.mxu0 0.0
    %1910 = vmatpush2.msra.mxu0 0.0
    %1911 = vmatprep.subr.mxu0 0.0
    %1912 = vmatpush2.msra.mxu0 0.0
    %1913 = vmatprep.subr.mxu0 0.0
    %1914 = vmatpush2.msra.mxu0 0.0
    %1915 = vmatprep.subr.mxu0 0.0
    %1916 = vmatpush2.msra.mxu0 0.0
    %1917 = vmatprep.subr.mxu0 0.0
    %1918 = vmatpush2.msra.mxu0 0.0
    %1919 = vmatprep.subr.mxu0 0.0
    %1920 = vmatpush2.msra.mxu0 0.0
    %1921 = vmatprep.subr.mxu0 0.0
    %1922 = vmatpush2.msra.mxu0 0.0
    %1923 = vmatprep.subr.mxu0 0.0
    %1924 = vmatpush2.msra.mxu0 0.0
    %1925 = vmatprep.subr.mxu0 0.0
    %1926 = vmatpush2.msra.mxu0 0.0
    %1927 = vmatprep.subr.mxu0 0.0
    %1928 = vmatpush2.msra.mxu0 0.0
    %1929 = vmatprep.subr.mxu0 0.0
    %1930 = vmatpush2.msra.mxu0 0.0
    %1931 = vmatprep.subr.mxu0 0.0
    %1932 = vmatpush2.msra.mxu0 0.0
    %1933 = vmatprep.subr.mxu0 0.0
    %1934 = vmatpush2.msra.mxu0 0.0
    %1935 = vmatprep.mubr.f32.mxu0 0.0
    %1936 = vmatmul.mubr.f32.gmra.mxu0 %v1869
    %v1937 = vpop.f32.mrf.mxu0
    %v1938 = vadd.f32 0.0, %v1937
    %v1939 = vpop.f32.mrf.mxu0
    %v1940 = vadd.f32 0.0, %v1939
    %1941 = vdwg.mxu0
    %1942 = vmatprep.subr.mxu0 0.0
    %1943 = vmatpush1.msra.mxu0 0.0
    %1944 = vmatprep.subr.mxu0 0.0
    %1945 = vmatpush1.msra.mxu0 0.0
    %1946 = vmatprep.subr.mxu0 0.0
    %1947 = vmatpush1.msra.mxu0 0.0
    %1948 = vmatprep.subr.mxu0 0.0
    %1949 = vmatpush1.msra.mxu0 0.0
    %1950 = vmatprep.subr.mxu0 0.0
    %1951 = vmatpush1.msra.mxu0 0.0
    %1952 = vmatprep.subr.mxu0 0.0
    %1953 = vmatpush1.msra.mxu0 0.0
    %1954 = vmatprep.subr.mxu0 0.0
    %1955 = vmatpush1.msra.mxu0 0.0
    %1956 = vmatprep.subr.mxu0 0.0
    %1957 = vmatpush1.msra.mxu0 0.0
    %1958 = vmatprep.subr.mxu0 0.0
    %1959 = vmatpush1.msra.mxu0 0.0
    %1960 = vmatprep.subr.mxu0 0.0
    %1961 = vmatpush1.msra.mxu0 0.0
    %1962 = vmatprep.subr.mxu0 0.0
    %1963 = vmatpush1.msra.mxu0 0.0
    %1964 = vmatprep.subr.mxu0 0.0
    %1965 = vmatpush1.msra.mxu0 0.0
    %1966 = vmatprep.subr.mxu0 0.0
    %1967 = vmatpush1.msra.mxu0 0.0
    %1968 = vmatprep.subr.mxu0 0.0
    %1969 = vmatpush1.msra.mxu0 0.0
    %1970 = vmatprep.subr.mxu0 %v618
    %1971 = vmatpush1.msra.mxu0 %v617
    %1972 = vmatprep.subr.mxu0 %v614
    %1973 = vmatpush1.msra.mxu0 %v613
    %1974 = vmatprep.subr.mxu0 0.0
    %1975 = vmatpush2.msra.mxu0 0.0
    %1976 = vmatprep.subr.mxu0 0.0
    %1977 = vmatpush2.msra.mxu0 0.0
    %1978 = vmatprep.subr.mxu0 0.0
    %1979 = vmatpush2.msra.mxu0 0.0
    %1980 = vmatprep.subr.mxu0 0.0
    %1981 = vmatpush2.msra.mxu0 0.0
    %1982 = vmatprep.subr.mxu0 0.0
    %1983 = vmatpush2.msra.mxu0 0.0
    %1984 = vmatprep.subr.mxu0 0.0
    %1985 = vmatpush2.msra.mxu0 0.0
    %1986 = vmatprep.subr.mxu0 0.0
    %1987 = vmatpush2.msra.mxu0 0.0
    %1988 = vmatprep.subr.mxu0 0.0
    %1989 = vmatpush2.msra.mxu0 0.0
    %1990 = vmatprep.subr.mxu0 0.0
    %1991 = vmatpush2.msra.mxu0 0.0
    %1992 = vmatprep.subr.mxu0 0.0
    %1993 = vmatpush2.msra.mxu0 0.0
    %1994 = vmatprep.subr.mxu0 0.0
    %1995 = vmatpush2.msra.mxu0 0.0
    %1996 = vmatprep.subr.mxu0 0.0
    %1997 = vmatpush2.msra.mxu0 0.0
    %1998 = vmatprep.subr.mxu0 0.0
    %1999 = vmatpush2.msra.mxu0 0.0
    %2000 = vmatprep.subr.mxu0 0.0
    %2001 = vmatpush2.msra.mxu0 0.0
    %2002 = vmatprep.subr.mxu0 0.0
    %2003 = vmatpush2.msra.mxu0 0.0
    %2004 = vmatprep.subr.mxu0 0.0
    %2005 = vmatpush2.msra.mxu0 0.0
    %2006 = vmatprep.mubr.f32.mxu0 0.0
    %2007 = vmatmul.mubr.f32.gmra.mxu0 %v1869
    %v2008 = vpop.f32.mrf.mxu0
    %v2009 = vadd.f32 0.0, %v2008
    %v2010 = vpop.f32.mrf.mxu0
    %v2011 = vadd.f32 0.0, %v2010
    %2012 = vdwg.mxu0
    %v2017 = vrot.slane %v1938, 4
    %v2018 = vrot.slane %v1940, 4
    %v2019 = vrot.slane %v2009, 4
    %v2020 = vrot.slane %v2011, 4
    %v2025 = vadd.f32 %v536, %v2017
    %v2026 = vadd.f32 %v538, %v2018
    %v2027 = vadd.f32 %v607, %v2019
    %v2028 = vadd.f32 %v609, %v2020
    %v2029 = vmul.f32 %v2025, 0.5
    %v2030 = vtanh.pop %v2029
    %v2031 = vadd.f32 %v2030, 1.0
    %v2032 = vmul.f32 %v2031, 0.5
    %v2033 = vmul.f32 %v2026, 0.5
    %v2034 = vtanh.pop %v2033
    %v2035 = vadd.f32 %v2034, 1.0
    %v2036 = vmul.f32 %v2035, 0.5
    %v2037 = vmul.f32 %v2032, %v2028
    %v2038 = vadd.f32 %v2027, %v2037
    %v2039 = vtanh.pop %v2038
    %v2040 = vsub.f32 1.0, %v2036
    %v2041 = vmul.f32 %v2040, %v2039
    %v2042 = vrot.slane %v1698, 7
    %v2044 = vmul.f32 %v2036, %v2042
    %v2045 = vadd.f32 %v2041, %v2044
    %v2047 = vrot.slane %v1865, 4
    %2048 = vrot.lane.b32.xlu0 %v2047, 16
    %v2049 = vpop.permute.xlu0 %2048
    %v2051 = vsel %vm70, %v2045, %v2049
    %v2053 = vrot.slane %v2051, 4
    %v2054 = vsel %vm268, %v2053, 0
    %2056 = vmatprep.subr.mxu0 0.0
    %2057 = vmatpush1.msra.mxu0 0.0
    %2058 = vmatprep.subr.mxu0 0.0
    %2059 = vmatpush1.msra.mxu0 0.0
    %2060 = vmatprep.subr.mxu0 0.0
    %2061 = vmatpush1.msra.mxu0 0.0
    %2062 = vmatprep.subr.mxu0 0.0
    %2063 = vmatpush1.msra.mxu0 0.0
    %2064 = vmatprep.subr.mxu0 0.0
    %2065 = vmatpush1.msra.mxu0 0.0
    %2066 = vmatprep.subr.mxu0 0.0
    %2067 = vmatpush1.msra.mxu0 0.0
    %2068 = vmatprep.subr.mxu0 0.0
    %2069 = vmatpush1.msra.mxu0 0.0
    %2070 = vmatprep.subr.mxu0 0.0
    %2071 = vmatpush1.msra.mxu0 0.0
    %2072 = vmatprep.subr.mxu0 0.0
    %2073 = vmatpush1.msra.mxu0 0.0
    %2074 = vmatprep.subr.mxu0 0.0
    %2075 = vmatpush1.msra.mxu0 0.0
    %2076 = vmatprep.subr.mxu0 0.0
    %2077 = vmatpush1.msra.mxu0 0.0
    %2078 = vmatprep.subr.mxu0 0.0
    %2079 = vmatpush1.msra.mxu0 0.0
    %2080 = vmatprep.subr.mxu0 %v632
    %2081 = vmatpush1.msra.mxu0 %v631
    %2082 = vmatprep.subr.mxu0 %v628
    %2083 = vmatpush1.msra.mxu0 %v627
    %2084 = vmatprep.subr.mxu0 %v624
    %2085 = vmatpush1.msra.mxu0 %v623
    %2086 = vmatprep.subr.mxu0 %v620
    %2087 = vmatpush1.msra.mxu0 %v619
    %2088 = vmatprep.subr.mxu0 0.0
    %2089 = vmatpush2.msra.mxu0 0.0
    %2090 = vmatprep.subr.mxu0 0.0
    %2091 = vmatpush2.msra.mxu0 0.0
    %2092 = vmatprep.subr.mxu0 0.0
    %2093 = vmatpush2.msra.mxu0 0.0
    %2094 = vmatprep.subr.mxu0 0.0
    %2095 = vmatpush2.msra.mxu0 0.0
    %2096 = vmatprep.subr.mxu0 0.0
    %2097 = vmatpush2.msra.mxu0 0.0
    %2098 = vmatprep.subr.mxu0 0.0
    %2099 = vmatpush2.msra.mxu0 0.0
    %2100 = vmatprep.subr.mxu0 0.0
    %2101 = vmatpush2.msra.mxu0 0.0
    %2102 = vmatprep.subr.mxu0 0.0
    %2103 = vmatpush2.msra.mxu0 0.0
    %2104 = vmatprep.subr.mxu0 0.0
    %2105 = vmatpush2.msra.mxu0 0.0
    %2106 = vmatprep.subr.mxu0 0.0
    %2107 = vmatpush2.msra.mxu0 0.0
    %2108 = vmatprep.subr.mxu0 0.0
    %2109 = vmatpush2.msra.mxu0 0.0
    %2110 = vmatprep.subr.mxu0 0.0
    %2111 = vmatpush2.msra.mxu0 0.0
    %2112 = vmatprep.subr.mxu0 0.0
    %2113 = vmatpush2.msra.mxu0 0.0
    %2114 = vmatprep.subr.mxu0 0.0
    %2115 = vmatpush2.msra.mxu0 0.0
    %2116 = vmatprep.subr.mxu0 0.0
    %2117 = vmatpush2.msra.mxu0 0.0
    %2118 = vmatprep.subr.mxu0 0.0
    %2119 = vmatpush2.msra.mxu0 0.0
    %2120 = vmatprep.mubr.f32.mxu0 0.0
    %2121 = vmatmul.mubr.f32.gmra.mxu0 %v2054
    %v2122 = vpop.f32.mrf.mxu0
    %v2123 = vadd.f32 %v654, %v2122
    %v2124 = vpop.f32.mrf.mxu0
    %v2125 = vadd.f32 %v658, %v2124
    %2126 = vdwg.mxu0
    %2127 = vmatprep.subr.mxu0 0.0
    %2128 = vmatpush1.msra.mxu0 0.0
    %2129 = vmatprep.subr.mxu0 0.0
    %2130 = vmatpush1.msra.mxu0 0.0
    %2131 = vmatprep.subr.mxu0 0.0
    %2132 = vmatpush1.msra.mxu0 0.0
    %2133 = vmatprep.subr.mxu0 0.0
    %2134 = vmatpush1.msra.mxu0 0.0
    %2135 = vmatprep.subr.mxu0 0.0
    %2136 = vmatpush1.msra.mxu0 0.0
    %2137 = vmatprep.subr.mxu0 0.0
    %2138 = vmatpush1.msra.mxu0 0.0
    %2139 = vmatprep.subr.mxu0 0.0
    %2140 = vmatpush1.msra.mxu0 0.0
    %2141 = vmatprep.subr.mxu0 0.0
    %2142 = vmatpush1.msra.mxu0 0.0
    %2143 = vmatprep.subr.mxu0 0.0
    %2144 = vmatpush1.msra.mxu0 0.0
    %2145 = vmatprep.subr.mxu0 0.0
    %2146 = vmatpush1.msra.mxu0 0.0
    %2147 = vmatprep.subr.mxu0 0.0
    %2148 = vmatpush1.msra.mxu0 0.0
    %2149 = vmatprep.subr.mxu0 0.0
    %2150 = vmatpush1.msra.mxu0 0.0
    %2151 = vmatprep.subr.mxu0 %v634
    %2152 = vmatpush1.msra.mxu0 %v633
    %2153 = vmatprep.subr.mxu0 %v630
    %2154 = vmatpush1.msra.mxu0 %v629
    %2155 = vmatprep.subr.mxu0 %v626
    %2156 = vmatpush1.msra.mxu0 %v625
    %2157 = vmatprep.subr.mxu0 %v622
    %2158 = vmatpush1.msra.mxu0 %v621
    %2159 = vmatprep.subr.mxu0 0.0
    %2160 = vmatpush2.msra.mxu0 0.0
    %2161 = vmatprep.subr.mxu0 0.0
    %2162 = vmatpush2.msra.mxu0 0.0
    %2163 = vmatprep.subr.mxu0 0.0
    %2164 = vmatpush2.msra.mxu0 0.0
    %2165 = vmatprep.subr.mxu0 0.0
    %2166 = vmatpush2.msra.mxu0 0.0
    %2167 = vmatprep.subr.mxu0 0.0
    %2168 = vmatpush2.msra.mxu0 0.0
    %2169 = vmatprep.subr.mxu0 0.0
    %2170 = vmatpush2.msra.mxu0 0.0
    %2171 = vmatprep.subr.mxu0 0.0
    %2172 = vmatpush2.msra.mxu0 0.0
    %2173 = vmatprep.subr.mxu0 0.0
    %2174 = vmatpush2.msra.mxu0 0.0
    %2175 = vmatprep.subr.mxu0 0.0
    %2176 = vmatpush2.msra.mxu0 0.0
    %2177 = vmatprep.subr.mxu0 0.0
    %2178 = vmatpush2.msra.mxu0 0.0
    %2179 = vmatprep.subr.mxu0 0.0
    %2180 = vmatpush2.msra.mxu0 0.0
    %2181 = vmatprep.subr.mxu0 0.0
    %2182 = vmatpush2.msra.mxu0 0.0
    %2183 = vmatprep.subr.mxu0 0.0
    %2184 = vmatpush2.msra.mxu0 0.0
    %2185 = vmatprep.subr.mxu0 0.0
    %2186 = vmatpush2.msra.mxu0 0.0
    %2187 = vmatprep.subr.mxu0 0.0
    %2188 = vmatpush2.msra.mxu0 0.0
    %2189 = vmatprep.subr.mxu0 0.0
    %2190 = vmatpush2.msra.mxu0 0.0
    %2191 = vmatprep.mubr.f32.mxu0 0.0
    %2192 = vmatmul.mubr.f32.gmra.mxu0 %v2054
    %v2193 = vpop.f32.mrf.mxu0
    %v2194 = vadd.f32 %v662, %v2193
    %v2195 = vpop.f32.mrf.mxu0
    %v2196 = vadd.f32 %v666, %v2195
    %2197 = vdwg.mxu0
    %v2198 = vmul.f32 %v2123, 0.5
    %v2199 = vtanh.pop %v2198
    %v2200 = vadd.f32 %v2199, 1.0
    %v2201 = vmul.f32 %v2200, 0.5
    %v2202 = vmul.f32 %v2125, 0.5
    %v2203 = vtanh.pop %v2202
    %v2204 = vadd.f32 %v2203, 1.0
    %v2205 = vmul.f32 %v2204, 0.5
    %v2206 = vmul.f32 %v2201, %v2196
    %v2207 = vadd.f32 %v2194, %v2206
    %v2208 = vtanh.pop %v2207
    %v2209 = vsub.f32 1.0, %v2205
    %v2210 = vmul.f32 %v2209, %v2208
    %v2211 = vmul.f32 %v2205, %v1865
    %v2212 = vadd.f32 %v2210, %v2211
    %2213 = vst [vmem:[#allocation2 + $0x4] sm:$0x1] %v2212
    %v2215 = vrot.slane %v2045, 4
    %v2216 = vsel %vm70, %v2215, 0
    %2218 = vmatprep.subr.mxu0 0.0
    %2219 = vmatpush1.msra.mxu0 0.0
    %2220 = vmatprep.subr.mxu0 0.0
    %2221 = vmatpush1.msra.mxu0 0.0
    %2222 = vmatprep.subr.mxu0 0.0
    %2223 = vmatpush1.msra.mxu0 0.0
    %2224 = vmatprep.subr.mxu0 0.0
    %2225 = vmatpush1.msra.mxu0 0.0
    %2226 = vmatprep.subr.mxu0 0.0
    %2227 = vmatpush1.msra.mxu0 0.0
    %2228 = vmatprep.subr.mxu0 0.0
    %2229 = vmatpush1.msra.mxu0 0.0
    %2230 = vmatprep.subr.mxu0 0.0
    %2231 = vmatpush1.msra.mxu0 0.0
    %2232 = vmatprep.subr.mxu0 0.0
    %2233 = vmatpush1.msra.mxu0 0.0
    %2234 = vmatprep.subr.mxu0 0.0
    %2235 = vmatpush1.msra.mxu0 0.0
    %2236 = vmatprep.subr.mxu0 0.0
    %2237 = vmatpush1.msra.mxu0 0.0
    %2238 = vmatprep.subr.mxu0 0.0
    %2239 = vmatpush1.msra.mxu0 0.0
    %2240 = vmatprep.subr.mxu0 0.0
    %2241 = vmatpush1.msra.mxu0 0.0
    %2242 = vmatprep.subr.mxu0 0.0
    %2243 = vmatpush1.msra.mxu0 0.0
    %2244 = vmatprep.subr.mxu0 0.0
    %2245 = vmatpush1.msra.mxu0 0.0
    %2246 = vmatprep.subr.mxu0 %v616
    %2247 = vmatpush1.msra.mxu0 %v615
    %2248 = vmatprep.subr.mxu0 %v612
    %2249 = vmatpush1.msra.mxu0 %v611
    %2250 = vmatprep.subr.mxu0 0.0
    %2251 = vmatpush2.msra.mxu0 0.0
    %2252 = vmatprep.subr.mxu0 0.0
    %2253 = vmatpush2.msra.mxu0 0.0
    %2254 = vmatprep.subr.mxu0 0.0
    %2255 = vmatpush2.msra.mxu0 0.0
    %2256 = vmatprep.subr.mxu0 0.0
    %2257 = vmatpush2.msra.mxu0 0.0
    %2258 = vmatprep.subr.mxu0 0.0
    %2259 = vmatpush2.msra.mxu0 0.0
    %2260 = vmatprep.subr.mxu0 0.0
    %2261 = vmatpush2.msra.mxu0 0.0
    %2262 = vmatprep.subr.mxu0 0.0
    %2263 = vmatpush2.msra.mxu0 0.0
    %2264 = vmatprep.subr.mxu0 0.0
    %2265 = vmatpush2.msra.mxu0 0.0
    %2266 = vmatprep.subr.mxu0 0.0
    %2267 = vmatpush2.msra.mxu0 0.0
    %2268 = vmatprep.subr.mxu0 0.0
    %2269 = vmatpush2.msra.mxu0 0.0
    %2270 = vmatprep.subr.mxu0 0.0
    %2271 = vmatpush2.msra.mxu0 0.0
    %2272 = vmatprep.subr.mxu0 0.0
    %2273 = vmatpush2.msra.mxu0 0.0
    %2274 = vmatprep.subr.mxu0 0.0
    %2275 = vmatpush2.msra.mxu0 0.0
    %2276 = vmatprep.subr.mxu0 0.0
    %2277 = vmatpush2.msra.mxu0 0.0
    %2278 = vmatprep.subr.mxu0 0.0
    %2279 = vmatpush2.msra.mxu0 0.0
    %2280 = vmatprep.subr.mxu0 0.0
    %2281 = vmatpush2.msra.mxu0 0.0
    %2282 = vmatprep.mubr.f32.mxu0 0.0
    %2283 = vmatmul.mubr.f32.gmra.mxu0 %v2216
    %v2284 = vpop.f32.mrf.mxu0
    %v2285 = vadd.f32 0.0, %v2284
    %v2286 = vpop.f32.mrf.mxu0
    %v2287 = vadd.f32 0.0, %v2286
    %2288 = vdwg.mxu0
    %2289 = vmatprep.subr.mxu0 0.0
    %2290 = vmatpush1.msra.mxu0 0.0
    %2291 = vmatprep.subr.mxu0 0.0
    %2292 = vmatpush1.msra.mxu0 0.0
    %2293 = vmatprep.subr.mxu0 0.0
    %2294 = vmatpush1.msra.mxu0 0.0
    %2295 = vmatprep.subr.mxu0 0.0
    %2296 = vmatpush1.msra.mxu0 0.0
    %2297 = vmatprep.subr.mxu0 0.0
    %2298 = vmatpush1.msra.mxu0 0.0
    %2299 = vmatprep.subr.mxu0 0.0
    %2300 = vmatpush1.msra.mxu0 0.0
    %2301 = vmatprep.subr.mxu0 0.0
    %2302 = vmatpush1.msra.mxu0 0.0
    %2303 = vmatprep.subr.mxu0 0.0
    %2304 = vmatpush1.msra.mxu0 0.0
    %2305 = vmatprep.subr.mxu0 0.0
    %2306 = vmatpush1.msra.mxu0 0.0
    %2307 = vmatprep.subr.mxu0 0.0
    %2308 = vmatpush1.msra.mxu0 0.0
    %2309 = vmatprep.subr.mxu0 0.0
    %2310 = vmatpush1.msra.mxu0 0.0
    %2311 = vmatprep.subr.mxu0 0.0
    %2312 = vmatpush1.msra.mxu0 0.0
    %2313 = vmatprep.subr.mxu0 0.0
    %2314 = vmatpush1.msra.mxu0 0.0
    %2315 = vmatprep.subr.mxu0 0.0
    %2316 = vmatpush1.msra.mxu0 0.0
    %2317 = vmatprep.subr.mxu0 %v618
    %2318 = vmatpush1.msra.mxu0 %v617
    %2319 = vmatprep.subr.mxu0 %v614
    %2320 = vmatpush1.msra.mxu0 %v613
    %2321 = vmatprep.subr.mxu0 0.0
    %2322 = vmatpush2.msra.mxu0 0.0
    %2323 = vmatprep.subr.mxu0 0.0
    %2324 = vmatpush2.msra.mxu0 0.0
    %2325 = vmatprep.subr.mxu0 0.0
    %2326 = vmatpush2.msra.mxu0 0.0
    %2327 = vmatprep.subr.mxu0 0.0
    %2328 = vmatpush2.msra.mxu0 0.0
    %2329 = vmatprep.subr.mxu0 0.0
    %2330 = vmatpush2.msra.mxu0 0.0
    %2331 = vmatprep.subr.mxu0 0.0
    %2332 = vmatpush2.msra.mxu0 0.0
    %2333 = vmatprep.subr.mxu0 0.0
    %2334 = vmatpush2.msra.mxu0 0.0
    %2335 = vmatprep.subr.mxu0 0.0
    %2336 = vmatpush2.msra.mxu0 0.0
    %2337 = vmatprep.subr.mxu0 0.0
    %2338 = vmatpush2.msra.mxu0 0.0
    %2339 = vmatprep.subr.mxu0 0.0
    %2340 = vmatpush2.msra.mxu0 0.0
    %2341 = vmatprep.subr.mxu0 0.0
    %2342 = vmatpush2.msra.mxu0 0.0
    %2343 = vmatprep.subr.mxu0 0.0
    %2344 = vmatpush2.msra.mxu0 0.0
    %2345 = vmatprep.subr.mxu0 0.0
    %2346 = vmatpush2.msra.mxu0 0.0
    %2347 = vmatprep.subr.mxu0 0.0
    %2348 = vmatpush2.msra.mxu0 0.0
    %2349 = vmatprep.subr.mxu0 0.0
    %2350 = vmatpush2.msra.mxu0 0.0
    %2351 = vmatprep.subr.mxu0 0.0
    %2352 = vmatpush2.msra.mxu0 0.0
    %2353 = vmatprep.mubr.f32.mxu0 0.0
    %2354 = vmatmul.mubr.f32.gmra.mxu0 %v2216
    %v2355 = vpop.f32.mrf.mxu0
    %v2356 = vadd.f32 0.0, %v2355
    %v2357 = vpop.f32.mrf.mxu0
    %v2358 = vadd.f32 0.0, %v2357
    %2359 = vdwg.mxu0
    %v2364 = vrot.slane %v2285, 3
    %v2365 = vrot.slane %v2287, 3
    %v2366 = vrot.slane %v2356, 3
    %v2367 = vrot.slane %v2358, 3
    %v2372 = vadd.f32 %v536, %v2364
    %v2373 = vadd.f32 %v538, %v2365
    %v2374 = vadd.f32 %v607, %v2366
    %v2375 = vadd.f32 %v609, %v2367
    %v2376 = vmul.f32 %v2372, 0.5
    %v2377 = vtanh.pop %v2376
    %v2378 = vadd.f32 %v2377, 1.0
    %v2379 = vmul.f32 %v2378, 0.5
    %v2380 = vmul.f32 %v2373, 0.5
    %v2381 = vtanh.pop %v2380
    %v2382 = vadd.f32 %v2381, 1.0
    %v2383 = vmul.f32 %v2382, 0.5
    %v2384 = vmul.f32 %v2379, %v2375
    %v2385 = vadd.f32 %v2374, %v2384
    %v2386 = vtanh.pop %v2385
    %v2387 = vsub.f32 1.0, %v2383
    %v2388 = vmul.f32 %v2387, %v2386
    %v2389 = vrot.slane %v2045, 7
    %v2391 = vmul.f32 %v2383, %v2389
    %v2392 = vadd.f32 %v2388, %v2391
    %v2394 = vrot.slane %v2212, 3
    %2395 = vrot.lane.b32.xlu0 %v2394, 16
    %v2396 = vpop.permute.xlu0 %2395
    %v2398 = vsel %vm70, %v2392, %v2396
    %v2400 = vrot.slane %v2398, 5
    %v2401 = vsel %vm268, %v2400, 0
    %2403 = vmatprep.subr.mxu0 0.0
    %2404 = vmatpush1.msra.mxu0 0.0
    %2405 = vmatprep.subr.mxu0 0.0
    %2406 = vmatpush1.msra.mxu0 0.0
    %2407 = vmatprep.subr.mxu0 0.0
    %2408 = vmatpush1.msra.mxu0 0.0
    %2409 = vmatprep.subr.mxu0 0.0
    %2410 = vmatpush1.msra.mxu0 0.0
    %2411 = vmatprep.subr.mxu0 0.0
    %2412 = vmatpush1.msra.mxu0 0.0
    %2413 = vmatprep.subr.mxu0 0.0
    %2414 = vmatpush1.msra.mxu0 0.0
    %2415 = vmatprep.subr.mxu0 0.0
    %2416 = vmatpush1.msra.mxu0 0.0
    %2417 = vmatprep.subr.mxu0 0.0
    %2418 = vmatpush1.msra.mxu0 0.0
    %2419 = vmatprep.subr.mxu0 0.0
    %2420 = vmatpush1.msra.mxu0 0.0
    %2421 = vmatprep.subr.mxu0 0.0
    %2422 = vmatpush1.msra.mxu0 0.0
    %2423 = vmatprep.subr.mxu0 0.0
    %2424 = vmatpush1.msra.mxu0 0.0
    %2425 = vmatprep.subr.mxu0 0.0
    %2426 = vmatpush1.msra.mxu0 0.0
    %2427 = vmatprep.subr.mxu0 %v632
    %2428 = vmatpush1.msra.mxu0 %v631
    %2429 = vmatprep.subr.mxu0 %v628
    %2430 = vmatpush1.msra.mxu0 %v627
    %2431 = vmatprep.subr.mxu0 %v624
    %2432 = vmatpush1.msra.mxu0 %v623
    %2433 = vmatprep.subr.mxu0 %v620
    %2434 = vmatpush1.msra.mxu0 %v619
    %2435 = vmatprep.subr.mxu0 0.0
    %2436 = vmatpush2.msra.mxu0 0.0
    %2437 = vmatprep.subr.mxu0 0.0
    %2438 = vmatpush2.msra.mxu0 0.0
    %2439 = vmatprep.subr.mxu0 0.0
    %2440 = vmatpush2.msra.mxu0 0.0
    %2441 = vmatprep.subr.mxu0 0.0
    %2442 = vmatpush2.msra.mxu0 0.0
    %2443 = vmatprep.subr.mxu0 0.0
    %2444 = vmatpush2.msra.mxu0 0.0
    %2445 = vmatprep.subr.mxu0 0.0
    %2446 = vmatpush2.msra.mxu0 0.0
    %2447 = vmatprep.subr.mxu0 0.0
    %2448 = vmatpush2.msra.mxu0 0.0
    %2449 = vmatprep.subr.mxu0 0.0
    %2450 = vmatpush2.msra.mxu0 0.0
    %2451 = vmatprep.subr.mxu0 0.0
    %2452 = vmatpush2.msra.mxu0 0.0
    %2453 = vmatprep.subr.mxu0 0.0
    %2454 = vmatpush2.msra.mxu0 0.0
    %2455 = vmatprep.subr.mxu0 0.0
    %2456 = vmatpush2.msra.mxu0 0.0
    %2457 = vmatprep.subr.mxu0 0.0
    %2458 = vmatpush2.msra.mxu0 0.0
    %2459 = vmatprep.subr.mxu0 0.0
    %2460 = vmatpush2.msra.mxu0 0.0
    %2461 = vmatprep.subr.mxu0 0.0
    %2462 = vmatpush2.msra.mxu0 0.0
    %2463 = vmatprep.subr.mxu0 0.0
    %2464 = vmatpush2.msra.mxu0 0.0
    %2465 = vmatprep.subr.mxu0 0.0
    %2466 = vmatpush2.msra.mxu0 0.0
    %2467 = vmatprep.mubr.f32.mxu0 0.0
    %2468 = vmatmul.mubr.f32.gmra.mxu0 %v2401
    %v2469 = vpop.f32.mrf.mxu0
    %v2470 = vadd.f32 %v654, %v2469
    %v2471 = vpop.f32.mrf.mxu0
    %v2472 = vadd.f32 %v658, %v2471
    %2473 = vdwg.mxu0
    %2474 = vmatprep.subr.mxu0 0.0
    %2475 = vmatpush1.msra.mxu0 0.0
    %2476 = vmatprep.subr.mxu0 0.0
    %2477 = vmatpush1.msra.mxu0 0.0
    %2478 = vmatprep.subr.mxu0 0.0
    %2479 = vmatpush1.msra.mxu0 0.0
    %2480 = vmatprep.subr.mxu0 0.0
    %2481 = vmatpush1.msra.mxu0 0.0
    %2482 = vmatprep.subr.mxu0 0.0
    %2483 = vmatpush1.msra.mxu0 0.0
    %2484 = vmatprep.subr.mxu0 0.0
    %2485 = vmatpush1.msra.mxu0 0.0
    %2486 = vmatprep.subr.mxu0 0.0
    %2487 = vmatpush1.msra.mxu0 0.0
    %2488 = vmatprep.subr.mxu0 0.0
    %2489 = vmatpush1.msra.mxu0 0.0
    %2490 = vmatprep.subr.mxu0 0.0
    %2491 = vmatpush1.msra.mxu0 0.0
    %2492 = vmatprep.subr.mxu0 0.0
    %2493 = vmatpush1.msra.mxu0 0.0
    %2494 = vmatprep.subr.mxu0 0.0
    %2495 = vmatpush1.msra.mxu0 0.0
    %2496 = vmatprep.subr.mxu0 0.0
    %2497 = vmatpush1.msra.mxu0 0.0
    %2498 = vmatprep.subr.mxu0 %v634
    %2499 = vmatpush1.msra.mxu0 %v633
    %2500 = vmatprep.subr.mxu0 %v630
    %2501 = vmatpush1.msra.mxu0 %v629
    %2502 = vmatprep.subr.mxu0 %v626
    %2503 = vmatpush1.msra.mxu0 %v625
    %2504 = vmatprep.subr.mxu0 %v622
    %2505 = vmatpush1.msra.mxu0 %v621
    %2506 = vmatprep.subr.mxu0 0.0
    %2507 = vmatpush2.msra.mxu0 0.0
    %2508 = vmatprep.subr.mxu0 0.0
    %2509 = vmatpush2.msra.mxu0 0.0
    %2510 = vmatprep.subr.mxu0 0.0
    %2511 = vmatpush2.msra.mxu0 0.0
    %2512 = vmatprep.subr.mxu0 0.0
    %2513 = vmatpush2.msra.mxu0 0.0
    %2514 = vmatprep.subr.mxu0 0.0
    %2515 = vmatpush2.msra.mxu0 0.0
    %2516 = vmatprep.subr.mxu0 0.0
    %2517 = vmatpush2.msra.mxu0 0.0
    %2518 = vmatprep.subr.mxu0 0.0
    %2519 = vmatpush2.msra.mxu0 0.0
    %2520 = vmatprep.subr.mxu0 0.0
    %2521 = vmatpush2.msra.mxu0 0.0
    %2522 = vmatprep.subr.mxu0 0.0
    %2523 = vmatpush2.msra.mxu0 0.0
    %2524 = vmatprep.subr.mxu0 0.0
    %2525 = vmatpush2.msra.mxu0 0.0
    %2526 = vmatprep.subr.mxu0 0.0
    %2527 = vmatpush2.msra.mxu0 0.0
    %2528 = vmatprep.subr.mxu0 0.0
    %2529 = vmatpush2.msra.mxu0 0.0
    %2530 = vmatprep.subr.mxu0 0.0
    %2531 = vmatpush2.msra.mxu0 0.0
    %2532 = vmatprep.subr.mxu0 0.0
    %2533 = vmatpush2.msra.mxu0 0.0
    %2534 = vmatprep.subr.mxu0 0.0
    %2535 = vmatpush2.msra.mxu0 0.0
    %2536 = vmatprep.subr.mxu0 0.0
    %2537 = vmatpush2.msra.mxu0 0.0
    %2538 = vmatprep.mubr.f32.mxu0 0.0
    %2539 = vmatmul.mubr.f32.gmra.mxu0 %v2401
    %v2540 = vpop.f32.mrf.mxu0
    %v2541 = vadd.f32 %v662, %v2540
    %v2542 = vpop.f32.mrf.mxu0
    %v2543 = vadd.f32 %v666, %v2542
    %2544 = vdwg.mxu0
    %v2545 = vmul.f32 %v2470, 0.5
    %v2546 = vtanh.pop %v2545
    %v2547 = vadd.f32 %v2546, 1.0
    %v2548 = vmul.f32 %v2547, 0.5
    %v2549 = vmul.f32 %v2472, 0.5
    %v2550 = vtanh.pop %v2549
    %v2551 = vadd.f32 %v2550, 1.0
    %v2552 = vmul.f32 %v2551, 0.5
    %v2553 = vmul.f32 %v2548, %v2543
    %v2554 = vadd.f32 %v2541, %v2553
    %v2555 = vtanh.pop %v2554
    %v2556 = vsub.f32 1.0, %v2552
    %v2557 = vmul.f32 %v2556, %v2555
    %v2558 = vmul.f32 %v2552, %v2212
    %v2559 = vadd.f32 %v2557, %v2558
    %2560 = vst [vmem:[#allocation2 + $0x5] sm:$0x1] %v2559
    %v2562 = vrot.slane %v2392, 5
    %v2563 = vsel %vm70, %v2562, 0
    %2565 = vmatprep.subr.mxu0 0.0
    %2566 = vmatpush1.msra.mxu0 0.0
    %2567 = vmatprep.subr.mxu0 0.0
    %2568 = vmatpush1.msra.mxu0 0.0
    %2569 = vmatprep.subr.mxu0 0.0
    %2570 = vmatpush1.msra.mxu0 0.0
    %2571 = vmatprep.subr.mxu0 0.0
    %2572 = vmatpush1.msra.mxu0 0.0
    %2573 = vmatprep.subr.mxu0 0.0
    %2574 = vmatpush1.msra.mxu0 0.0
    %2575 = vmatprep.subr.mxu0 0.0
    %2576 = vmatpush1.msra.mxu0 0.0
    %2577 = vmatprep.subr.mxu0 0.0
    %2578 = vmatpush1.msra.mxu0 0.0
    %2579 = vmatprep.subr.mxu0 0.0
    %2580 = vmatpush1.msra.mxu0 0.0
    %2581 = vmatprep.subr.mxu0 0.0
    %2582 = vmatpush1.msra.mxu0 0.0
    %2583 = vmatprep.subr.mxu0 0.0
    %2584 = vmatpush1.msra.mxu0 0.0
    %2585 = vmatprep.subr.mxu0 0.0
    %2586 = vmatpush1.msra.mxu0 0.0
    %2587 = vmatprep.subr.mxu0 0.0
    %2588 = vmatpush1.msra.mxu0 0.0
    %2589 = vmatprep.subr.mxu0 0.0
    %2590 = vmatpush1.msra.mxu0 0.0
    %2591 = vmatprep.subr.mxu0 0.0
    %2592 = vmatpush1.msra.mxu0 0.0
    %2593 = vmatprep.subr.mxu0 %v616
    %2594 = vmatpush1.msra.mxu0 %v615
    %2595 = vmatprep.subr.mxu0 %v612
    %2596 = vmatpush1.msra.mxu0 %v611
    %2597 = vmatprep.subr.mxu0 0.0
    %2598 = vmatpush2.msra.mxu0 0.0
    %2599 = vmatprep.subr.mxu0 0.0
    %2600 = vmatpush2.msra.mxu0 0.0
    %2601 = vmatprep.subr.mxu0 0.0
    %2602 = vmatpush2.msra.mxu0 0.0
    %2603 = vmatprep.subr.mxu0 0.0
    %2604 = vmatpush2.msra.mxu0 0.0
    %2605 = vmatprep.subr.mxu0 0.0
    %2606 = vmatpush2.msra.mxu0 0.0
    %2607 = vmatprep.subr.mxu0 0.0
    %2608 = vmatpush2.msra.mxu0 0.0
    %2609 = vmatprep.subr.mxu0 0.0
    %2610 = vmatpush2.msra.mxu0 0.0
    %2611 = vmatprep.subr.mxu0 0.0
    %2612 = vmatpush2.msra.mxu0 0.0
    %2613 = vmatprep.subr.mxu0 0.0
    %2614 = vmatpush2.msra.mxu0 0.0
    %2615 = vmatprep.subr.mxu0 0.0
    %2616 = vmatpush2.msra.mxu0 0.0
    %2617 = vmatprep.subr.mxu0 0.0
    %2618 = vmatpush2.msra.mxu0 0.0
    %2619 = vmatprep.subr.mxu0 0.0
    %2620 = vmatpush2.msra.mxu0 0.0
    %2621 = vmatprep.subr.mxu0 0.0
    %2622 = vmatpush2.msra.mxu0 0.0
    %2623 = vmatprep.subr.mxu0 0.0
    %2624 = vmatpush2.msra.mxu0 0.0
    %2625 = vmatprep.subr.mxu0 0.0
    %2626 = vmatpush2.msra.mxu0 0.0
    %2627 = vmatprep.subr.mxu0 0.0
    %2628 = vmatpush2.msra.mxu0 0.0
    %2629 = vmatprep.mubr.f32.mxu0 0.0
    %2630 = vmatmul.mubr.f32.gmra.mxu0 %v2563
    %v2631 = vpop.f32.mrf.mxu0
    %v2632 = vadd.f32 0.0, %v2631
    %v2633 = vpop.f32.mrf.mxu0
    %v2634 = vadd.f32 0.0, %v2633
    %2635 = vdwg.mxu0
    %2636 = vmatprep.subr.mxu0 0.0
    %2637 = vmatpush1.msra.mxu0 0.0
    %2638 = vmatprep.subr.mxu0 0.0
    %2639 = vmatpush1.msra.mxu0 0.0
    %2640 = vmatprep.subr.mxu0 0.0
    %2641 = vmatpush1.msra.mxu0 0.0
    %2642 = vmatprep.subr.mxu0 0.0
    %2643 = vmatpush1.msra.mxu0 0.0
    %2644 = vmatprep.subr.mxu0 0.0
    %2645 = vmatpush1.msra.mxu0 0.0
    %2646 = vmatprep.subr.mxu0 0.0
    %2647 = vmatpush1.msra.mxu0 0.0
    %2648 = vmatprep.subr.mxu0 0.0
    %2649 = vmatpush1.msra.mxu0 0.0
    %2650 = vmatprep.subr.mxu0 0.0
    %2651 = vmatpush1.msra.mxu0 0.0
    %2652 = vmatprep.subr.mxu0 0.0
    %2653 = vmatpush1.msra.mxu0 0.0
    %2654 = vmatprep.subr.mxu0 0.0
    %2655 = vmatpush1.msra.mxu0 0.0
    %2656 = vmatprep.subr.mxu0 0.0
    %2657 = vmatpush1.msra.mxu0 0.0
    %2658 = vmatprep.subr.mxu0 0.0
    %2659 = vmatpush1.msra.mxu0 0.0
    %2660 = vmatprep.subr.mxu0 0.0
    %2661 = vmatpush1.msra.mxu0 0.0
    %2662 = vmatprep.subr.mxu0 0.0
    %2663 = vmatpush1.msra.mxu0 0.0
    %2664 = vmatprep.subr.mxu0 %v618
    %2665 = vmatpush1.msra.mxu0 %v617
    %2666 = vmatprep.subr.mxu0 %v614
    %2667 = vmatpush1.msra.mxu0 %v613
    %2668 = vmatprep.subr.mxu0 0.0
    %2669 = vmatpush2.msra.mxu0 0.0
    %2670 = vmatprep.subr.mxu0 0.0
    %2671 = vmatpush2.msra.mxu0 0.0
    %2672 = vmatprep.subr.mxu0 0.0
    %2673 = vmatpush2.msra.mxu0 0.0
    %2674 = vmatprep.subr.mxu0 0.0
    %2675 = vmatpush2.msra.mxu0 0.0
    %2676 = vmatprep.subr.mxu0 0.0
    %2677 = vmatpush2.msra.mxu0 0.0
    %2678 = vmatprep.subr.mxu0 0.0
    %2679 = vmatpush2.msra.mxu0 0.0
    %2680 = vmatprep.subr.mxu0 0.0
    %2681 = vmatpush2.msra.mxu0 0.0
    %2682 = vmatprep.subr.mxu0 0.0
    %2683 = vmatpush2.msra.mxu0 0.0
    %2684 = vmatprep.subr.mxu0 0.0
    %2685 = vmatpush2.msra.mxu0 0.0
    %2686 = vmatprep.subr.mxu0 0.0
    %2687 = vmatpush2.msra.mxu0 0.0
    %2688 = vmatprep.subr.mxu0 0.0
    %2689 = vmatpush2.msra.mxu0 0.0
    %2690 = vmatprep.subr.mxu0 0.0
    %2691 = vmatpush2.msra.mxu0 0.0
    %2692 = vmatprep.subr.mxu0 0.0
    %2693 = vmatpush2.msra.mxu0 0.0
    %2694 = vmatprep.subr.mxu0 0.0
    %2695 = vmatpush2.msra.mxu0 0.0
    %2696 = vmatprep.subr.mxu0 0.0
    %2697 = vmatpush2.msra.mxu0 0.0
    %2698 = vmatprep.subr.mxu0 0.0
    %2699 = vmatpush2.msra.mxu0 0.0
    %2700 = vmatprep.mubr.f32.mxu0 0.0
    %2701 = vmatmul.mubr.f32.gmra.mxu0 %v2563
    %v2702 = vpop.f32.mrf.mxu0
    %v2703 = vadd.f32 0.0, %v2702
    %v2704 = vpop.f32.mrf.mxu0
    %v2705 = vadd.f32 0.0, %v2704
    %2706 = vdwg.mxu0
    %v2711 = vrot.slane %v2632, 2
    %v2712 = vrot.slane %v2634, 2
    %v2713 = vrot.slane %v2703, 2
    %v2714 = vrot.slane %v2705, 2
    %v2719 = vadd.f32 %v536, %v2711
    %v2720 = vadd.f32 %v538, %v2712
    %v2721 = vadd.f32 %v607, %v2713
    %v2722 = vadd.f32 %v609, %v2714
    %v2723 = vmul.f32 %v2719, 0.5
    %v2724 = vtanh.pop %v2723
    %v2725 = vadd.f32 %v2724, 1.0
    %v2726 = vmul.f32 %v2725, 0.5
    %v2727 = vmul.f32 %v2720, 0.5
    %v2728 = vtanh.pop %v2727
    %v2729 = vadd.f32 %v2728, 1.0
    %v2730 = vmul.f32 %v2729, 0.5
    %v2731 = vmul.f32 %v2726, %v2722
    %v2732 = vadd.f32 %v2721, %v2731
    %v2733 = vtanh.pop %v2732
    %v2734 = vsub.f32 1.0, %v2730
    %v2735 = vmul.f32 %v2734, %v2733
    %v2736 = vrot.slane %v2392, 7
    %v2738 = vmul.f32 %v2730, %v2736
    %v2739 = vadd.f32 %v2735, %v2738
    %v2741 = vrot.slane %v2559, 2
    %2742 = vrot.lane.b32.xlu0 %v2741, 16
    %v2743 = vpop.permute.xlu0 %2742
    %v2745 = vsel %vm70, %v2739, %v2743
    %v2747 = vrot.slane %v2745, 6
    %v2748 = vsel %vm268, %v2747, 0
    %2750 = vmatprep.subr.mxu0 0.0
    %2751 = vmatpush1.msra.mxu0 0.0
    %2752 = vmatprep.subr.mxu0 0.0
    %2753 = vmatpush1.msra.mxu0 0.0
    %2754 = vmatprep.subr.mxu0 0.0
    %2755 = vmatpush1.msra.mxu0 0.0
    %2756 = vmatprep.subr.mxu0 0.0
    %2757 = vmatpush1.msra.mxu0 0.0
    %2758 = vmatprep.subr.mxu0 0.0
    %2759 = vmatpush1.msra.mxu0 0.0
    %2760 = vmatprep.subr.mxu0 0.0
    %2761 = vmatpush1.msra.mxu0 0.0
    %2762 = vmatprep.subr.mxu0 0.0
    %2763 = vmatpush1.msra.mxu0 0.0
    %2764 = vmatprep.subr.mxu0 0.0
    %2765 = vmatpush1.msra.mxu0 0.0
    %2766 = vmatprep.subr.mxu0 0.0
    %2767 = vmatpush1.msra.mxu0 0.0
    %2768 = vmatprep.subr.mxu0 0.0
    %2769 = vmatpush1.msra.mxu0 0.0
    %2770 = vmatprep.subr.mxu0 0.0
    %2771 = vmatpush1.msra.mxu0 0.0
    %2772 = vmatprep.subr.mxu0 0.0
    %2773 = vmatpush1.msra.mxu0 0.0
    %2774 = vmatprep.subr.mxu0 %v632
    %2775 = vmatpush1.msra.mxu0 %v631
    %2776 = vmatprep.subr.mxu0 %v628
    %2777 = vmatpush1.msra.mxu0 %v627
    %2778 = vmatprep.subr.mxu0 %v624
    %2779 = vmatpush1.msra.mxu0 %v623
    %2780 = vmatprep.subr.mxu0 %v620
    %2781 = vmatpush1.msra.mxu0 %v619
    %2782 = vmatprep.subr.mxu0 0.0
    %2783 = vmatpush2.msra.mxu0 0.0
    %2784 = vmatprep.subr.mxu0 0.0
    %2785 = vmatpush2.msra.mxu0 0.0
    %2786 = vmatprep.subr.mxu0 0.0
    %2787 = vmatpush2.msra.mxu0 0.0
    %2788 = vmatprep.subr.mxu0 0.0
    %2789 = vmatpush2.msra.mxu0 0.0
    %2790 = vmatprep.subr.mxu0 0.0
    %2791 = vmatpush2.msra.mxu0 0.0
    %2792 = vmatprep.subr.mxu0 0.0
    %2793 = vmatpush2.msra.mxu0 0.0
    %2794 = vmatprep.subr.mxu0 0.0
    %2795 = vmatpush2.msra.mxu0 0.0
    %2796 = vmatprep.subr.mxu0 0.0
    %2797 = vmatpush2.msra.mxu0 0.0
    %2798 = vmatprep.subr.mxu0 0.0
    %2799 = vmatpush2.msra.mxu0 0.0
    %2800 = vmatprep.subr.mxu0 0.0
    %2801 = vmatpush2.msra.mxu0 0.0
    %2802 = vmatprep.subr.mxu0 0.0
    %2803 = vmatpush2.msra.mxu0 0.0
    %2804 = vmatprep.subr.mxu0 0.0
    %2805 = vmatpush2.msra.mxu0 0.0
    %2806 = vmatprep.subr.mxu0 0.0
    %2807 = vmatpush2.msra.mxu0 0.0
    %2808 = vmatprep.subr.mxu0 0.0
    %2809 = vmatpush2.msra.mxu0 0.0
    %2810 = vmatprep.subr.mxu0 0.0
    %2811 = vmatpush2.msra.mxu0 0.0
    %2812 = vmatprep.subr.mxu0 0.0
    %2813 = vmatpush2.msra.mxu0 0.0
    %2814 = vmatprep.mubr.f32.mxu0 0.0
    %2815 = vmatmul.mubr.f32.gmra.mxu0 %v2748
    %v2816 = vpop.f32.mrf.mxu0
    %v2817 = vadd.f32 %v654, %v2816
    %v2818 = vpop.f32.mrf.mxu0
    %v2819 = vadd.f32 %v658, %v2818
    %2820 = vdwg.mxu0
    %2821 = vmatprep.subr.mxu0 0.0
    %2822 = vmatpush1.msra.mxu0 0.0
    %2823 = vmatprep.subr.mxu0 0.0
    %2824 = vmatpush1.msra.mxu0 0.0
    %2825 = vmatprep.subr.mxu0 0.0
    %2826 = vmatpush1.msra.mxu0 0.0
    %2827 = vmatprep.subr.mxu0 0.0
    %2828 = vmatpush1.msra.mxu0 0.0
    %2829 = vmatprep.subr.mxu0 0.0
    %2830 = vmatpush1.msra.mxu0 0.0
    %2831 = vmatprep.subr.mxu0 0.0
    %2832 = vmatpush1.msra.mxu0 0.0
    %2833 = vmatprep.subr.mxu0 0.0
    %2834 = vmatpush1.msra.mxu0 0.0
    %2835 = vmatprep.subr.mxu0 0.0
    %2836 = vmatpush1.msra.mxu0 0.0
    %2837 = vmatprep.subr.mxu0 0.0
    %2838 = vmatpush1.msra.mxu0 0.0
    %2839 = vmatprep.subr.mxu0 0.0
    %2840 = vmatpush1.msra.mxu0 0.0
    %2841 = vmatprep.subr.mxu0 0.0
    %2842 = vmatpush1.msra.mxu0 0.0
    %2843 = vmatprep.subr.mxu0 0.0
    %2844 = vmatpush1.msra.mxu0 0.0
    %2845 = vmatprep.subr.mxu0 %v634
    %2846 = vmatpush1.msra.mxu0 %v633
    %2847 = vmatprep.subr.mxu0 %v630
    %2848 = vmatpush1.msra.mxu0 %v629
    %2849 = vmatprep.subr.mxu0 %v626
    %2850 = vmatpush1.msra.mxu0 %v625
    %2851 = vmatprep.subr.mxu0 %v622
    %2852 = vmatpush1.msra.mxu0 %v621
    %2853 = vmatprep.subr.mxu0 0.0
    %2854 = vmatpush2.msra.mxu0 0.0
    %2855 = vmatprep.subr.mxu0 0.0
    %2856 = vmatpush2.msra.mxu0 0.0
    %2857 = vmatprep.subr.mxu0 0.0
    %2858 = vmatpush2.msra.mxu0 0.0
    %2859 = vmatprep.subr.mxu0 0.0
    %2860 = vmatpush2.msra.mxu0 0.0
    %2861 = vmatprep.subr.mxu0 0.0
    %2862 = vmatpush2.msra.mxu0 0.0
    %2863 = vmatprep.subr.mxu0 0.0
    %2864 = vmatpush2.msra.mxu0 0.0
    %2865 = vmatprep.subr.mxu0 0.0
    %2866 = vmatpush2.msra.mxu0 0.0
    %2867 = vmatprep.subr.mxu0 0.0
    %2868 = vmatpush2.msra.mxu0 0.0
    %2869 = vmatprep.subr.mxu0 0.0
    %2870 = vmatpush2.msra.mxu0 0.0
    %2871 = vmatprep.subr.mxu0 0.0
    %2872 = vmatpush2.msra.mxu0 0.0
    %2873 = vmatprep.subr.mxu0 0.0
    %2874 = vmatpush2.msra.mxu0 0.0
    %2875 = vmatprep.subr.mxu0 0.0
    %2876 = vmatpush2.msra.mxu0 0.0
    %2877 = vmatprep.subr.mxu0 0.0
    %2878 = vmatpush2.msra.mxu0 0.0
    %2879 = vmatprep.subr.mxu0 0.0
    %2880 = vmatpush2.msra.mxu0 0.0
    %2881 = vmatprep.subr.mxu0 0.0
    %2882 = vmatpush2.msra.mxu0 0.0
    %2883 = vmatprep.subr.mxu0 0.0
    %2884 = vmatpush2.msra.mxu0 0.0
    %2885 = vmatprep.mubr.f32.mxu0 0.0
    %2886 = vmatmul.mubr.f32.gmra.mxu0 %v2748
    %v2887 = vpop.f32.mrf.mxu0
    %v2888 = vadd.f32 %v662, %v2887
    %v2889 = vpop.f32.mrf.mxu0
    %v2890 = vadd.f32 %v666, %v2889
    %2891 = vdwg.mxu0
    %v2892 = vmul.f32 %v2817, 0.5
    %v2893 = vtanh.pop %v2892
    %v2894 = vadd.f32 %v2893, 1.0
    %v2895 = vmul.f32 %v2894, 0.5
    %v2896 = vmul.f32 %v2819, 0.5
    %v2897 = vtanh.pop %v2896
    %v2898 = vadd.f32 %v2897, 1.0
    %v2899 = vmul.f32 %v2898, 0.5
    %v2900 = vmul.f32 %v2895, %v2890
    %v2901 = vadd.f32 %v2888, %v2900
    %v2902 = vtanh.pop %v2901
    %v2903 = vsub.f32 1.0, %v2899
    %v2904 = vmul.f32 %v2903, %v2902
    %v2905 = vmul.f32 %v2899, %v2559
    %v2906 = vadd.f32 %v2904, %v2905
    %2907 = vst [vmem:[#allocation2 + $0x6] sm:$0x1] %v2906
    %v2909 = vrot.slane %v2739, 6
    %v2910 = vsel %vm70, %v2909, 0
    %2912 = vmatprep.subr.mxu0 0.0
    %2913 = vmatpush1.msra.mxu0 0.0
    %2914 = vmatprep.subr.mxu0 0.0
    %2915 = vmatpush1.msra.mxu0 0.0
    %2916 = vmatprep.subr.mxu0 0.0
    %2917 = vmatpush1.msra.mxu0 0.0
    %2918 = vmatprep.subr.mxu0 0.0
    %2919 = vmatpush1.msra.mxu0 0.0
    %2920 = vmatprep.subr.mxu0 0.0
    %2921 = vmatpush1.msra.mxu0 0.0
    %2922 = vmatprep.subr.mxu0 0.0
    %2923 = vmatpush1.msra.mxu0 0.0
    %2924 = vmatprep.subr.mxu0 0.0
    %2925 = vmatpush1.msra.mxu0 0.0
    %2926 = vmatprep.subr.mxu0 0.0
    %2927 = vmatpush1.msra.mxu0 0.0
    %2928 = vmatprep.subr.mxu0 0.0
    %2929 = vmatpush1.msra.mxu0 0.0
    %2930 = vmatprep.subr.mxu0 0.0
    %2931 = vmatpush1.msra.mxu0 0.0
    %2932 = vmatprep.subr.mxu0 0.0
    %2933 = vmatpush1.msra.mxu0 0.0
    %2934 = vmatprep.subr.mxu0 0.0
    %2935 = vmatpush1.msra.mxu0 0.0
    %2936 = vmatprep.subr.mxu0 0.0
    %2937 = vmatpush1.msra.mxu0 0.0
    %2938 = vmatprep.subr.mxu0 0.0
    %2939 = vmatpush1.msra.mxu0 0.0
    %2940 = vmatprep.subr.mxu0 %v616
    %2941 = vmatpush1.msra.mxu0 %v615
    %2942 = vmatprep.subr.mxu0 %v612
    %2943 = vmatpush1.msra.mxu0 %v611
    %2944 = vmatprep.subr.mxu0 0.0
    %2945 = vmatpush2.msra.mxu0 0.0
    %2946 = vmatprep.subr.mxu0 0.0
    %2947 = vmatpush2.msra.mxu0 0.0
    %2948 = vmatprep.subr.mxu0 0.0
    %2949 = vmatpush2.msra.mxu0 0.0
    %2950 = vmatprep.subr.mxu0 0.0
    %2951 = vmatpush2.msra.mxu0 0.0
    %2952 = vmatprep.subr.mxu0 0.0
    %2953 = vmatpush2.msra.mxu0 0.0
    %2954 = vmatprep.subr.mxu0 0.0
    %2955 = vmatpush2.msra.mxu0 0.0
    %2956 = vmatprep.subr.mxu0 0.0
    %2957 = vmatpush2.msra.mxu0 0.0
    %2958 = vmatprep.subr.mxu0 0.0
    %2959 = vmatpush2.msra.mxu0 0.0
    %2960 = vmatprep.subr.mxu0 0.0
    %2961 = vmatpush2.msra.mxu0 0.0
    %2962 = vmatprep.subr.mxu0 0.0
    %2963 = vmatpush2.msra.mxu0 0.0
    %2964 = vmatprep.subr.mxu0 0.0
    %2965 = vmatpush2.msra.mxu0 0.0
    %2966 = vmatprep.subr.mxu0 0.0
    %2967 = vmatpush2.msra.mxu0 0.0
    %2968 = vmatprep.subr.mxu0 0.0
    %2969 = vmatpush2.msra.mxu0 0.0
    %2970 = vmatprep.subr.mxu0 0.0
    %2971 = vmatpush2.msra.mxu0 0.0
    %2972 = vmatprep.subr.mxu0 0.0
    %2973 = vmatpush2.msra.mxu0 0.0
    %2974 = vmatprep.subr.mxu0 0.0
    %2975 = vmatpush2.msra.mxu0 0.0
    %2976 = vmatprep.mubr.f32.mxu0 0.0
    %2977 = vmatmul.mubr.f32.gmra.mxu0 %v2910
    %v2978 = vpop.f32.mrf.mxu0
    %v2979 = vadd.f32 0.0, %v2978
    %v2980 = vpop.f32.mrf.mxu0
    %v2981 = vadd.f32 0.0, %v2980
    %2982 = vdwg.mxu0
    %2983 = vmatprep.subr.mxu0 0.0
    %2984 = vmatpush1.msra.mxu0 0.0
    %2985 = vmatprep.subr.mxu0 0.0
    %2986 = vmatpush1.msra.mxu0 0.0
    %2987 = vmatprep.subr.mxu0 0.0
    %2988 = vmatpush1.msra.mxu0 0.0
    %2989 = vmatprep.subr.mxu0 0.0
    %2990 = vmatpush1.msra.mxu0 0.0
    %2991 = vmatprep.subr.mxu0 0.0
    %2992 = vmatpush1.msra.mxu0 0.0
    %2993 = vmatprep.subr.mxu0 0.0
    %2994 = vmatpush1.msra.mxu0 0.0
    %2995 = vmatprep.subr.mxu0 0.0
    %2996 = vmatpush1.msra.mxu0 0.0
    %2997 = vmatprep.subr.mxu0 0.0
    %2998 = vmatpush1.msra.mxu0 0.0
    %2999 = vmatprep.subr.mxu0 0.0
    %3000 = vmatpush1.msra.mxu0 0.0
    %3001 = vmatprep.subr.mxu0 0.0
    %3002 = vmatpush1.msra.mxu0 0.0
    %3003 = vmatprep.subr.mxu0 0.0
    %3004 = vmatpush1.msra.mxu0 0.0
    %3005 = vmatprep.subr.mxu0 0.0
    %3006 = vmatpush1.msra.mxu0 0.0
    %3007 = vmatprep.subr.mxu0 0.0
    %3008 = vmatpush1.msra.mxu0 0.0
    %3009 = vmatprep.subr.mxu0 0.0
    %3010 = vmatpush1.msra.mxu0 0.0
    %3011 = vmatprep.subr.mxu0 %v618
    %3012 = vmatpush1.msra.mxu0 %v617
    %3013 = vmatprep.subr.mxu0 %v614
    %3014 = vmatpush1.msra.mxu0 %v613
    %3015 = vmatprep.subr.mxu0 0.0
    %3016 = vmatpush2.msra.mxu0 0.0
    %3017 = vmatprep.subr.mxu0 0.0
    %3018 = vmatpush2.msra.mxu0 0.0
    %3019 = vmatprep.subr.mxu0 0.0
    %3020 = vmatpush2.msra.mxu0 0.0
    %3021 = vmatprep.subr.mxu0 0.0
    %3022 = vmatpush2.msra.mxu0 0.0
    %3023 = vmatprep.subr.mxu0 0.0
    %3024 = vmatpush2.msra.mxu0 0.0
    %3025 = vmatprep.subr.mxu0 0.0
    %3026 = vmatpush2.msra.mxu0 0.0
    %3027 = vmatprep.subr.mxu0 0.0
    %3028 = vmatpush2.msra.mxu0 0.0
    %3029 = vmatprep.subr.mxu0 0.0
    %3030 = vmatpush2.msra.mxu0 0.0
    %3031 = vmatprep.subr.mxu0 0.0
    %3032 = vmatpush2.msra.mxu0 0.0
    %3033 = vmatprep.subr.mxu0 0.0
    %3034 = vmatpush2.msra.mxu0 0.0
    %3035 = vmatprep.subr.mxu0 0.0
    %3036 = vmatpush2.msra.mxu0 0.0
    %3037 = vmatprep.subr.mxu0 0.0
    %3038 = vmatpush2.msra.mxu0 0.0
    %3039 = vmatprep.subr.mxu0 0.0
    %3040 = vmatpush2.msra.mxu0 0.0
    %3041 = vmatprep.subr.mxu0 0.0
    %3042 = vmatpush2.msra.mxu0 0.0
    %3043 = vmatprep.subr.mxu0 0.0
    %3044 = vmatpush2.msra.mxu0 0.0
    %3045 = vmatprep.subr.mxu0 0.0
    %3046 = vmatpush2.msra.mxu0 0.0
    %3047 = vmatprep.mubr.f32.mxu0 0.0
    %3048 = vmatmul.mubr.f32.gmra.mxu0 %v2910
    %v3049 = vpop.f32.mrf.mxu0
    %v3050 = vadd.f32 0.0, %v3049
    %v3051 = vpop.f32.mrf.mxu0
    %v3052 = vadd.f32 0.0, %v3051
    %3053 = vdwg.mxu0
    %v3058 = vrot.slane %v2979, 1
    %v3059 = vrot.slane %v2981, 1
    %v3060 = vrot.slane %v3050, 1
    %v3061 = vrot.slane %v3052, 1
    %v3066 = vadd.f32 %v536, %v3058
    %v3067 = vadd.f32 %v538, %v3059
    %v3068 = vadd.f32 %v607, %v3060
    %v3069 = vadd.f32 %v609, %v3061
    %v3070 = vmul.f32 %v3066, 0.5
    %v3071 = vtanh.pop %v3070
    %v3072 = vadd.f32 %v3071, 1.0
    %v3073 = vmul.f32 %v3072, 0.5
    %v3074 = vmul.f32 %v3067, 0.5
    %v3075 = vtanh.pop %v3074
    %v3076 = vadd.f32 %v3075, 1.0
    %v3077 = vmul.f32 %v3076, 0.5
    %v3078 = vmul.f32 %v3073, %v3069
    %v3079 = vadd.f32 %v3068, %v3078
    %v3080 = vtanh.pop %v3079
    %v3081 = vsub.f32 1.0, %v3077
    %v3082 = vmul.f32 %v3081, %v3080
    %v3083 = vrot.slane %v2739, 7
    %v3085 = vmul.f32 %v3077, %v3083
    %v3086 = vadd.f32 %v3082, %v3085
    %v3088 = vrot.slane %v2906, 1
    %3089 = vrot.lane.b32.xlu0 %v3088, 16
    %v3090 = vpop.permute.xlu0 %3089
    %v3092 = vsel %vm70, %v3086, %v3090
    %v3094 = vrot.slane %v3092, 7
    %v3095 = vsel %vm268, %v3094, 0
    %3097 = vmatprep.subr.mxu0 0.0
    %3098 = vmatpush1.msra.mxu0 0.0
    %3099 = vmatprep.subr.mxu0 0.0
    %3100 = vmatpush1.msra.mxu0 0.0
    %3101 = vmatprep.subr.mxu0 0.0
    %3102 = vmatpush1.msra.mxu0 0.0
    %3103 = vmatprep.subr.mxu0 0.0
    %3104 = vmatpush1.msra.mxu0 0.0
    %3105 = vmatprep.subr.mxu0 0.0
    %3106 = vmatpush1.msra.mxu0 0.0
    %3107 = vmatprep.subr.mxu0 0.0
    %3108 = vmatpush1.msra.mxu0 0.0
    %3109 = vmatprep.subr.mxu0 0.0
    %3110 = vmatpush1.msra.mxu0 0.0
    %3111 = vmatprep.subr.mxu0 0.0
    %3112 = vmatpush1.msra.mxu0 0.0
    %3113 = vmatprep.subr.mxu0 0.0
    %3114 = vmatpush1.msra.mxu0 0.0
    %3115 = vmatprep.subr.mxu0 0.0
    %3116 = vmatpush1.msra.mxu0 0.0
    %3117 = vmatprep.subr.mxu0 0.0
    %3118 = vmatpush1.msra.mxu0 0.0
    %3119 = vmatprep.subr.mxu0 0.0
    %3120 = vmatpush1.msra.mxu0 0.0
    %3121 = vmatprep.subr.mxu0 %v632
    %3122 = vmatpush1.msra.mxu0 %v631
    %3123 = vmatprep.subr.mxu0 %v628
    %3124 = vmatpush1.msra.mxu0 %v627
    %3125 = vmatprep.subr.mxu0 %v624
    %3126 = vmatpush1.msra.mxu0 %v623
    %3127 = vmatprep.subr.mxu0 %v620
    %3128 = vmatpush1.msra.mxu0 %v619
    %3129 = vmatprep.subr.mxu0 0.0
    %3130 = vmatpush2.msra.mxu0 0.0
    %3131 = vmatprep.subr.mxu0 0.0
    %3132 = vmatpush2.msra.mxu0 0.0
    %3133 = vmatprep.subr.mxu0 0.0
    %3134 = vmatpush2.msra.mxu0 0.0
    %3135 = vmatprep.subr.mxu0 0.0
    %3136 = vmatpush2.msra.mxu0 0.0
    %3137 = vmatprep.subr.mxu0 0.0
    %3138 = vmatpush2.msra.mxu0 0.0
    %3139 = vmatprep.subr.mxu0 0.0
    %3140 = vmatpush2.msra.mxu0 0.0
    %3141 = vmatprep.subr.mxu0 0.0
    %3142 = vmatpush2.msra.mxu0 0.0
    %3143 = vmatprep.subr.mxu0 0.0
    %3144 = vmatpush2.msra.mxu0 0.0
    %3145 = vmatprep.subr.mxu0 0.0
    %3146 = vmatpush2.msra.mxu0 0.0
    %3147 = vmatprep.subr.mxu0 0.0
    %3148 = vmatpush2.msra.mxu0 0.0
    %3149 = vmatprep.subr.mxu0 0.0
    %3150 = vmatpush2.msra.mxu0 0.0
    %3151 = vmatprep.subr.mxu0 0.0
    %3152 = vmatpush2.msra.mxu0 0.0
    %3153 = vmatprep.subr.mxu0 0.0
    %3154 = vmatpush2.msra.mxu0 0.0
    %3155 = vmatprep.subr.mxu0 0.0
    %3156 = vmatpush2.msra.mxu0 0.0
    %3157 = vmatprep.subr.mxu0 0.0
    %3158 = vmatpush2.msra.mxu0 0.0
    %3159 = vmatprep.subr.mxu0 0.0
    %3160 = vmatpush2.msra.mxu0 0.0
    %3161 = vmatprep.mubr.f32.mxu0 0.0
    %3162 = vmatmul.mubr.f32.gmra.mxu0 %v3095
    %v3163 = vpop.f32.mrf.mxu0
    %v3164 = vadd.f32 %v654, %v3163
    %v3165 = vpop.f32.mrf.mxu0
    %v3166 = vadd.f32 %v658, %v3165
    %3167 = vdwg.mxu0
    %3168 = vmatprep.subr.mxu0 0.0
    %3169 = vmatpush1.msra.mxu0 0.0
    %3170 = vmatprep.subr.mxu0 0.0
    %3171 = vmatpush1.msra.mxu0 0.0
    %3172 = vmatprep.subr.mxu0 0.0
    %3173 = vmatpush1.msra.mxu0 0.0
    %3174 = vmatprep.subr.mxu0 0.0
    %3175 = vmatpush1.msra.mxu0 0.0
    %3176 = vmatprep.subr.mxu0 0.0
    %3177 = vmatpush1.msra.mxu0 0.0
    %3178 = vmatprep.subr.mxu0 0.0
    %3179 = vmatpush1.msra.mxu0 0.0
    %3180 = vmatprep.subr.mxu0 0.0
    %3181 = vmatpush1.msra.mxu0 0.0
    %3182 = vmatprep.subr.mxu0 0.0
    %3183 = vmatpush1.msra.mxu0 0.0
    %3184 = vmatprep.subr.mxu0 0.0
    %3185 = vmatpush1.msra.mxu0 0.0
    %3186 = vmatprep.subr.mxu0 0.0
    %3187 = vmatpush1.msra.mxu0 0.0
    %3188 = vmatprep.subr.mxu0 0.0
    %3189 = vmatpush1.msra.mxu0 0.0
    %3190 = vmatprep.subr.mxu0 0.0
    %3191 = vmatpush1.msra.mxu0 0.0
    %3192 = vmatprep.subr.mxu0 %v634
    %3193 = vmatpush1.msra.mxu0 %v633
    %3194 = vmatprep.subr.mxu0 %v630
    %3195 = vmatpush1.msra.mxu0 %v629
    %3196 = vmatprep.subr.mxu0 %v626
    %3197 = vmatpush1.msra.mxu0 %v625
    %3198 = vmatprep.subr.mxu0 %v622
    %3199 = vmatpush1.msra.mxu0 %v621
    %3200 = vmatprep.subr.mxu0 0.0
    %3201 = vmatpush2.msra.mxu0 0.0
    %3202 = vmatprep.subr.mxu0 0.0
    %3203 = vmatpush2.msra.mxu0 0.0
    %3204 = vmatprep.subr.mxu0 0.0
    %3205 = vmatpush2.msra.mxu0 0.0
    %3206 = vmatprep.subr.mxu0 0.0
    %3207 = vmatpush2.msra.mxu0 0.0
    %3208 = vmatprep.subr.mxu0 0.0
    %3209 = vmatpush2.msra.mxu0 0.0
    %3210 = vmatprep.subr.mxu0 0.0
    %3211 = vmatpush2.msra.mxu0 0.0
    %3212 = vmatprep.subr.mxu0 0.0
    %3213 = vmatpush2.msra.mxu0 0.0
    %3214 = vmatprep.subr.mxu0 0.0
    %3215 = vmatpush2.msra.mxu0 0.0
    %3216 = vmatprep.subr.mxu0 0.0
    %3217 = vmatpush2.msra.mxu0 0.0
    %3218 = vmatprep.subr.mxu0 0.0
    %3219 = vmatpush2.msra.mxu0 0.0
    %3220 = vmatprep.subr.mxu0 0.0
    %3221 = vmatpush2.msra.mxu0 0.0
    %3222 = vmatprep.subr.mxu0 0.0
    %3223 = vmatpush2.msra.mxu0 0.0
    %3224 = vmatprep.subr.mxu0 0.0
    %3225 = vmatpush2.msra.mxu0 0.0
    %3226 = vmatprep.subr.mxu0 0.0
    %3227 = vmatpush2.msra.mxu0 0.0
    %3228 = vmatprep.subr.mxu0 0.0
    %3229 = vmatpush2.msra.mxu0 0.0
    %3230 = vmatprep.subr.mxu0 0.0
    %3231 = vmatpush2.msra.mxu0 0.0
    %3232 = vmatprep.mubr.f32.mxu0 0.0
    %3233 = vmatmul.mubr.f32.gmra.mxu0 %v3095
    %v3234 = vpop.f32.mrf.mxu0
    %v3235 = vadd.f32 %v662, %v3234
    %v3236 = vpop.f32.mrf.mxu0
    %v3237 = vadd.f32 %v666, %v3236
    %3238 = vdwg.mxu0
    %v3239 = vmul.f32 %v3164, 0.5
    %v3240 = vtanh.pop %v3239
    %v3241 = vadd.f32 %v3240, 1.0
    %v3242 = vmul.f32 %v3241, 0.5
    %v3243 = vmul.f32 %v3166, 0.5
    %v3244 = vtanh.pop %v3243
    %v3245 = vadd.f32 %v3244, 1.0
    %v3246 = vmul.f32 %v3245, 0.5
    %v3247 = vmul.f32 %v3242, %v3237
    %v3248 = vadd.f32 %v3235, %v3247
    %v3249 = vtanh.pop %v3248
    %v3250 = vsub.f32 1.0, %v3246
    %v3251 = vmul.f32 %v3250, %v3249
    %v3252 = vmul.f32 %v3246, %v2906
    %v3253 = vadd.f32 %v3251, %v3252
    %3254 = vst [vmem:[#allocation2 + $0x7] sm:$0x1] %v3253
    %v3255 = vld [vmem:[#allocation2] sm:$0xff]
    %v3256 = vld [vmem:[#allocation6 + $0x200] sm:$0xff]
    %v3257 = vld [vmem:[#allocation6 + $0x208] sm:$0xff]
    %v3258 = vld [vmem:[#allocation6 + $0x220] sm:$0xff]
    %v3259 = vld [vmem:[#allocation6 + $0x228] sm:$0xff]
    %s3260 = scalar_lea.vmem [#allocation6], 580
    %v3261 = vld [vmem:[%s3260] ss:$8 sm:$0xf]
    %v3263 = vlaneseq
    %v3264 = vshrl.u32 %v3263, 7
    %v3265 = vsub.s32 0, %v3264
    %v3266 = vrot.slane %v3261, %v3265
    %v3269 = vsel %vm70, %v3255, 0
    %3271 = vmatprep.subr.mxu0 0.0
    %3272 = vmatpush1.msra.mxu0 0.0
    %3273 = vmatprep.subr.mxu0 0.0
    %3274 = vmatpush1.msra.mxu0 0.0
    %3275 = vmatprep.subr.mxu0 0.0
    %3276 = vmatpush1.msra.mxu0 0.0
    %3277 = vmatprep.subr.mxu0 0.0
    %3278 = vmatpush1.msra.mxu0 0.0
    %3279 = vmatprep.subr.mxu0 0.0
    %3280 = vmatpush1.msra.mxu0 0.0
    %3281 = vmatprep.subr.mxu0 0.0
    %3282 = vmatpush1.msra.mxu0 0.0
    %3283 = vmatprep.subr.mxu0 0.0
    %3284 = vmatpush1.msra.mxu0 0.0
    %3285 = vmatprep.subr.mxu0 0.0
    %3286 = vmatpush1.msra.mxu0 0.0
    %3287 = vmatprep.subr.mxu0 0.0
    %3288 = vmatpush1.msra.mxu0 0.0
    %3289 = vmatprep.subr.mxu0 0.0
    %3290 = vmatpush1.msra.mxu0 0.0
    %3291 = vmatprep.subr.mxu0 0.0
    %3292 = vmatpush1.msra.mxu0 0.0
    %3293 = vmatprep.subr.mxu0 0.0
    %3294 = vmatpush1.msra.mxu0 0.0
    %3295 = vmatprep.subr.mxu0 0.0
    %3296 = vmatpush1.msra.mxu0 0.0
    %3297 = vmatprep.subr.mxu0 0.0
    %3298 = vmatpush1.msra.mxu0 0.0
    %3299 = vmatprep.subr.mxu0 %v3259
    %3300 = vmatpush1.msra.mxu0 %v3258
    %3301 = vmatprep.subr.mxu0 %v3257
    %3302 = vmatpush1.msra.mxu0 %v3256
    %3303 = vmatprep.subr.mxu0 0.0
    %3304 = vmatpush2.msra.mxu0 0.0
    %3305 = vmatprep.subr.mxu0 0.0
    %3306 = vmatpush2.msra.mxu0 0.0
    %3307 = vmatprep.subr.mxu0 0.0
    %3308 = vmatpush2.msra.mxu0 0.0
    %3309 = vmatprep.subr.mxu0 0.0
    %3310 = vmatpush2.msra.mxu0 0.0
    %3311 = vmatprep.subr.mxu0 0.0
    %3312 = vmatpush2.msra.mxu0 0.0
    %3313 = vmatprep.subr.mxu0 0.0
    %3314 = vmatpush2.msra.mxu0 0.0
    %3315 = vmatprep.subr.mxu0 0.0
    %3316 = vmatpush2.msra.mxu0 0.0
    %3317 = vmatprep.subr.mxu0 0.0
    %3318 = vmatpush2.msra.mxu0 0.0
    %3319 = vmatprep.subr.mxu0 0.0
    %3320 = vmatpush2.msra.mxu0 0.0
    %3321 = vmatprep.subr.mxu0 0.0
    %3322 = vmatpush2.msra.mxu0 0.0
    %3323 = vmatprep.subr.mxu0 0.0
    %3324 = vmatpush2.msra.mxu0 0.0
    %3325 = vmatprep.subr.mxu0 0.0
    %3326 = vmatpush2.msra.mxu0 0.0
    %3327 = vmatprep.subr.mxu0 0.0
    %3328 = vmatpush2.msra.mxu0 0.0
    %3329 = vmatprep.subr.mxu0 0.0
    %3330 = vmatpush2.msra.mxu0 0.0
    %3331 = vmatprep.subr.mxu0 0.0
    %3332 = vmatpush2.msra.mxu0 0.0
    %3333 = vmatprep.subr.mxu0 0.0
    %3334 = vmatpush2.msra.mxu0 0.0
    %3335 = vmatprep.mubr.f32.mxu0 0.0
    %3336 = vmatmul.mubr.f32.gmra.mxu0 %v3269
    %v3337 = vpop.f32.mrf.mxu0
    %v3338 = vadd.f32 %v3266, %v3337
    %v3339 = vpop.f32.mrf.mxu0
    %3340 = vdwg.mxu0
    %3341 = vst.msk [vmem:[#allocation8] sm:$0xff] %vm70, %v3338
    // Predicated region
    $region18: #{gru_autoencoder.1} parent=1 // pred_check
      _
    $region19: #{gru_autoencoder.1} parent=1 // pred_check_branch
      %3343 = sbr.rel (0) target = $region21
    $region20: #{gru_autoencoder.1} parent=1 // pred_region
      %s3345 = ssub.s32 128, 128
      %3346 = vsyncadd [#allocation5], %s3345
      %s3348 = sshll.u32 [#allocation8], 4
      %s3349 = int_to_ptr.vmem [resolvable:$true] %s3348
      %3351 = dma.vmem_to_hbm [thread:$0]  %s3349, 128, %s2, [#allocation5]
    $region21: #{gru_autoencoder.1} parent=1 // pred_fallthru
      _
    // Predicated region
    $region22: #{gru_autoencoder.1} parent=1 // pred_check
      _
    $region23: #{gru_autoencoder.1} parent=1 // pred_check_branch
      %3353 = sbr.rel (0) target = $region25
    $region24: #{gru_autoencoder.1} parent=1 // pred_region
      %3354 = dma.done [#allocation5], 128
    $region25: #{gru_autoencoder.1} parent=1 // pred_fallthru
      _
    %3355 = vsyncpa [#allocation4], 1
    %3356 = vsyncpa [#allocation7], 1
    %3357 = vsyncpa [#allocation5], 1

</llo_original>
